<compile_context>
chip_gen: v7x
topology: tpu7x:2x2x1
jax: 0.10.0
libtpu: 0.0.40
codegen_flags: <defaults>
</compile_context>

<pallas_src>
import functools

import jax
import jax.numpy as jnp
import numpy as np
from jax.experimental import pallas as pl
from jax.experimental.pallas import tpu as pltpu

BN_EPS = 1e-5
GIN_EPS = 0.0            # GINConv default eps

TILE_M = 256             # pass-1 node-row tile   (matmul M dim, fills 256-wide MXU)
TILE_K = 512             # pass-1 reduction tile  (adjacency columns, wide DMAs)
TILE_R = 512             # passes 2/3 streaming row tile
LANE = 128               # pad all feature dims to a lane multiple
NODE_PAD = 512           # node padding multiple = lcm(TILE_M, TILE_K, TILE_R)

# Keep the (hi, lo) bf16 planes of x fully VMEM-resident in pass 1 up to this
# many padded nodes (2 planes x 2 pipeline buffers x n_p x 128 x 2 B = n_p KiB);
# beyond that, stream x per reduction tile instead.
X_RESIDENT_MAX_NODES = 16 * 1024


def _round_up(a, m):
    return (a + m - 1) // m * m


def _pad2(a, rows, cols):
    return jnp.pad(a, ((0, rows - a.shape[0]), (0, cols - a.shape[1])))


def _masked_stat_block(o, row_start, n_true, stat_shape):
    """(8, C) block: row 0 = masked column sums, row 1 = masked column sum-of-squares."""
    gid = row_start + jax.lax.broadcasted_iota(jnp.int32, o.shape, 0)
    msk = (gid < n_true).astype(o.dtype)            # exclude zero-padded rows
    om = o * msk
    s = jnp.sum(om, axis=0, keepdims=True)          # (1, C)
    q = jnp.sum(om * o, axis=0, keepdims=True)      # (1, C)  (mask in om is {0,1})
    rid = jax.lax.broadcasted_iota(jnp.int32, stat_shape, 0)
    return jnp.where(rid == 0, s, 0.0) + jnp.where(rid == 1, q, 0.0)


# --------------------------------------------------------------------------- #
# Pass 1: GIN aggregation (tiled bf16 dense adj @ bf16 hi/lo x) + lr1 + BN1    #
#         partial stats.                                                       #
# --------------------------------------------------------------------------- #
def _agg_lr1_kernel(x_resident, n_ref, adj_ref, xhi_ref, xlo_ref, w1_ref, b1_ref,
                    o1_ref, stat1_ref, acc_ref):
    i = pl.program_id(0)          # node row tile        ("parallel")
    k = pl.program_id(1)          # adjacency column tile ("arbitrary", reduction)
    nk = pl.num_programs(1)

    @pl.when(k == 0)
    def _():
        acc_ref[...] = jnp.zeros_like(acc_ref)

    if x_resident:
        # x planes are whole-array VMEM-resident; slice the current K window.
        ks = pl.multiple_of(k * TILE_K, TILE_K)
        x_hi = xhi_ref[pl.ds(ks, TILE_K), :]
        x_lo = xlo_ref[pl.ds(ks, TILE_K), :]
    else:
        x_hi = xhi_ref[...]
        x_lo = xlo_ref[...]

    adj = adj_ref[...]            # bf16 counts, fed straight to the MXU
    # x = x_hi + x_lo exactly to ~2^-16 relative; both matmuls are bf16-native
    # with f32 accumulation, so the aggregation matches the f32 reference to
    # well under the 2e-4 tolerance without any per-tile upcast of adj.
    acc_ref[...] += (
        jnp.dot(adj, x_hi, preferred_element_type=jnp.float32)
        + jnp.dot(adj, x_lo, preferred_element_type=jnp.float32))

    @pl.when(k == nk - 1)
    def _():
        o1 = jnp.dot(acc_ref[...], w1_ref[...],
                     preferred_element_type=jnp.float32) + b1_ref[...]
        o1_ref[...] = o1
        stat1_ref[...] = _masked_stat_block(o1, i * o1.shape[0], n_ref[0],
                                            stat1_ref.shape)


# --------------------------------------------------------------------------- #
# Pass 2: BN1 (folded scale/shift) + PReLU1 + lr2 + BN2 partial stats          #
# --------------------------------------------------------------------------- #
def _bn1_lr2_kernel(n_ref, al1_ref, o1_ref, sc1_ref, sh1_ref, w2_ref, b2_ref,
                    o2_ref, stat2_ref):
    i = pl.program_id(0)
    z = o1_ref[...] * sc1_ref[...] + sh1_ref[...]
    a1 = al1_ref[0]                                   # PReLU alpha from SMEM
    z = jnp.where(z >= 0.0, z, a1 * z)
    o2 = jnp.dot(z, w2_ref[...], preferred_element_type=jnp.float32) + b2_ref[...]
    o2_ref[...] = o2
    stat2_ref[...] = _masked_stat_block(o2, i * o2.shape[0], n_ref[0],
                                        stat2_ref.shape)


# --------------------------------------------------------------------------- #
# Pass 3: BN2 (folded scale/shift) + PReLU2 + residual x @ Wres + add          #
# --------------------------------------------------------------------------- #
def _bn2_res_kernel(al2_ref, o2_ref, sc2_ref, sh2_ref, xhi_ref, xlo_ref,
                    wres_ref, o_ref):
    z = o2_ref[...] * sc2_ref[...] + sh2_ref[...]
    a2 = al2_ref[0]
    z = jnp.where(z >= 0.0, z, a2 * z)
    # Reconstruct x to ~f32 accuracy from the bf16 planes and do the residual
    # matmul here (saves the pass-1 `res` write + its pass-3 re-read).
    x = xhi_ref[...].astype(jnp.float32) + xlo_ref[...].astype(jnp.float32)
    res = jnp.dot(x, wres_ref[...], preferred_element_type=jnp.float32)
    o_ref[...] = (z + res).astype(o_ref.dtype)


# --------------------------------------------------------------------------- #
# Wrapper                                                                      #
# --------------------------------------------------------------------------- #
@jax.jit
def maegin_forward(x, edge_index, params):
    n, d_in = x.shape
    hidden = params["w1"].shape[1]
    d_out = params["w2"].shape[1]

    n_p = _round_up(max(n, NODE_PAD), NODE_PAD)
    di_p = _round_up(d_in, LANE)
    h_p = _round_up(hidden, LANE)
    do_p = _round_up(d_out, LANE)
    r_m = n_p // TILE_M            # pass-1 row tiles
    r_k = n_p // TILE_K            # pass-1 reduction tiles
    r_s = n_p // TILE_R            # passes 2/3 row tiles

    # Dense adjacency A[dst, src] += 1 (duplicate edges accumulate) with the
    # GIN (1 + eps) self-term folded into the diagonal, built directly at the
    # padded shape with ONE scatter-add and ONE cast.  bf16 keeps small integer
    # counts (< 256 per (dst, src) pair) exact while halving the bytes of the
    # dominant HBM stream.
    src, dst = edge_index[0], edge_index[1]
    diag = jnp.arange(n, dtype=src.dtype)
    rows = jnp.concatenate([dst, diag])
    cols = jnp.concatenate([src, diag])
    vals = jnp.concatenate([jnp.ones(src.shape, jnp.float32),
                            jnp.full((n,), 1.0 + GIN_EPS, jnp.float32)])
    adj_p = (jnp.zeros((n_p, n_p), jnp.float32)
             .at[rows, cols].add(vals)
             .astype(jnp.bfloat16))

    # Split x into two bf16 planes (x ~= hi + lo) so the aggregation runs as
    # bf16-native MXU matmuls while keeping ~f32 accuracy.
    x_p = _pad2(x.astype(jnp.float32), n_p, di_p)
    x_hi = x_p.astype(jnp.bfloat16)
    x_lo = (x_p - x_hi.astype(jnp.float32)).astype(jnp.bfloat16)

    w1_p = _pad2(params["w1"], di_p, h_p)
    b1_p = _pad2(params["b1"].reshape(1, -1), 1, h_p)
    w2_p = _pad2(params["w2"], h_p, do_p)
    b2_p = _pad2(params["b2"].reshape(1, -1), 1, do_p)
    if "wres" in params:                 # input_dim != output_dim -> Linear(no bias)
        wres = params["wres"]
    else:                                # input_dim == output_dim -> Identity
        wres = jnp.eye(d_in, dtype=jnp.float32)
    wres_p = _pad2(wres, di_p, do_p)
    g1_p = _pad2(params["g1"].reshape(1, -1), 1, h_p)[0]
    be1_p = _pad2(params["be1"].reshape(1, -1), 1, h_p)[0]
    g2_p = _pad2(params["g2"].reshape(1, -1), 1, do_p)[0]
    be2_p = _pad2(params["be2"].reshape(1, -1), 1, do_p)[0]

    n_smem = jnp.array([n], jnp.int32)
    al1 = params["al1"].reshape(1).astype(jnp.float32)
    al2 = params["al2"].reshape(1).astype(jnp.float32)

    smem_spec = pl.BlockSpec(memory_space=pltpu.MemorySpace.SMEM)

    # ---------------- pass 1: aggregation + lr1 + BN1 stats ----------------
    x_resident = n_p <= X_RESIDENT_MAX_NODES
    if x_resident:
        x_spec = pl.BlockSpec((n_p, di_p), lambda i, k: (0, 0))   # DMA'd once
    else:
        x_spec = pl.BlockSpec((TILE_K, di_p), lambda i, k: (k, 0))

    # VMEM budget for pass 1 (double-buffered inputs); explicit so the bigger
    # tiles also work on v5e (16 MiB default scoped) and stay under v7x's
    # 64 MiB physical VMEM.
    x_buf = (2 * 2 * n_p * di_p * 2) if x_resident else (2 * 2 * TILE_K * di_p * 2)
    est1 = (2 * TILE_M * TILE_K * 2 + x_buf
            + 2 * (di_p * h_p * 4 + h_p * 4)
            + 2 * (TILE_M * h_p * 4 + 8 * h_p * 4)
            + TILE_M * di_p * 4)
    vmem1 = int(min(48 * 1024 * 1024, max(24 * 1024 * 1024, 2 * est1)))

    o1, stat1 = pl.pallas_call(
        functools.partial(_agg_lr1_kernel, x_resident),
        out_shape=(
            jax.ShapeDtypeStruct((n_p, h_p), jnp.float32),      # lr1 output
            jax.ShapeDtypeStruct((r_m * 8, h_p), jnp.float32),   # BN1 partial stats
        ),
        grid_spec=pltpu.PrefetchScalarGridSpec(
            num_scalar_prefetch=0,
            grid=(r_m, r_k),
            in_specs=[
                smem_spec,                                              # true node count
                pl.BlockSpec((TILE_M, TILE_K), lambda i, k: (i, k)),    # adj tile (bf16)
                x_spec,                                                 # x_hi
                x_spec,                                                 # x_lo
                pl.BlockSpec((di_p, h_p), lambda i, k: (0, 0)),         # W1
                pl.BlockSpec((1, h_p), lambda i, k: (0, 0)),            # b1
            ],
            out_specs=(
                pl.BlockSpec((TILE_M, h_p), lambda i, k: (i, 0)),
                pl.BlockSpec((8, h_p), lambda i, k: (i, 0)),
            ),
            scratch_shapes=[pltpu.VMEM((TILE_M, di_p), jnp.float32)],
        ),
        compiler_params=pltpu.CompilerParams(
            dimension_semantics=("parallel", "arbitrary"),
            vmem_limit_bytes=vmem1),
    )(n_smem, adj_p, x_hi, x_lo, w1_p, b1_p)

    # ---------------- glue: BN1 stats (tiny vectors) ----------------
    # TODO(synk): E[x^2]-(E[x])^2 in f32 can cancel for very large N / large
    # activations; switch to a centered two-pass if that regime matters.
    stat1 = stat1.reshape(r_m, 8, h_p)
    s1 = jnp.sum(stat1[:, 0, :], axis=0)
    q1 = jnp.sum(stat1[:, 1, :], axis=0)
    mean1 = s1 / n
    var1 = q1 / n - mean1 * mean1
    inv1 = g1_p * jax.lax.rsqrt(var1 + BN_EPS)
    scale1 = inv1.reshape(1, h_p)
    shift1 = (be1_p - mean1 * inv1).reshape(1, h_p)

    # ---------------- pass 2: BN1 + PReLU1 + lr2 + BN2 stats ----------------
    o2, stat2 = pl.pallas_call(
        _bn1_lr2_kernel,
        out_shape=(
            jax.ShapeDtypeStruct((n_p, do_p), jnp.float32),
            jax.ShapeDtypeStruct((r_s * 8, do_p), jnp.float32),
        ),
        grid_spec=pltpu.PrefetchScalarGridSpec(
            num_scalar_prefetch=0,
            grid=(r_s,),
            in_specs=[
                smem_spec,                                      # true node count
                smem_spec,                                      # PReLU alpha1
                pl.BlockSpec((TILE_R, h_p), lambda i: (i, 0)),  # o1 row tile
                pl.BlockSpec((1, h_p), lambda i: (0, 0)),       # scale1
                pl.BlockSpec((1, h_p), lambda i: (0, 0)),       # shift1
                pl.BlockSpec((h_p, do_p), lambda i: (0, 0)),    # W2
                pl.BlockSpec((1, do_p), lambda i: (0, 0)),      # b2
            ],
            out_specs=(
                pl.BlockSpec((TILE_R, do_p), lambda i: (i, 0)),
                pl.BlockSpec((8, do_p), lambda i: (i, 0)),
            ),
        ),
        compiler_params=pltpu.CompilerParams(dimension_semantics=("parallel",)),
    )(n_smem, al1, o1, scale1, shift1, w2_p, b2_p)

    # ---------------- glue: BN2 stats ----------------
    stat2 = stat2.reshape(r_s, 8, do_p)
    s2 = jnp.sum(stat2[:, 0, :], axis=0)
    q2 = jnp.sum(stat2[:, 1, :], axis=0)
    mean2 = s2 / n
    var2 = q2 / n - mean2 * mean2
    inv2 = g2_p * jax.lax.rsqrt(var2 + BN_EPS)
    scale2 = inv2.reshape(1, do_p)
    shift2 = (be2_p - mean2 * inv2).reshape(1, do_p)

    # ---------------- pass 3: BN2 + PReLU2 + residual ----------------
    out = pl.pallas_call(
        _bn2_res_kernel,
        out_shape=jax.ShapeDtypeStruct((n_p, do_p), jnp.float32),
        grid_spec=pltpu.PrefetchScalarGridSpec(
            num_scalar_prefetch=0,
            grid=(r_s,),
            in_specs=[
                smem_spec,                                       # PReLU alpha2
                pl.BlockSpec((TILE_R, do_p), lambda i: (i, 0)),  # o2 row tile
                pl.BlockSpec((1, do_p), lambda i: (0, 0)),       # scale2
                pl.BlockSpec((1, do_p), lambda i: (0, 0)),       # shift2
                pl.BlockSpec((TILE_R, di_p), lambda i: (i, 0)),  # x_hi row tile
                pl.BlockSpec((TILE_R, di_p), lambda i: (i, 0)),  # x_lo row tile
                pl.BlockSpec((di_p, do_p), lambda i: (0, 0)),    # Wres
            ],
            out_specs=pl.BlockSpec((TILE_R, do_p), lambda i: (i, 0)),
        ),
        compiler_params=pltpu.CompilerParams(dimension_semantics=("parallel",)),
    )(al2, o2, scale2, shift2, x_hi, x_lo, wres_p)

    return out[:n, :d_out]


# --------------------------------------------------------------------------- #
# Pure-JAX reference (training-mode BN semantics, matches the PyTorch module)  #
# --------------------------------------------------------------------------- #
def reference_forward(x, edge_index, p):
    n = x.shape[0]
    src, dst = edge_index[0], edge_index[1]
    adj = jnp.zeros((n, n), jnp.float32).at[dst, src].add(1.0)
    h = adj @ x + (1.0 + GIN_EPS) * x
    o = h @ p["w1"] + p["b1"]
    m = o.mean(0, keepdims=True)
    v = ((o - m) ** 2).mean(0, keepdims=True)
    o = (o - m) / jnp.sqrt(v + BN_EPS) * p["g1"] + p["be1"]
    o = jnp.where(o >= 0, o, p["al1"][0] * o)
    o = o @ p["w2"] + p["b2"]
    m = o.mean(0, keepdims=True)
    v = ((o - m) ** 2).mean(0, keepdims=True)
    o = (o - m) / jnp.sqrt(v + BN_EPS) * p["g2"] + p["be2"]
    o = jnp.where(o >= 0, o, p["al2"][0] * o)
    res = x @ p["wres"] if "wres" in p else x
    return o + res


if __name__ == "__main__":
    # Small deterministic synthetic graph (multiple pass-1 row tiles + padded rows).
    N_NODES = 300
    N_EDGES = 1200
    INPUT_DIM = 16
    HIDDEN_DIM = 32
    OUTPUT_DIM = 48   # != INPUT_DIM -> residual is Linear(input_dim, output_dim, bias=False)

    key = jax.random.PRNGKey(0)
    keys = jax.random.split(key, 12)

    x = jax.random.normal(keys[0], (N_NODES, INPUT_DIM), dtype=jnp.float32)
    src = jax.random.randint(keys[1], (N_EDGES,), 0, N_NODES)
    dst = jax.random.randint(keys[2], (N_EDGES,), 0, N_NODES)
    edge_index = jnp.stack([src, dst]).astype(jnp.int32)

    params = {
        "w1": 0.1 * jax.random.normal(keys[3], (INPUT_DIM, HIDDEN_DIM), jnp.float32),
        "b1": 0.1 * jax.random.normal(keys[4], (HIDDEN_DIM,), jnp.float32),
        "g1": 1.0 + 0.1 * jax.random.normal(keys[5], (HIDDEN_DIM,), jnp.float32),
        "be1": 0.1 * jax.random.normal(keys[6], (HIDDEN_DIM,), jnp.float32),
        "al1": jnp.full((1,), 0.25, jnp.float32),      # nn.PReLU default init
        "w2": 0.1 * jax.random.normal(keys[7], (HIDDEN_DIM, OUTPUT_DIM), jnp.float32),
        "b2": 0.1 * jax.random.normal(keys[8], (OUTPUT_DIM,), jnp.float32),
        "g2": 1.0 + 0.1 * jax.random.normal(keys[9], (OUTPUT_DIM,), jnp.float32),
        "be2": 0.1 * jax.random.normal(keys[10], (OUTPUT_DIM,), jnp.float32),
        "al2": jnp.full((1,), 0.25, jnp.float32),
        "wres": 0.1 * jax.random.normal(keys[11], (INPUT_DIM, OUTPUT_DIM), jnp.float32),
    }

    out = jax.block_until_ready(maegin_forward(x, edge_index, params))
    ref = jax.block_until_ready(reference_forward(x, edge_index, params))
    np.testing.assert_allclose(np.asarray(out), np.asarray(ref), rtol=2e-4, atol=2e-4)

    print("KERNEL_OK")
</pallas_src>

<mosaic_0001>
module attributes {stable_mosaic.version = 11 : i64} {
  func.func @_agg_lr1_kernel(%arg0: i32, %arg1: i32, %arg2: memref<1xi32, #tpu.memory_space<smem>>, %arg3: memref<256x512xbf16, #tpu.memory_space<vmem>>, %arg4: memref<512x128xbf16, #tpu.memory_space<vmem>>, %arg5: memref<512x128xbf16, #tpu.memory_space<vmem>>, %arg6: memref<128x128xf32, #tpu.memory_space<vmem>>, %arg7: memref<1x128xf32, #tpu.memory_space<vmem>>, %arg8: memref<256x128xf32, #tpu.memory_space<vmem>>, %arg9: memref<8x128xf32, #tpu.memory_space<vmem>>, %arg10: memref<256x128xf32, #tpu.memory_space<vmem>>) attributes {dimension_semantics = [#tpu.dimension_semantics<parallel>, #tpu.dimension_semantics<arbitrary>], iteration_bounds = array<i64: 2, 1>, scalar_prefetch = 0 : i64, scratch_operands = 1 : i64, tpu.core_type = #tpu.core_type<tc>, window_params = [{transform_indices = @transform_0, window_bounds = array<i64: 1>}, {transform_indices = @transform_1, window_bounds = array<i64: 256, 512>}, {pipeline_mode = #tpu.pipeline_mode<synchronous>, transform_indices = @transform_2, window_bounds = array<i64: 512, 128>}, {pipeline_mode = #tpu.pipeline_mode<synchronous>, transform_indices = @transform_3, window_bounds = array<i64: 512, 128>}, {pipeline_mode = #tpu.pipeline_mode<synchronous>, transform_indices = @transform_4, window_bounds = array<i64: 128, 128>}, {pipeline_mode = #tpu.pipeline_mode<synchronous>, transform_indices = @transform_5, window_bounds = array<i64: 1, 128>}, {transform_indices = @transform_6, window_bounds = array<i64: 256, 128>}, {transform_indices = @transform_7, window_bounds = array<i64: 8, 128>}]} {
    %c0_i32 = arith.constant 0 : i32
    %0 = arith.cmpi eq, %arg1, %c0_i32 : i32
    %1 = arith.extui %0 : i1 to i32
    %c0_i32_0 = arith.constant 0 : i32
    %2 = arith.cmpi ne, %1, %c0_i32_0 : i32
    scf.if %2 {
      %cst_11 = arith.constant 0.000000e+00 : f32
      %19 = vector.broadcast %cst_11 : f32 to vector<256x128xf32>
      %c0_12 = arith.constant 0 : index
      %c0_13 = arith.constant 0 : index
      %20 = vector.load %arg10[%c0_12, %c0_13] : memref<256x128xf32, #tpu.memory_space<vmem>>, vector<256x128xf32>
      tpu.vector_store %arg10[%c0_12, %c0_13], %19 {strides = array<i32>} : memref<256x128xf32, #tpu.memory_space<vmem>>, vector<256x128xf32>,
    } else {
    }
    %c512_i32 = arith.constant 512 : i32
    %3 = arith.muli %arg1, %c512_i32 : i32
    %4 = tpu.assume_multiple %3, 512 : i32
    %5 = arith.index_cast %4 : i32 to index
    %c0 = arith.constant 0 : index
    %6 = vector.load %arg4[%5, %c0] : memref<512x128xbf16, #tpu.memory_space<vmem>>, vector<512x128xbf16>
    %7 = arith.index_cast %4 : i32 to index
    %c0_1 = arith.constant 0 : index
    %8 = vector.load %arg5[%7, %c0_1] : memref<512x128xbf16, #tpu.memory_space<vmem>>, vector<512x128xbf16>
    %c0_2 = arith.constant 0 : index
    %c0_3 = arith.constant 0 : index
    %9 = vector.load %arg3[%c0_2, %c0_3] : memref<256x512xbf16, #tpu.memory_space<vmem>>, vector<256x512xbf16>
    %c0_4 = arith.constant 0 : index
    %c0_5 = arith.constant 0 : index
    %10 = vector.load %arg10[%c0_4, %c0_5] : memref<256x128xf32, #tpu.memory_space<vmem>>, vector<256x128xf32>
    %cst = arith.constant dense<0.000000e+00> : vector<256x128xf32>
    %11 = tpu.matmul %9, %6, %cst {dimension_numbers = #tpu.dot_dimension_numbers<[1], [0], [0], [1], [0, 0, 1, 1], [], []>} : vector<256x512xbf16>, vector<512x128xbf16>, vector<256x128xf32> -> vector<256x128xf32>
    %cst_6 = arith.constant dense<0.000000e+00> : vector<256x128xf32>
    %12 = tpu.matmul %9, %8, %cst_6 {dimension_numbers = #tpu.dot_dimension_numbers<[1], [0], [0], [1], [0, 0, 1, 1], [], []>} : vector<256x512xbf16>, vector<512x128xbf16>, vector<256x128xf32> -> vector<256x128xf32>
    %13 = arith.addf %11, %12 : vector<256x128xf32>
    %14 = arith.addf %10, %13 : vector<256x128xf32>
    %c0_7 = arith.constant 0 : index
    %c0_8 = arith.constant 0 : index
    %15 = vector.load %arg10[%c0_7, %c0_8] : memref<256x128xf32, #tpu.memory_space<vmem>>, vector<256x128xf32>
    tpu.vector_store %arg10[%c0_7, %c0_8], %14 {strides = array<i32>} : memref<256x128xf32, #tpu.memory_space<vmem>>, vector<256x128xf32>,
    %c0_i32_9 = arith.constant 0 : i32
    %16 = arith.cmpi eq, %arg1, %c0_i32_9 : i32
    %17 = arith.extui %16 : i1 to i32
    %c0_i32_10 = arith.constant 0 : i32
    %18 = arith.cmpi ne, %17, %c0_i32_10 : i32
    scf.if %18 {
      %c0_11 = arith.constant 0 : index
      %c0_12 = arith.constant 0 : index
      %19 = vector.load %arg10[%c0_11, %c0_12] : memref<256x128xf32, #tpu.memory_space<vmem>>, vector<256x128xf32>
      %c0_13 = arith.constant 0 : index
      %c0_14 = arith.constant 0 : index
      %20 = vector.load %arg6[%c0_13, %c0_14] : memref<128x128xf32, #tpu.memory_space<vmem>>, vector<128x128xf32>
      %cst_15 = arith.constant dense<0.000000e+00> : vector<256x128xf32>
      %21 = tpu.matmul %19, %20, %cst_15 {dimension_numbers = #tpu.dot_dimension_numbers<[1], [0], [0], [1], [0, 0, 1, 1], [], []>} : vector<256x128xf32>, vector<128x128xf32>, vector<256x128xf32> -> vector<256x128xf32>
      %c0_16 = arith.constant 0 : index
      %c0_17 = arith.constant 0 : index
      %22 = vector.load %arg7[%c0_16, %c0_17] : memref<1x128xf32, #tpu.memory_space<vmem>>, vector<1x128xf32>
      %23 = vector.broadcast %22 : vector<1x128xf32> to vector<256x128xf32>
      %24 = arith.addf %21, %23 : vector<256x128xf32>
      %c0_18 = arith.constant 0 : index
      %c0_19 = arith.constant 0 : index
      %25 = vector.load %arg8[%c0_18, %c0_19] : memref<256x128xf32, #tpu.memory_space<vmem>>, vector<256x128xf32>
      tpu.vector_store %arg8[%c0_18, %c0_19], %24 {strides = array<i32>} : memref<256x128xf32, #tpu.memory_space<vmem>>, vector<256x128xf32>,
      %c256_i32 = arith.constant 256 : i32
      %26 = arith.muli %arg0, %c256_i32 : i32
      %c0_20 = arith.constant 0 : index
      %27 = memref.load %arg2[%c0_20] : memref<1xi32, #tpu.memory_space<smem>>
      %28 = tpu.iota {dimensions = array<i32: 0>} : vector<256x128xi32>
      %29 = vector.broadcast %26 : i32 to vector<256x128xi32>
      %30 = arith.addi %29, %28 : vector<256x128xi32>
      %31 = vector.broadcast %27 : i32 to vector<256x128xi32>
      %32 = arith.cmpi slt, %30, %31 : vector<256x128xi32>
      %33 = arith.extui %32 : vector<256x128xi1> to vector<256x128xi32>
      %34 = arith.sitofp %33 : vector<256x128xi32> to vector<256x128xf32>
      %35 = arith.mulf %24, %34 : vector<256x128xf32>
      %cst_21 = arith.constant dense<0.000000e+00> : vector<128xf32>
      %36 = vector.multi_reduction <add>, %35, %cst_21 [0] : vector<256x128xf32> to vector<128xf32>
      %37 = vector.shape_cast %36 : vector<128xf32> to vector<1x128xf32>
      %38 = arith.mulf %35, %24 : vector<256x128xf32>
      %cst_22 = arith.constant dense<0.000000e+00> : vector<128xf32>
      %39 = vector.multi_reduction <add>, %38, %cst_22 [0] : vector<256x128xf32> to vector<128xf32>
      %40 = vector.shape_cast %39 : vector<128xf32> to vector<1x128xf32>
      %41 = tpu.iota {dimensions = array<i32: 0>} : vector<8x128xi32>
      %c0_i32_23 = arith.constant 0 : i32
      %42 = vector.broadcast %c0_i32_23 : i32 to vector<8x128xi32>
      %43 = arith.cmpi eq, %41, %42 : vector<8x128xi32>
      %cst_24 = arith.constant 0.000000e+00 : f32
      %44 = vector.shape_cast %37 : vector<1x128xf32> to vector<1x128xf32>
      %45 = vector.broadcast %44 : vector<1x128xf32> to vector<8x128xf32>
      %46 = vector.broadcast %cst_24 : f32 to vector<8x128xf32>
      %47 = arith.select %43, %45, %46 : vector<8x128xi1>, vector<8x128xf32>
      %c1_i32 = arith.constant 1 : i32
      %48 = vector.broadcast %c1_i32 : i32 to vector<8x128xi32>
      %49 = arith.cmpi eq, %41, %48 : vector<8x128xi32>
      %cst_25 = arith.constant 0.000000e+00 : f32
      %50 = vector.shape_cast %40 : vector<1x128xf32> to vector<1x128xf32>
      %51 = vector.broadcast %50 : vector<1x128xf32> to vector<8x128xf32>
      %52 = vector.broadcast %cst_25 : f32 to vector<8x128xf32>
      %53 = arith.select %49, %51, %52 : vector<8x128xi1>, vector<8x128xf32>
      %54 = arith.addf %47, %53 : vector<8x128xf32>
      %c0_26 = arith.constant 0 : index
      %c0_27 = arith.constant 0 : index
      %55 = vector.load %arg9[%c0_26, %c0_27] : memref<8x128xf32, #tpu.memory_space<vmem>>, vector<8x128xf32>
      tpu.vector_store %arg9[%c0_26, %c0_27], %54 {strides = array<i32>} : memref<8x128xf32, #tpu.memory_space<vmem>>, vector<8x128xf32>,
    } else {
    }
    return
  }
  func.func @transform_0(%arg0: i32, %arg1: i32) -> i32 {
    %c0_i32 = arith.constant 0 : i32
    %c0_i32_0 = arith.constant 0 : i32
    return %c0_i32 : i32
  }
  func.func @transform_1(%arg0: i32, %arg1: i32) -> (i32, i32) {
    %c0_i32 = arith.constant 0 : i32
    return %arg0, %arg1 : i32, i32
  }
  func.func @transform_2(%arg0: i32, %arg1: i32) -> (i32, i32) {
    %c0_i32 = arith.constant 0 : i32
    %c0_i32_0 = arith.constant 0 : i32
    %c0_i32_1 = arith.constant 0 : i32
    return %c0_i32, %c0_i32_0 : i32, i32
  }
  func.func @transform_3(%arg0: i32, %arg1: i32) -> (i32, i32) {
    %c0_i32 = arith.constant 0 : i32
    %c0_i32_0 = arith.constant 0 : i32
    %c0_i32_1 = arith.constant 0 : i32
    return %c0_i32, %c0_i32_0 : i32, i32
  }
  func.func @transform_4(%arg0: i32, %arg1: i32) -> (i32, i32) {
    %c0_i32 = arith.constant 0 : i32
    %c0_i32_0 = arith.constant 0 : i32
    %c0_i32_1 = arith.constant 0 : i32
    return %c0_i32, %c0_i32_0 : i32, i32
  }
  func.func @transform_5(%arg0: i32, %arg1: i32) -> (i32, i32) {
    %c0_i32 = arith.constant 0 : i32
    %c0_i32_0 = arith.constant 0 : i32
    %c0_i32_1 = arith.constant 0 : i32
    return %c0_i32, %c0_i32_0 : i32, i32
  }
  func.func @transform_6(%arg0: i32, %arg1: i32) -> (i32, i32) {
    %c0_i32 = arith.constant 0 : i32
    %c0_i32_0 = arith.constant 0 : i32
    return %arg0, %c0_i32 : i32, i32
  }
  func.func @transform_7(%arg0: i32, %arg1: i32) -> (i32, i32) {
    %c0_i32 = arith.constant 0 : i32
    %c0_i32_0 = arith.constant 0 : i32
    return %arg0, %c0_i32 : i32, i32
  }
}

module attributes {stable_mosaic.version = 11 : i64} {
  func.func @_bn1_lr2_kernel(%arg0: i32, %arg1: memref<1xi32, #tpu.memory_space<smem>>, %arg2: memref<1xf32, #tpu.memory_space<smem>>, %arg3: memref<512x128xf32, #tpu.memory_space<vmem>>, %arg4: memref<1x128xf32, #tpu.memory_space<vmem>>, %arg5: memref<1x128xf32, #tpu.memory_space<vmem>>, %arg6: memref<128x128xf32, #tpu.memory_space<vmem>>, %arg7: memref<1x128xf32, #tpu.memory_space<vmem>>, %arg8: memref<512x128xf32, #tpu.memory_space<vmem>>, %arg9: memref<8x128xf32, #tpu.memory_space<vmem>>) attributes {dimension_semantics = [#tpu.dimension_semantics<parallel>], iteration_bounds = array<i64: 1>, scalar_prefetch = 0 : i64, scratch_operands = 0 : i64, tpu.core_type = #tpu.core_type<tc>, window_params = [{transform_indices = @transform_0, window_bounds = array<i64: 1>}, {transform_indices = @transform_1, window_bounds = array<i64: 1>}, {transform_indices = @transform_2, window_bounds = array<i64: 512, 128>}, {pipeline_mode = #tpu.pipeline_mode<synchronous>, transform_indices = @transform_3, window_bounds = array<i64: 1, 128>}, {pipeline_mode = #tpu.pipeline_mode<synchronous>, transform_indices = @transform_4, window_bounds = array<i64: 1, 128>}, {pipeline_mode = #tpu.pipeline_mode<synchronous>, transform_indices = @transform_5, window_bounds = array<i64: 128, 128>}, {pipeline_mode = #tpu.pipeline_mode<synchronous>, transform_indices = @transform_6, window_bounds = array<i64: 1, 128>}, {transform_indices = @transform_7, window_bounds = array<i64: 512, 128>}, {transform_indices = @transform_8, window_bounds = array<i64: 8, 128>}]} {
    %c0 = arith.constant 0 : index
    %c0_0 = arith.constant 0 : index
    %0 = vector.load %arg3[%c0, %c0_0] : memref<512x128xf32, #tpu.memory_space<vmem>>, vector<512x128xf32>
    %c0_1 = arith.constant 0 : index
    %c0_2 = arith.constant 0 : index
    %1 = vector.load %arg4[%c0_1, %c0_2] : memref<1x128xf32, #tpu.memory_space<vmem>>, vector<1x128xf32>
    %2 = vector.broadcast %1 : vector<1x128xf32> to vector<512x128xf32>
    %3 = arith.mulf %0, %2 : vector<512x128xf32>
    %c0_3 = arith.constant 0 : index
    %c0_4 = arith.constant 0 : index
    %4 = vector.load %arg5[%c0_3, %c0_4] : memref<1x128xf32, #tpu.memory_space<vmem>>, vector<1x128xf32>
    %5 = vector.broadcast %4 : vector<1x128xf32> to vector<512x128xf32>
    %6 = arith.addf %3, %5 : vector<512x128xf32>
    %c0_5 = arith.constant 0 : index
    %7 = memref.load %arg2[%c0_5] : memref<1xf32, #tpu.memory_space<smem>>
    %cst = arith.constant 0.000000e+00 : f32
    %8 = vector.broadcast %cst : f32 to vector<512x128xf32>
    %9 = arith.cmpf oge, %6, %8 : vector<512x128xf32>
    %10 = vector.broadcast %7 : f32 to vector<512x128xf32>
    %11 = arith.mulf %10, %6 : vector<512x128xf32>
    %12 = arith.select %9, %6, %11 : vector<512x128xi1>, vector<512x128xf32>
    %c0_6 = arith.constant 0 : index
    %c0_7 = arith.constant 0 : index
    %13 = vector.load %arg6[%c0_6, %c0_7] : memref<128x128xf32, #tpu.memory_space<vmem>>, vector<128x128xf32>
    %cst_8 = arith.constant dense<0.000000e+00> : vector<512x128xf32>
    %14 = tpu.matmul %12, %13, %cst_8 {dimension_numbers = #tpu.dot_dimension_numbers<[1], [0], [0], [1], [0, 0, 1, 1], [], []>} : vector<512x128xf32>, vector<128x128xf32>, vector<512x128xf32> -> vector<512x128xf32>
    %c0_9 = arith.constant 0 : index
    %c0_10 = arith.constant 0 : index
    %15 = vector.load %arg7[%c0_9, %c0_10] : memref<1x128xf32, #tpu.memory_space<vmem>>, vector<1x128xf32>
    %16 = vector.broadcast %15 : vector<1x128xf32> to vector<512x128xf32>
    %17 = arith.addf %14, %16 : vector<512x128xf32>
    %c0_11 = arith.constant 0 : index
    %c0_12 = arith.constant 0 : index
    %18 = vector.load %arg8[%c0_11, %c0_12] : memref<512x128xf32, #tpu.memory_space<vmem>>, vector<512x128xf32>
    tpu.vector_store %arg8[%c0_11, %c0_12], %17 {strides = array<i32>} : memref<512x128xf32, #tpu.memory_space<vmem>>, vector<512x128xf32>,
    %c512_i32 = arith.constant 512 : i32
    %19 = arith.muli %arg0, %c512_i32 : i32
    %c0_13 = arith.constant 0 : index
    %20 = memref.load %arg1[%c0_13] : memref<1xi32, #tpu.memory_space<smem>>
    %21 = tpu.iota {dimensions = array<i32: 0>} : vector<512x128xi32>
    %22 = vector.broadcast %19 : i32 to vector<512x128xi32>
    %23 = arith.addi %22, %21 : vector<512x128xi32>
    %24 = vector.broadcast %20 : i32 to vector<512x128xi32>
    %25 = arith.cmpi slt, %23, %24 : vector<512x128xi32>
    %26 = arith.extui %25 : vector<512x128xi1> to vector<512x128xi32>
    %27 = arith.sitofp %26 : vector<512x128xi32> to vector<512x128xf32>
    %28 = arith.mulf %17, %27 : vector<512x128xf32>
    %cst_14 = arith.constant dense<0.000000e+00> : vector<128xf32>
    %29 = vector.multi_reduction <add>, %28, %cst_14 [0] : vector<512x128xf32> to vector<128xf32>
    %30 = vector.shape_cast %29 : vector<128xf32> to vector<1x128xf32>
    %31 = arith.mulf %28, %17 : vector<512x128xf32>
    %cst_15 = arith.constant dense<0.000000e+00> : vector<128xf32>
    %32 = vector.multi_reduction <add>, %31, %cst_15 [0] : vector<512x128xf32> to vector<128xf32>
    %33 = vector.shape_cast %32 : vector<128xf32> to vector<1x128xf32>
    %34 = tpu.iota {dimensions = array<i32: 0>} : vector<8x128xi32>
    %c0_i32 = arith.constant 0 : i32
    %35 = vector.broadcast %c0_i32 : i32 to vector<8x128xi32>
    %36 = arith.cmpi eq, %34, %35 : vector<8x128xi32>
    %cst_16 = arith.constant 0.000000e+00 : f32
    %37 = vector.shape_cast %30 : vector<1x128xf32> to vector<1x128xf32>
    %38 = vector.broadcast %37 : vector<1x128xf32> to vector<8x128xf32>
    %39 = vector.broadcast %cst_16 : f32 to vector<8x128xf32>
    %40 = arith.select %36, %38, %39 : vector<8x128xi1>, vector<8x128xf32>
    %c1_i32 = arith.constant 1 : i32
    %41 = vector.broadcast %c1_i32 : i32 to vector<8x128xi32>
    %42 = arith.cmpi eq, %34, %41 : vector<8x128xi32>
    %cst_17 = arith.constant 0.000000e+00 : f32
    %43 = vector.shape_cast %33 : vector<1x128xf32> to vector<1x128xf32>
    %44 = vector.broadcast %43 : vector<1x128xf32> to vector<8x128xf32>
    %45 = vector.broadcast %cst_17 : f32 to vector<8x128xf32>
    %46 = arith.select %42, %44, %45 : vector<8x128xi1>, vector<8x128xf32>
    %47 = arith.addf %40, %46 : vector<8x128xf32>
    %c0_18 = arith.constant 0 : index
    %c0_19 = arith.constant 0 : index
    %48 = vector.load %arg9[%c0_18, %c0_19] : memref<8x128xf32, #tpu.memory_space<vmem>>, vector<8x128xf32>
    tpu.vector_store %arg9[%c0_18, %c0_19], %47 {strides = array<i32>} : memref<8x128xf32, #tpu.memory_space<vmem>>, vector<8x128xf32>,
    return
  }
  func.func @transform_0(%arg0: i32) -> i32 {
    %c0_i32 = arith.constant 0 : i32
    %c0_i32_0 = arith.constant 0 : i32
    return %c0_i32 : i32
  }
  func.func @transform_1(%arg0: i32) -> i32 {
    %c0_i32 = arith.constant 0 : i32
    %c0_i32_0 = arith.constant 0 : i32
    return %c0_i32 : i32
  }
  func.func @transform_2(%arg0: i32) -> (i32, i32) {
    %c0_i32 = arith.constant 0 : i32
    %c0_i32_0 = arith.constant 0 : i32
    return %arg0, %c0_i32 : i32, i32
  }
  func.func @transform_3(%arg0: i32) -> (i32, i32) {
    %c0_i32 = arith.constant 0 : i32
    %c0_i32_0 = arith.constant 0 : i32
    %c0_i32_1 = arith.constant 0 : i32
    return %c0_i32, %c0_i32_0 : i32, i32
  }
  func.func @transform_4(%arg0: i32) -> (i32, i32) {
    %c0_i32 = arith.constant 0 : i32
    %c0_i32_0 = arith.constant 0 : i32
    %c0_i32_1 = arith.constant 0 : i32
    return %c0_i32, %c0_i32_0 : i32, i32
  }
  func.func @transform_5(%arg0: i32) -> (i32, i32) {
    %c0_i32 = arith.constant 0 : i32
    %c0_i32_0 = arith.constant 0 : i32
    %c0_i32_1 = arith.constant 0 : i32
    return %c0_i32, %c0_i32_0 : i32, i32
  }
  func.func @transform_6(%arg0: i32) -> (i32, i32) {
    %c0_i32 = arith.constant 0 : i32
    %c0_i32_0 = arith.constant 0 : i32
    %c0_i32_1 = arith.constant 0 : i32
    return %c0_i32, %c0_i32_0 : i32, i32
  }
  func.func @transform_7(%arg0: i32) -> (i32, i32) {
    %c0_i32 = arith.constant 0 : i32
    %c0_i32_0 = arith.constant 0 : i32
    return %arg0, %c0_i32 : i32, i32
  }
  func.func @transform_8(%arg0: i32) -> (i32, i32) {
    %c0_i32 = arith.constant 0 : i32
    %c0_i32_0 = arith.constant 0 : i32
    return %arg0, %c0_i32 : i32, i32
  }
}

module attributes {stable_mosaic.version = 11 : i64} {
  func.func @_bn2_res_kernel(%arg0: i32, %arg1: memref<1xf32, #tpu.memory_space<smem>>, %arg2: memref<512x128xf32, #tpu.memory_space<vmem>>, %arg3: memref<1x128xf32, #tpu.memory_space<vmem>>, %arg4: memref<1x128xf32, #tpu.memory_space<vmem>>, %arg5: memref<512x128xbf16, #tpu.memory_space<vmem>>, %arg6: memref<512x128xbf16, #tpu.memory_space<vmem>>, %arg7: memref<128x128xf32, #tpu.memory_space<vmem>>, %arg8: memref<512x128xf32, #tpu.memory_space<vmem>>) attributes {dimension_semantics = [#tpu.dimension_semantics<parallel>], iteration_bounds = array<i64: 1>, scalar_prefetch = 0 : i64, scratch_operands = 0 : i64, tpu.core_type = #tpu.core_type<tc>, window_params = [{transform_indices = @transform_0, window_bounds = array<i64: 1>}, {transform_indices = @transform_1, window_bounds = array<i64: 512, 128>}, {pipeline_mode = #tpu.pipeline_mode<synchronous>, transform_indices = @transform_2, window_bounds = array<i64: 1, 128>}, {pipeline_mode = #tpu.pipeline_mode<synchronous>, transform_indices = @transform_3, window_bounds = array<i64: 1, 128>}, {transform_indices = @transform_4, window_bounds = array<i64: 512, 128>}, {transform_indices = @transform_5, window_bounds = array<i64: 512, 128>}, {pipeline_mode = #tpu.pipeline_mode<synchronous>, transform_indices = @transform_6, window_bounds = array<i64: 128, 128>}, {transform_indices = @transform_7, window_bounds = array<i64: 512, 128>}]} {
    %c0 = arith.constant 0 : index
    %c0_0 = arith.constant 0 : index
    %0 = vector.load %arg2[%c0, %c0_0] : memref<512x128xf32, #tpu.memory_space<vmem>>, vector<512x128xf32>
    %c0_1 = arith.constant 0 : index
    %c0_2 = arith.constant 0 : index
    %1 = vector.load %arg3[%c0_1, %c0_2] : memref<1x128xf32, #tpu.memory_space<vmem>>, vector<1x128xf32>
    %2 = vector.broadcast %1 : vector<1x128xf32> to vector<512x128xf32>
    %3 = arith.mulf %0, %2 : vector<512x128xf32>
    %c0_3 = arith.constant 0 : index
    %c0_4 = arith.constant 0 : index
    %4 = vector.load %arg4[%c0_3, %c0_4] : memref<1x128xf32, #tpu.memory_space<vmem>>, vector<1x128xf32>
    %5 = vector.broadcast %4 : vector<1x128xf32> to vector<512x128xf32>
    %6 = arith.addf %3, %5 : vector<512x128xf32>
    %c0_5 = arith.constant 0 : index
    %7 = memref.load %arg1[%c0_5] : memref<1xf32, #tpu.memory_space<smem>>
    %cst = arith.constant 0.000000e+00 : f32
    %8 = vector.broadcast %cst : f32 to vector<512x128xf32>
    %9 = arith.cmpf oge, %6, %8 : vector<512x128xf32>
    %10 = vector.broadcast %7 : f32 to vector<512x128xf32>
    %11 = arith.mulf %10, %6 : vector<512x128xf32>
    %12 = arith.select %9, %6, %11 : vector<512x128xi1>, vector<512x128xf32>
    %c0_6 = arith.constant 0 : index
    %c0_7 = arith.constant 0 : index
    %13 = vector.load %arg5[%c0_6, %c0_7] : memref<512x128xbf16, #tpu.memory_space<vmem>>, vector<512x128xbf16>
    %14 = arith.extf %13 : vector<512x128xbf16> to vector<512x128xf32>
    %c0_8 = arith.constant 0 : index
    %c0_9 = arith.constant 0 : index
    %15 = vector.load %arg6[%c0_8, %c0_9] : memref<512x128xbf16, #tpu.memory_space<vmem>>, vector<512x128xbf16>
    %16 = arith.extf %15 : vector<512x128xbf16> to vector<512x128xf32>
    %17 = arith.addf %14, %16 : vector<512x128xf32>
    %c0_10 = arith.constant 0 : index
    %c0_11 = arith.constant 0 : index
    %18 = vector.load %arg7[%c0_10, %c0_11] : memref<128x128xf32, #tpu.memory_space<vmem>>, vector<128x128xf32>
    %cst_12 = arith.constant dense<0.000000e+00> : vector<512x128xf32>
    %19 = tpu.matmul %17, %18, %cst_12 {dimension_numbers = #tpu.dot_dimension_numbers<[1], [0], [0], [1], [0, 0, 1, 1], [], []>} : vector<512x128xf32>, vector<128x128xf32>, vector<512x128xf32> -> vector<512x128xf32>
    %20 = arith.addf %12, %19 : vector<512x128xf32>
    %c0_13 = arith.constant 0 : index
    %c0_14 = arith.constant 0 : index
    %21 = vector.load %arg8[%c0_13, %c0_14] : memref<512x128xf32, #tpu.memory_space<vmem>>, vector<512x128xf32>
    tpu.vector_store %arg8[%c0_13, %c0_14], %20 {strides = array<i32>} : memref<512x128xf32, #tpu.memory_space<vmem>>, vector<512x128xf32>,
    return
  }
  func.func @transform_0(%arg0: i32) -> i32 {
    %c0_i32 = arith.constant 0 : i32
    %c0_i32_0 = arith.constant 0 : i32
    return %c0_i32 : i32
  }
  func.func @transform_1(%arg0: i32) -> (i32, i32) {
    %c0_i32 = arith.constant 0 : i32
    %c0_i32_0 = arith.constant 0 : i32
    return %arg0, %c0_i32 : i32, i32
  }
  func.func @transform_2(%arg0: i32) -> (i32, i32) {
    %c0_i32 = arith.constant 0 : i32
    %c0_i32_0 = arith.constant 0 : i32
    %c0_i32_1 = arith.constant 0 : i32
    return %c0_i32, %c0_i32_0 : i32, i32
  }
  func.func @transform_3(%arg0: i32) -> (i32, i32) {
    %c0_i32 = arith.constant 0 : i32
    %c0_i32_0 = arith.constant 0 : i32
    %c0_i32_1 = arith.constant 0 : i32
    return %c0_i32, %c0_i32_0 : i32, i32
  }
  func.func @transform_4(%arg0: i32) -> (i32, i32) {
    %c0_i32 = arith.constant 0 : i32
    %c0_i32_0 = arith.constant 0 : i32
    return %arg0, %c0_i32 : i32, i32
  }
  func.func @transform_5(%arg0: i32) -> (i32, i32) {
    %c0_i32 = arith.constant 0 : i32
    %c0_i32_0 = arith.constant 0 : i32
    return %arg0, %c0_i32 : i32, i32
  }
  func.func @transform_6(%arg0: i32) -> (i32, i32) {
    %c0_i32 = arith.constant 0 : i32
    %c0_i32_0 = arith.constant 0 : i32
    %c0_i32_1 = arith.constant 0 : i32
    return %c0_i32, %c0_i32_0 : i32, i32
  }
  func.func @transform_7(%arg0: i32) -> (i32, i32) {
    %c0_i32 = arith.constant 0 : i32
    %c0_i32_0 = arith.constant 0 : i32
    return %arg0, %c0_i32 : i32, i32
  }
}

</mosaic_0001>

<llo_original>
// kernel: maegin_forward.4
$region0: #{maegin_forward.4}
  #allocation0 [shape = 'u32[]', space=smem, size = 0x4, offset = 0x4, fixed_abs, tag = 'smem constant byte address 0x4 - core index']
  #allocation1 [shape = 'u32[144,128]{1,0:T(1,128)}', space=vmem, size = 0x12000, scoped, tag = 'internal scratch']
  #allocation2 [shape = 's32[1]{0:T(128)S(6)}', space=smem, size = 0x200, scoped, tag = 'scoped memory for maegin_forward.4']
  #allocation3 [shape = 'f32[1]{0:T(128)S(6)}', space=smem, size = 0x200, scoped, tag = 'scoped memory for maegin_forward.4']
  %s0 = inlined_call_operand.<no memory space> [shape: s32[1], index: 0, kind: input, shape index: {}]
  %s1 = inlined_call_operand.<no memory space> [shape: f32[1], index: 1, kind: input, shape index: {}]
  %s2 = inlined_call_operand.vmem [shape: f32[512,128], index: 2, kind: input, shape index: {}]
  %s3 = inlined_call_operand.vmem [shape: f32[1,128], index: 3, kind: input, shape index: {}]
  %s4 = inlined_call_operand.vmem [shape: f32[1,128], index: 4, kind: input, shape index: {}]
  %s5 = inlined_call_operand.vmem [shape: f32[128,128], index: 5, kind: input, shape index: {}]
  %s6 = inlined_call_operand.vmem [shape: f32[1,128], index: 6, kind: input, shape index: {}]
  %s7 = inlined_call_operand.vmem [shape: f32[512,128], index: 7, kind: output, shape index: {0}]
  %s8 = inlined_call_operand.vmem [shape: f32[8,128], index: 8, kind: output, shape index: {1}]
  %9 = xla_tuple %s7, %s8
  %s10 = sld [smem:[#allocation0]]
  $region46: #{maegin_forward.4} parent=0
    _
  %s12 = ssub.s32 1, %s10
  %s13 = scalar_select 0, %s12, %s10
  %14 = sst [smem:[#allocation2]] %s0
  %15 = sst [smem:[#allocation3]] %s1
  // Predicated region
  $region2: #{maegin_forward.4} parent=0 // pred_check
    _
  $region3: #{maegin_forward.4} parent=0 // pred_check_branch
    %17 = sbr.rel (0) target = $region5
  $region4: #{maegin_forward.4} parent=0 // pred_region
    _
  $region5: #{maegin_forward.4} parent=0 // pred_fallthru
    _
  // Predicated region
  $region6: #{maegin_forward.4} parent=0 // pred_check
    _
  $region7: #{maegin_forward.4} parent=0 // pred_check_branch
    %19 = sbr.rel (0) target = $region9
  $region8: #{maegin_forward.4} parent=0 // pred_region
    _
  $region9: #{maegin_forward.4} parent=0 // pred_fallthru
    _
  // Predicated region
  $region10: #{maegin_forward.4} parent=0 // pred_check
    _
  $region11: #{maegin_forward.4} parent=0 // pred_check_branch
    %21 = sbr.rel (0) target = $region13
  $region12: #{maegin_forward.4} parent=0 // pred_region
    _
  $region13: #{maegin_forward.4} parent=0 // pred_fallthru
    _
  // Predicated region
  $region14: #{maegin_forward.4} parent=0 // pred_check
    _
  $region15: #{maegin_forward.4} parent=0 // pred_check_branch
    %23 = sbr.rel (0) target = $region17
  $region16: #{maegin_forward.4} parent=0 // pred_region
    _
  $region17: #{maegin_forward.4} parent=0 // pred_fallthru
    _
  // Predicated region
  $region18: #{maegin_forward.4} parent=0 // pred_check
    _
  $region19: #{maegin_forward.4} parent=0 // pred_check_branch
    %25 = sbr.rel (0) target = $region21
  $region20: #{maegin_forward.4} parent=0 // pred_region
    _
  $region21: #{maegin_forward.4} parent=0 // pred_fallthru
    _
  // Predicated region
  $region22: #{maegin_forward.4} parent=0 // pred_check
    _
  $region23: #{maegin_forward.4} parent=0 // pred_check_branch
    %27 = sbr.rel (0) target = $region25
  $region24: #{maegin_forward.4} parent=0 // pred_region
    _
  $region25: #{maegin_forward.4} parent=0 // pred_fallthru
    _
  // Predicated region
  $region26: #{maegin_forward.4} parent=0 // pred_check
    _
  $region27: #{maegin_forward.4} parent=0 // pred_check_branch
    %29 = sbr.rel (0) target = $region29
  $region28: #{maegin_forward.4} parent=0 // pred_region
    _
  $region29: #{maegin_forward.4} parent=0 // pred_fallthru
    _
  %v30 = vld [vmem:[%s2] sm:$0xff]
  %v31 = vld [vmem:[%s2 + $0x8] sm:$0xff]
  %v32 = vld [vmem:[%s2 + $0x10] sm:$0xff]
  %v33 = vld [vmem:[%s2 + $0x18] sm:$0xff]
  %v34 = vld [vmem:[%s2 + $0x20] sm:$0xff]
  %v35 = vld [vmem:[%s2 + $0x28] sm:$0xff]
  %v36 = vld [vmem:[%s2 + $0x30] sm:$0xff]
  %v37 = vld [vmem:[%s2 + $0x38] sm:$0xff]
  %v38 = vld [vmem:[%s2 + $0x40] sm:$0xff]
  %v39 = vld [vmem:[%s2 + $0x48] sm:$0xff]
  %v40 = vld [vmem:[%s2 + $0x50] sm:$0xff]
  %v41 = vld [vmem:[%s2 + $0x58] sm:$0xff]
  %v42 = vld [vmem:[%s2 + $0x60] sm:$0xff]
  %v43 = vld [vmem:[%s2 + $0x68] sm:$0xff]
  %v44 = vld [vmem:[%s2 + $0x70] sm:$0xff]
  %v45 = vld [vmem:[%s2 + $0x78] sm:$0xff]
  %v46 = vld [vmem:[%s2 + $0x80] sm:$0xff]
  %v47 = vld [vmem:[%s2 + $0x88] sm:$0xff]
  %v48 = vld [vmem:[%s2 + $0x90] sm:$0xff]
  %v49 = vld [vmem:[%s2 + $0x98] sm:$0xff]
  %v50 = vld [vmem:[%s2 + $0xa0] sm:$0xff]
  %v51 = vld [vmem:[%s2 + $0xa8] sm:$0xff]
  %v52 = vld [vmem:[%s2 + $0xb0] sm:$0xff]
  %v53 = vld [vmem:[%s2 + $0xb8] sm:$0xff]
  %v54 = vld [vmem:[%s2 + $0xc0] sm:$0xff]
  %v55 = vld [vmem:[%s2 + $0xc8] sm:$0xff]
  %v56 = vld [vmem:[%s2 + $0xd0] sm:$0xff]
  %v57 = vld [vmem:[%s2 + $0xd8] sm:$0xff]
  %v58 = vld [vmem:[%s2 + $0xe0] sm:$0xff]
  %v59 = vld [vmem:[%s2 + $0xe8] sm:$0xff]
  %v60 = vld [vmem:[%s2 + $0xf0] sm:$0xff]
  %v61 = vld [vmem:[%s2 + $0xf8] sm:$0xff]
  %v62 = vld [vmem:[%s2 + $0x100] sm:$0xff]
  %v63 = vld [vmem:[%s2 + $0x108] sm:$0xff]
  %v64 = vld [vmem:[%s2 + $0x110] sm:$0xff]
  %v65 = vld [vmem:[%s2 + $0x118] sm:$0xff]
  %v66 = vld [vmem:[%s2 + $0x120] sm:$0xff]
  %v67 = vld [vmem:[%s2 + $0x128] sm:$0xff]
  %v68 = vld [vmem:[%s2 + $0x130] sm:$0xff]
  %v69 = vld [vmem:[%s2 + $0x138] sm:$0xff]
  %v70 = vld [vmem:[%s2 + $0x140] sm:$0xff]
  %v71 = vld [vmem:[%s2 + $0x148] sm:$0xff]
  %v72 = vld [vmem:[%s2 + $0x150] sm:$0xff]
  %v73 = vld [vmem:[%s2 + $0x158] sm:$0xff]
  %v74 = vld [vmem:[%s2 + $0x160] sm:$0xff]
  %v75 = vld [vmem:[%s2 + $0x168] sm:$0xff]
  %v76 = vld [vmem:[%s2 + $0x170] sm:$0xff]
  %v77 = vld [vmem:[%s2 + $0x178] sm:$0xff]
  %v78 = vld [vmem:[%s2 + $0x180] sm:$0xff]
  %v79 = vld [vmem:[%s2 + $0x188] sm:$0xff]
  %v80 = vld [vmem:[%s2 + $0x190] sm:$0xff]
  %v81 = vld [vmem:[%s2 + $0x198] sm:$0xff]
  %v82 = vld [vmem:[%s2 + $0x1a0] sm:$0xff]
  %v83 = vld [vmem:[%s2 + $0x1a8] sm:$0xff]
  %v84 = vld [vmem:[%s2 + $0x1b0] sm:$0xff]
  %v85 = vld [vmem:[%s2 + $0x1b8] sm:$0xff]
  %v86 = vld [vmem:[%s2 + $0x1c0] sm:$0xff]
  %v87 = vld [vmem:[%s2 + $0x1c8] sm:$0xff]
  %v88 = vld [vmem:[%s2 + $0x1d0] sm:$0xff]
  %v89 = vld [vmem:[%s2 + $0x1d8] sm:$0xff]
  %v90 = vld [vmem:[%s2 + $0x1e0] sm:$0xff]
  %v91 = vld [vmem:[%s2 + $0x1e8] sm:$0xff]
  %v92 = vld [vmem:[%s2 + $0x1f0] sm:$0xff]
  %v93 = vld [vmem:[%s2 + $0x1f8] sm:$0xff]
  %v94 = vld [vmem:[%s3] sm:$0x1]
  %v96 = vlaneseq
  %v97 = vshrl.u32 %v96, 7
  %v98 = vsub.s32 0, %v97
  %v99 = vrot.slane %v94, %v98
  %v101 = vmul.f32 %v30, %v99
  %v102 = vmul.f32 %v31, %v99
  %v103 = vmul.f32 %v32, %v99
  %v104 = vmul.f32 %v33, %v99
  %v105 = vmul.f32 %v34, %v99
  %v106 = vmul.f32 %v35, %v99
  %v107 = vmul.f32 %v36, %v99
  %v108 = vmul.f32 %v37, %v99
  %v109 = vmul.f32 %v38, %v99
  %v110 = vmul.f32 %v39, %v99
  %v111 = vmul.f32 %v40, %v99
  %v112 = vmul.f32 %v41, %v99
  %v113 = vmul.f32 %v42, %v99
  %v114 = vmul.f32 %v43, %v99
  %v115 = vmul.f32 %v44, %v99
  %v116 = vmul.f32 %v45, %v99
  %v117 = vmul.f32 %v46, %v99
  %v118 = vmul.f32 %v47, %v99
  %v119 = vmul.f32 %v48, %v99
  %v120 = vmul.f32 %v49, %v99
  %v121 = vmul.f32 %v50, %v99
  %v122 = vmul.f32 %v51, %v99
  %v123 = vmul.f32 %v52, %v99
  %v124 = vmul.f32 %v53, %v99
  %v125 = vmul.f32 %v54, %v99
  %v126 = vmul.f32 %v55, %v99
  %v127 = vmul.f32 %v56, %v99
  %v128 = vmul.f32 %v57, %v99
  %v129 = vmul.f32 %v58, %v99
  %v130 = vmul.f32 %v59, %v99
  %v131 = vmul.f32 %v60, %v99
  %v132 = vmul.f32 %v61, %v99
  %v133 = vmul.f32 %v62, %v99
  %v134 = vmul.f32 %v63, %v99
  %v135 = vmul.f32 %v64, %v99
  %v136 = vmul.f32 %v65, %v99
  %v137 = vmul.f32 %v66, %v99
  %v138 = vmul.f32 %v67, %v99
  %v139 = vmul.f32 %v68, %v99
  %v140 = vmul.f32 %v69, %v99
  %v141 = vmul.f32 %v70, %v99
  %v142 = vmul.f32 %v71, %v99
  %v143 = vmul.f32 %v72, %v99
  %v144 = vmul.f32 %v73, %v99
  %v145 = vmul.f32 %v74, %v99
  %v146 = vmul.f32 %v75, %v99
  %v147 = vmul.f32 %v76, %v99
  %v148 = vmul.f32 %v77, %v99
  %v149 = vmul.f32 %v78, %v99
  %v150 = vmul.f32 %v79, %v99
  %v151 = vmul.f32 %v80, %v99
  %v152 = vmul.f32 %v81, %v99
  %v153 = vmul.f32 %v82, %v99
  %v154 = vmul.f32 %v83, %v99
  %v155 = vmul.f32 %v84, %v99
  %v156 = vmul.f32 %v85, %v99
  %v157 = vmul.f32 %v86, %v99
  %v158 = vmul.f32 %v87, %v99
  %v159 = vmul.f32 %v88, %v99
  %v160 = vmul.f32 %v89, %v99
  %v161 = vmul.f32 %v90, %v99
  %v162 = vmul.f32 %v91, %v99
  %v163 = vmul.f32 %v92, %v99
  %v164 = vmul.f32 %v93, %v99
  %v165 = vld [vmem:[%s4] sm:$0x1]
  %v167 = vlaneseq
  %v168 = vshrl.u32 %v167, 7
  %v169 = vsub.s32 0, %v168
  %v170 = vrot.slane %v165, %v169
  %v172 = vadd.f32 %v101, %v170
  %v173 = vadd.f32 %v102, %v170
  %v174 = vadd.f32 %v103, %v170
  %v175 = vadd.f32 %v104, %v170
  %v176 = vadd.f32 %v105, %v170
  %v177 = vadd.f32 %v106, %v170
  %v178 = vadd.f32 %v107, %v170
  %v179 = vadd.f32 %v108, %v170
  %v180 = vadd.f32 %v109, %v170
  %v181 = vadd.f32 %v110, %v170
  %v182 = vadd.f32 %v111, %v170
  %v183 = vadd.f32 %v112, %v170
  %v184 = vadd.f32 %v113, %v170
  %v185 = vadd.f32 %v114, %v170
  %v186 = vadd.f32 %v115, %v170
  %v187 = vadd.f32 %v116, %v170
  %v188 = vadd.f32 %v117, %v170
  %v189 = vadd.f32 %v118, %v170
  %v190 = vadd.f32 %v119, %v170
  %v191 = vadd.f32 %v120, %v170
  %v192 = vadd.f32 %v121, %v170
  %v193 = vadd.f32 %v122, %v170
  %v194 = vadd.f32 %v123, %v170
  %v195 = vadd.f32 %v124, %v170
  %v196 = vadd.f32 %v125, %v170
  %v197 = vadd.f32 %v126, %v170
  %v198 = vadd.f32 %v127, %v170
  %v199 = vadd.f32 %v128, %v170
  %v200 = vadd.f32 %v129, %v170
  %v201 = vadd.f32 %v130, %v170
  %v202 = vadd.f32 %v131, %v170
  %v203 = vadd.f32 %v132, %v170
  %v204 = vadd.f32 %v133, %v170
  %v205 = vadd.f32 %v134, %v170
  %v206 = vadd.f32 %v135, %v170
  %v207 = vadd.f32 %v136, %v170
  %v208 = vadd.f32 %v137, %v170
  %v209 = vadd.f32 %v138, %v170
  %v210 = vadd.f32 %v139, %v170
  %v211 = vadd.f32 %v140, %v170
  %v212 = vadd.f32 %v141, %v170
  %v213 = vadd.f32 %v142, %v170
  %v214 = vadd.f32 %v143, %v170
  %v215 = vadd.f32 %v144, %v170
  %v216 = vadd.f32 %v145, %v170
  %v217 = vadd.f32 %v146, %v170
  %v218 = vadd.f32 %v147, %v170
  %v219 = vadd.f32 %v148, %v170
  %v220 = vadd.f32 %v149, %v170
  %v221 = vadd.f32 %v150, %v170
  %v222 = vadd.f32 %v151, %v170
  %v223 = vadd.f32 %v152, %v170
  %v224 = vadd.f32 %v153, %v170
  %v225 = vadd.f32 %v154, %v170
  %v226 = vadd.f32 %v155, %v170
  %v227 = vadd.f32 %v156, %v170
  %v228 = vadd.f32 %v157, %v170
  %v229 = vadd.f32 %v158, %v170
  %v230 = vadd.f32 %v159, %v170
  %v231 = vadd.f32 %v160, %v170
  %v232 = vadd.f32 %v161, %v170
  %v233 = vadd.f32 %v162, %v170
  %v234 = vadd.f32 %v163, %v170
  %v235 = vadd.f32 %v164, %v170
  %s236 = sld [smem:[#allocation3]]
  %vm237 = vcmp.ge.f32.partialorder %v172, 0.0
  %vm238 = vcmp.ge.f32.partialorder %v173, 0.0
  %vm239 = vcmp.ge.f32.partialorder %v174, 0.0
  %vm240 = vcmp.ge.f32.partialorder %v175, 0.0
  %vm241 = vcmp.ge.f32.partialorder %v176, 0.0
  %vm242 = vcmp.ge.f32.partialorder %v177, 0.0
  %vm243 = vcmp.ge.f32.partialorder %v178, 0.0
  %vm244 = vcmp.ge.f32.partialorder %v179, 0.0
  %vm245 = vcmp.ge.f32.partialorder %v180, 0.0
  %vm246 = vcmp.ge.f32.partialorder %v181, 0.0
  %vm247 = vcmp.ge.f32.partialorder %v182, 0.0
  %vm248 = vcmp.ge.f32.partialorder %v183, 0.0
  %vm249 = vcmp.ge.f32.partialorder %v184, 0.0
  %vm250 = vcmp.ge.f32.partialorder %v185, 0.0
  %vm251 = vcmp.ge.f32.partialorder %v186, 0.0
  %vm252 = vcmp.ge.f32.partialorder %v187, 0.0
  %vm253 = vcmp.ge.f32.partialorder %v188, 0.0
  %vm254 = vcmp.ge.f32.partialorder %v189, 0.0
  %vm255 = vcmp.ge.f32.partialorder %v190, 0.0
  %vm256 = vcmp.ge.f32.partialorder %v191, 0.0
  %vm257 = vcmp.ge.f32.partialorder %v192, 0.0
  %vm258 = vcmp.ge.f32.partialorder %v193, 0.0
  %vm259 = vcmp.ge.f32.partialorder %v194, 0.0
  %vm260 = vcmp.ge.f32.partialorder %v195, 0.0
  %vm261 = vcmp.ge.f32.partialorder %v196, 0.0
  %vm262 = vcmp.ge.f32.partialorder %v197, 0.0
  %vm263 = vcmp.ge.f32.partialorder %v198, 0.0
  %vm264 = vcmp.ge.f32.partialorder %v199, 0.0
  %vm265 = vcmp.ge.f32.partialorder %v200, 0.0
  %vm266 = vcmp.ge.f32.partialorder %v201, 0.0
  %vm267 = vcmp.ge.f32.partialorder %v202, 0.0
  %vm268 = vcmp.ge.f32.partialorder %v203, 0.0
  %vm269 = vcmp.ge.f32.partialorder %v204, 0.0
  %vm270 = vcmp.ge.f32.partialorder %v205, 0.0
  %vm271 = vcmp.ge.f32.partialorder %v206, 0.0
  %vm272 = vcmp.ge.f32.partialorder %v207, 0.0
  %vm273 = vcmp.ge.f32.partialorder %v208, 0.0
  %vm274 = vcmp.ge.f32.partialorder %v209, 0.0
  %vm275 = vcmp.ge.f32.partialorder %v210, 0.0
  %vm276 = vcmp.ge.f32.partialorder %v211, 0.0
  %vm277 = vcmp.ge.f32.partialorder %v212, 0.0
  %vm278 = vcmp.ge.f32.partialorder %v213, 0.0
  %vm279 = vcmp.ge.f32.partialorder %v214, 0.0
  %vm280 = vcmp.ge.f32.partialorder %v215, 0.0
  %vm281 = vcmp.ge.f32.partialorder %v216, 0.0
  %vm282 = vcmp.ge.f32.partialorder %v217, 0.0
  %vm283 = vcmp.ge.f32.partialorder %v218, 0.0
  %vm284 = vcmp.ge.f32.partialorder %v219, 0.0
  %vm285 = vcmp.ge.f32.partialorder %v220, 0.0
  %vm286 = vcmp.ge.f32.partialorder %v221, 0.0
  %vm287 = vcmp.ge.f32.partialorder %v222, 0.0
  %vm288 = vcmp.ge.f32.partialorder %v223, 0.0
  %vm289 = vcmp.ge.f32.partialorder %v224, 0.0
  %vm290 = vcmp.ge.f32.partialorder %v225, 0.0
  %vm291 = vcmp.ge.f32.partialorder %v226, 0.0
  %vm292 = vcmp.ge.f32.partialorder %v227, 0.0
  %vm293 = vcmp.ge.f32.partialorder %v228, 0.0
  %vm294 = vcmp.ge.f32.partialorder %v229, 0.0
  %vm295 = vcmp.ge.f32.partialorder %v230, 0.0
  %vm296 = vcmp.ge.f32.partialorder %v231, 0.0
  %vm297 = vcmp.ge.f32.partialorder %v232, 0.0
  %vm298 = vcmp.ge.f32.partialorder %v233, 0.0
  %vm299 = vcmp.ge.f32.partialorder %v234, 0.0
  %vm300 = vcmp.ge.f32.partialorder %v235, 0.0
  %v301 = vstv %s236
  %v302 = vmul.f32 %v301, %v172
  %v303 = vmul.f32 %v301, %v173
  %v304 = vmul.f32 %v301, %v174
  %v305 = vmul.f32 %v301, %v175
  %v306 = vmul.f32 %v301, %v176
  %v307 = vmul.f32 %v301, %v177
  %v308 = vmul.f32 %v301, %v178
  %v309 = vmul.f32 %v301, %v179
  %v310 = vmul.f32 %v301, %v180
  %v311 = vmul.f32 %v301, %v181
  %v312 = vmul.f32 %v301, %v182
  %v313 = vmul.f32 %v301, %v183
  %v314 = vmul.f32 %v301, %v184
  %v315 = vmul.f32 %v301, %v185
  %v316 = vmul.f32 %v301, %v186
  %v317 = vmul.f32 %v301, %v187
  %v318 = vmul.f32 %v301, %v188
  %v319 = vmul.f32 %v301, %v189
  %v320 = vmul.f32 %v301, %v190
  %v321 = vmul.f32 %v301, %v191
  %v322 = vmul.f32 %v301, %v192
  %v323 = vmul.f32 %v301, %v193
  %v324 = vmul.f32 %v301, %v194
  %v325 = vmul.f32 %v301, %v195
  %v326 = vmul.f32 %v301, %v196
  %v327 = vmul.f32 %v301, %v197
  %v328 = vmul.f32 %v301, %v198
  %v329 = vmul.f32 %v301, %v199
  %v330 = vmul.f32 %v301, %v200
  %v331 = vmul.f32 %v301, %v201
  %v332 = vmul.f32 %v301, %v202
  %v333 = vmul.f32 %v301, %v203
  %v334 = vmul.f32 %v301, %v204
  %v335 = vmul.f32 %v301, %v205
  %v336 = vmul.f32 %v301, %v206
  %v337 = vmul.f32 %v301, %v207
  %v338 = vmul.f32 %v301, %v208
  %v339 = vmul.f32 %v301, %v209
  %v340 = vmul.f32 %v301, %v210
  %v341 = vmul.f32 %v301, %v211
  %v342 = vmul.f32 %v301, %v212
  %v343 = vmul.f32 %v301, %v213
  %v344 = vmul.f32 %v301, %v214
  %v345 = vmul.f32 %v301, %v215
  %v346 = vmul.f32 %v301, %v216
  %v347 = vmul.f32 %v301, %v217
  %v348 = vmul.f32 %v301, %v218
  %v349 = vmul.f32 %v301, %v219
  %v350 = vmul.f32 %v301, %v220
  %v351 = vmul.f32 %v301, %v221
  %v352 = vmul.f32 %v301, %v222
  %v353 = vmul.f32 %v301, %v223
  %v354 = vmul.f32 %v301, %v224
  %v355 = vmul.f32 %v301, %v225
  %v356 = vmul.f32 %v301, %v226
  %v357 = vmul.f32 %v301, %v227
  %v358 = vmul.f32 %v301, %v228
  %v359 = vmul.f32 %v301, %v229
  %v360 = vmul.f32 %v301, %v230
  %v361 = vmul.f32 %v301, %v231
  %v362 = vmul.f32 %v301, %v232
  %v363 = vmul.f32 %v301, %v233
  %v364 = vmul.f32 %v301, %v234
  %v365 = vmul.f32 %v301, %v235
  %v366 = vsel %vm237, %v172, %v302
  %v367 = vsel %vm238, %v173, %v303
  %v368 = vsel %vm239, %v174, %v304
  %v369 = vsel %vm240, %v175, %v305
  %v370 = vsel %vm241, %v176, %v306
  %v371 = vsel %vm242, %v177, %v307
  %v372 = vsel %vm243, %v178, %v308
  %v373 = vsel %vm244, %v179, %v309
  %v374 = vsel %vm245, %v180, %v310
  %v375 = vsel %vm246, %v181, %v311
  %v376 = vsel %vm247, %v182, %v312
  %v377 = vsel %vm248, %v183, %v313
  %v378 = vsel %vm249, %v184, %v314
  %v379 = vsel %vm250, %v185, %v315
  %v380 = vsel %vm251, %v186, %v316
  %v381 = vsel %vm252, %v187, %v317
  %v382 = vsel %vm253, %v188, %v318
  %v383 = vsel %vm254, %v189, %v319
  %v384 = vsel %vm255, %v190, %v320
  %v385 = vsel %vm256, %v191, %v321
  %v386 = vsel %vm257, %v192, %v322
  %v387 = vsel %vm258, %v193, %v323
  %v388 = vsel %vm259, %v194, %v324
  %v389 = vsel %vm260, %v195, %v325
  %v390 = vsel %vm261, %v196, %v326
  %v391 = vsel %vm262, %v197, %v327
  %v392 = vsel %vm263, %v198, %v328
  %v393 = vsel %vm264, %v199, %v329
  %v394 = vsel %vm265, %v200, %v330
  %v395 = vsel %vm266, %v201, %v331
  %v396 = vsel %vm267, %v202, %v332
  %v397 = vsel %vm268, %v203, %v333
  %v398 = vsel %vm269, %v204, %v334
  %v399 = vsel %vm270, %v205, %v335
  %v400 = vsel %vm271, %v206, %v336
  %v401 = vsel %vm272, %v207, %v337
  %v402 = vsel %vm273, %v208, %v338
  %v403 = vsel %vm274, %v209, %v339
  %v404 = vsel %vm275, %v210, %v340
  %v405 = vsel %vm276, %v211, %v341
  %v406 = vsel %vm277, %v212, %v342
  %v407 = vsel %vm278, %v213, %v343
  %v408 = vsel %vm279, %v214, %v344
  %v409 = vsel %vm280, %v215, %v345
  %v410 = vsel %vm281, %v216, %v346
  %v411 = vsel %vm282, %v217, %v347
  %v412 = vsel %vm283, %v218, %v348
  %v413 = vsel %vm284, %v219, %v349
  %v414 = vsel %vm285, %v220, %v350
  %v415 = vsel %vm286, %v221, %v351
  %v416 = vsel %vm287, %v222, %v352
  %v417 = vsel %vm288, %v223, %v353
  %v418 = vsel %vm289, %v224, %v354
  %v419 = vsel %vm290, %v225, %v355
  %v420 = vsel %vm291, %v226, %v356
  %v421 = vsel %vm292, %v227, %v357
  %v422 = vsel %vm293, %v228, %v358
  %v423 = vsel %vm294, %v229, %v359
  %v424 = vsel %vm295, %v230, %v360
  %v425 = vsel %vm296, %v231, %v361
  %v426 = vsel %vm297, %v232, %v362
  %v427 = vsel %vm298, %v233, %v363
  %v428 = vsel %vm299, %v234, %v364
  %v429 = vsel %vm300, %v235, %v365
  %v430 = vld [vmem:[%s5] sm:$0xff]
  %v431 = vld [vmem:[%s5 + $0x8] sm:$0xff]
  %v432 = vld [vmem:[%s5 + $0x10] sm:$0xff]
  %v433 = vld [vmem:[%s5 + $0x18] sm:$0xff]
  %v434 = vld [vmem:[%s5 + $0x20] sm:$0xff]
  %v435 = vld [vmem:[%s5 + $0x28] sm:$0xff]
  %v436 = vld [vmem:[%s5 + $0x30] sm:$0xff]
  %v437 = vld [vmem:[%s5 + $0x38] sm:$0xff]
  %v438 = vld [vmem:[%s5 + $0x40] sm:$0xff]
  %v439 = vld [vmem:[%s5 + $0x48] sm:$0xff]
  %v440 = vld [vmem:[%s5 + $0x50] sm:$0xff]
  %v441 = vld [vmem:[%s5 + $0x58] sm:$0xff]
  %v442 = vld [vmem:[%s5 + $0x60] sm:$0xff]
  %v443 = vld [vmem:[%s5 + $0x68] sm:$0xff]
  %v444 = vld [vmem:[%s5 + $0x70] sm:$0xff]
  %v445 = vld [vmem:[%s5 + $0x78] sm:$0xff]
  %v446 = vld [vmem:[%s6] sm:$0x1]
  %v448 = vlaneseq
  %v449 = vshrl.u32 %v448, 7
  %v450 = vsub.s32 0, %v449
  %v451 = vrot.slane %v446, %v450
  %453 = vmatprep.subr.mxu0 0.0
  %454 = vmatpush1.msra.mxu0 %v430
  %455 = vmatprep.subr.mxu0 0.0
  %456 = vmatpush1.msra.mxu0 %v431
  %457 = vmatprep.subr.mxu0 0.0
  %458 = vmatpush1.msra.mxu0 %v432
  %459 = vmatprep.subr.mxu0 0.0
  %460 = vmatpush1.msra.mxu0 %v433
  %461 = vmatprep.subr.mxu0 0.0
  %462 = vmatpush1.msra.mxu0 %v434
  %463 = vmatprep.subr.mxu0 0.0
  %464 = vmatpush1.msra.mxu0 %v435
  %465 = vmatprep.subr.mxu0 0.0
  %466 = vmatpush1.msra.mxu0 %v436
  %467 = vmatprep.subr.mxu0 0.0
  %468 = vmatpush1.msra.mxu0 %v437
  %469 = vmatprep.subr.mxu0 0.0
  %470 = vmatpush1.msra.mxu0 %v438
  %471 = vmatprep.subr.mxu0 0.0
  %472 = vmatpush1.msra.mxu0 %v439
  %473 = vmatprep.subr.mxu0 0.0
  %474 = vmatpush1.msra.mxu0 %v440
  %475 = vmatprep.subr.mxu0 0.0
  %476 = vmatpush1.msra.mxu0 %v441
  %477 = vmatprep.subr.mxu0 0.0
  %478 = vmatpush1.msra.mxu0 %v442
  %479 = vmatprep.subr.mxu0 0.0
  %480 = vmatpush1.msra.mxu0 %v443
  %481 = vmatprep.subr.mxu0 0.0
  %482 = vmatpush1.msra.mxu0 %v444
  %483 = vmatprep.subr.mxu0 0.0
  %484 = vmatpush1.msra.mxu0 %v445
  %485 = vmatprep.subr.mxu0 0.0
  %486 = vmatpush1.msra.mxu0 0.0
  %487 = vmatprep.subr.mxu0 0.0
  %488 = vmatpush1.msra.mxu0 0.0
  %489 = vmatprep.subr.mxu0 0.0
  %490 = vmatpush1.msra.mxu0 0.0
  %491 = vmatprep.subr.mxu0 0.0
  %492 = vmatpush1.msra.mxu0 0.0
  %493 = vmatprep.subr.mxu0 0.0
  %494 = vmatpush1.msra.mxu0 0.0
  %495 = vmatprep.subr.mxu0 0.0
  %496 = vmatpush1.msra.mxu0 0.0
  %497 = vmatprep.subr.mxu0 0.0
  %498 = vmatpush1.msra.mxu0 0.0
  %499 = vmatprep.subr.mxu0 0.0
  %500 = vmatpush1.msra.mxu0 0.0
  %501 = vmatprep.subr.mxu0 0.0
  %502 = vmatpush1.msra.mxu0 0.0
  %503 = vmatprep.subr.mxu0 0.0
  %504 = vmatpush1.msra.mxu0 0.0
  %505 = vmatprep.subr.mxu0 0.0
  %506 = vmatpush1.msra.mxu0 0.0
  %507 = vmatprep.subr.mxu0 0.0
  %508 = vmatpush1.msra.mxu0 0.0
  %509 = vmatprep.subr.mxu0 0.0
  %510 = vmatpush1.msra.mxu0 0.0
  %511 = vmatprep.subr.mxu0 0.0
  %512 = vmatpush1.msra.mxu0 0.0
  %513 = vmatprep.subr.mxu0 0.0
  %514 = vmatpush1.msra.mxu0 0.0
  %515 = vmatprep.subr.mxu0 0.0
  %516 = vmatpush1.msra.mxu0 0.0
  %517 = vmatprep.mubr.f32.mxu0 0.0
  %518 = vmatmul.mubr.f32.gmra.mrb[0].mxu0 %v366
  %v519 = vpop.f32.mrb[0].mxu0
  %v520 = vadd.f32 %v451, %v519
  %v521 = vpop.f32.mrb[0].mxu0
  %522 = vmatprep.mubr.f32.mxu0 0.0
  %523 = vmatmul.mubr.f32.gmra.mrb[0].mxu0 %v367
  %v524 = vpop.f32.mrb[0].mxu0
  %v525 = vadd.f32 %v451, %v524
  %v526 = vpop.f32.mrb[0].mxu0
  %527 = vmatprep.mubr.f32.mxu0 0.0
  %528 = vmatmul.mubr.f32.gmra.mrb[0].mxu0 %v368
  %v529 = vpop.f32.mrb[0].mxu0
  %v530 = vadd.f32 %v451, %v529
  %v531 = vpop.f32.mrb[0].mxu0
  %532 = vmatprep.mubr.f32.mxu0 0.0
  %533 = vmatmul.mubr.f32.gmra.mrb[0].mxu0 %v369
  %v534 = vpop.f32.mrb[0].mxu0
  %v535 = vadd.f32 %v451, %v534
  %v536 = vpop.f32.mrb[0].mxu0
  %537 = vmatprep.mubr.f32.mxu0 0.0
  %538 = vmatmul.mubr.f32.gmra.mrb[0].mxu0 %v370
  %v539 = vpop.f32.mrb[0].mxu0
  %v540 = vadd.f32 %v451, %v539
  %v541 = vpop.f32.mrb[0].mxu0
  %542 = vmatprep.mubr.f32.mxu0 0.0
  %543 = vmatmul.mubr.f32.gmra.mrb[0].mxu0 %v371
  %v544 = vpop.f32.mrb[0].mxu0
  %v545 = vadd.f32 %v451, %v544
  %v546 = vpop.f32.mrb[0].mxu0
  %547 = vmatprep.mubr.f32.mxu0 0.0
  %548 = vmatmul.mubr.f32.gmra.mrb[0].mxu0 %v372
  %v549 = vpop.f32.mrb[0].mxu0
  %v550 = vadd.f32 %v451, %v549
  %v551 = vpop.f32.mrb[0].mxu0
  %552 = vmatprep.mubr.f32.mxu0 0.0
  %553 = vmatmul.mubr.f32.gmra.mrb[0].mxu0 %v373
  %v554 = vpop.f32.mrb[0].mxu0
  %v555 = vadd.f32 %v451, %v554
  %v556 = vpop.f32.mrb[0].mxu0
  %557 = vmatprep.mubr.f32.mxu0 0.0
  %558 = vmatmul.mubr.f32.gmra.mrb[0].mxu0 %v374
  %v559 = vpop.f32.mrb[0].mxu0
  %v560 = vadd.f32 %v451, %v559
  %v561 = vpop.f32.mrb[0].mxu0
  %562 = vmatprep.mubr.f32.mxu0 0.0
  %563 = vmatmul.mubr.f32.gmra.mrb[0].mxu0 %v375
  %v564 = vpop.f32.mrb[0].mxu0
  %v565 = vadd.f32 %v451, %v564
  %v566 = vpop.f32.mrb[0].mxu0
  %567 = vmatprep.mubr.f32.mxu0 0.0
  %568 = vmatmul.mubr.f32.gmra.mrb[0].mxu0 %v376
  %v569 = vpop.f32.mrb[0].mxu0
  %v570 = vadd.f32 %v451, %v569
  %v571 = vpop.f32.mrb[0].mxu0
  %572 = vmatprep.mubr.f32.mxu0 0.0
  %573 = vmatmul.mubr.f32.gmra.mrb[0].mxu0 %v377
  %v574 = vpop.f32.mrb[0].mxu0
  %v575 = vadd.f32 %v451, %v574
  %v576 = vpop.f32.mrb[0].mxu0
  %577 = vmatprep.mubr.f32.mxu0 0.0
  %578 = vmatmul.mubr.f32.gmra.mrb[0].mxu0 %v378
  %v579 = vpop.f32.mrb[0].mxu0
  %v580 = vadd.f32 %v451, %v579
  %v581 = vpop.f32.mrb[0].mxu0
  %582 = vmatprep.mubr.f32.mxu0 0.0
  %583 = vmatmul.mubr.f32.gmra.mrb[0].mxu0 %v379
  %v584 = vpop.f32.mrb[0].mxu0
  %v585 = vadd.f32 %v451, %v584
  %v586 = vpop.f32.mrb[0].mxu0
  %587 = vmatprep.mubr.f32.mxu0 0.0
  %588 = vmatmul.mubr.f32.gmra.mrb[0].mxu0 %v380
  %v589 = vpop.f32.mrb[0].mxu0
  %v590 = vadd.f32 %v451, %v589
  %v591 = vpop.f32.mrb[0].mxu0
  %592 = vmatprep.mubr.f32.mxu0 0.0
  %593 = vmatmul.mubr.f32.gmra.mrb[0].mxu0 %v381
  %v594 = vpop.f32.mrb[0].mxu0
  %v595 = vadd.f32 %v451, %v594
  %v596 = vpop.f32.mrb[0].mxu0
  %597 = vmatprep.mubr.f32.mxu0 0.0
  %598 = vmatmul.mubr.f32.gmra.mrb[0].mxu0 %v382
  %v599 = vpop.f32.mrb[0].mxu0
  %v600 = vadd.f32 %v451, %v599
  %v601 = vpop.f32.mrb[0].mxu0
  %602 = vmatprep.mubr.f32.mxu0 0.0
  %603 = vmatmul.mubr.f32.gmra.mrb[0].mxu0 %v383
  %v604 = vpop.f32.mrb[0].mxu0
  %v605 = vadd.f32 %v451, %v604
  %v606 = vpop.f32.mrb[0].mxu0
  %607 = vmatprep.mubr.f32.mxu0 0.0
  %608 = vmatmul.mubr.f32.gmra.mrb[0].mxu0 %v384
  %v609 = vpop.f32.mrb[0].mxu0
  %v610 = vadd.f32 %v451, %v609
  %v611 = vpop.f32.mrb[0].mxu0
  %612 = vmatprep.mubr.f32.mxu0 0.0
  %613 = vmatmul.mubr.f32.gmra.mrb[0].mxu0 %v385
  %v614 = vpop.f32.mrb[0].mxu0
  %v615 = vadd.f32 %v451, %v614
  %v616 = vpop.f32.mrb[0].mxu0
  %617 = vmatprep.mubr.f32.mxu0 0.0
  %618 = vmatmul.mubr.f32.gmra.mrb[0].mxu0 %v386
  %v619 = vpop.f32.mrb[0].mxu0
  %v620 = vadd.f32 %v451, %v619
  %v621 = vpop.f32.mrb[0].mxu0
  %622 = vmatprep.mubr.f32.mxu0 0.0
  %623 = vmatmul.mubr.f32.gmra.mrb[0].mxu0 %v387
  %v624 = vpop.f32.mrb[0].mxu0
  %v625 = vadd.f32 %v451, %v624
  %v626 = vpop.f32.mrb[0].mxu0
  %627 = vmatprep.mubr.f32.mxu0 0.0
  %628 = vmatmul.mubr.f32.gmra.mrb[0].mxu0 %v388
  %v629 = vpop.f32.mrb[0].mxu0
  %v630 = vadd.f32 %v451, %v629
  %v631 = vpop.f32.mrb[0].mxu0
  %632 = vmatprep.mubr.f32.mxu0 0.0
  %633 = vmatmul.mubr.f32.gmra.mrb[0].mxu0 %v389
  %v634 = vpop.f32.mrb[0].mxu0
  %v635 = vadd.f32 %v451, %v634
  %v636 = vpop.f32.mrb[0].mxu0
  %637 = vmatprep.mubr.f32.mxu0 0.0
  %638 = vmatmul.mubr.f32.gmra.mrb[0].mxu0 %v390
  %v639 = vpop.f32.mrb[0].mxu0
  %v640 = vadd.f32 %v451, %v639
  %v641 = vpop.f32.mrb[0].mxu0
  %642 = vmatprep.mubr.f32.mxu0 0.0
  %643 = vmatmul.mubr.f32.gmra.mrb[0].mxu0 %v391
  %v644 = vpop.f32.mrb[0].mxu0
  %v645 = vadd.f32 %v451, %v644
  %v646 = vpop.f32.mrb[0].mxu0
  %647 = vmatprep.mubr.f32.mxu0 0.0
  %648 = vmatmul.mubr.f32.gmra.mrb[0].mxu0 %v392
  %v649 = vpop.f32.mrb[0].mxu0
  %v650 = vadd.f32 %v451, %v649
  %v651 = vpop.f32.mrb[0].mxu0
  %652 = vmatprep.mubr.f32.mxu0 0.0
  %653 = vmatmul.mubr.f32.gmra.mrb[0].mxu0 %v393
  %v654 = vpop.f32.mrb[0].mxu0
  %v655 = vadd.f32 %v451, %v654
  %v656 = vpop.f32.mrb[0].mxu0
  %657 = vmatprep.mubr.f32.mxu0 0.0
  %658 = vmatmul.mubr.f32.gmra.mrb[0].mxu0 %v394
  %v659 = vpop.f32.mrb[0].mxu0
  %v660 = vadd.f32 %v451, %v659
  %v661 = vpop.f32.mrb[0].mxu0
  %662 = vmatprep.mubr.f32.mxu0 0.0
  %663 = vmatmul.mubr.f32.gmra.mrb[0].mxu0 %v395
  %v664 = vpop.f32.mrb[0].mxu0
  %v665 = vadd.f32 %v451, %v664
  %v666 = vpop.f32.mrb[0].mxu0
  %667 = vmatprep.mubr.f32.mxu0 0.0
  %668 = vmatmul.mubr.f32.gmra.mrb[0].mxu0 %v396
  %v669 = vpop.f32.mrb[0].mxu0
  %v670 = vadd.f32 %v451, %v669
  %v671 = vpop.f32.mrb[0].mxu0
  %672 = vmatprep.mubr.f32.mxu0 0.0
  %673 = vmatmul.mubr.f32.gmra.mrb[0].mxu0 %v397
  %v674 = vpop.f32.mrb[0].mxu0
  %v675 = vadd.f32 %v451, %v674
  %v676 = vpop.f32.mrb[0].mxu0
  %677 = vmatprep.mubr.f32.mxu0 0.0
  %678 = vmatmul.mubr.f32.gmra.mrb[0].mxu0 %v398
  %v679 = vpop.f32.mrb[0].mxu0
  %v680 = vadd.f32 %v451, %v679
  %v681 = vpop.f32.mrb[0].mxu0
  %682 = vmatprep.mubr.f32.mxu0 0.0
  %683 = vmatmul.mubr.f32.gmra.mrb[0].mxu0 %v399
  %v684 = vpop.f32.mrb[0].mxu0
  %v685 = vadd.f32 %v451, %v684
  %v686 = vpop.f32.mrb[0].mxu0
  %687 = vmatprep.mubr.f32.mxu0 0.0
  %688 = vmatmul.mubr.f32.gmra.mrb[0].mxu0 %v400
  %v689 = vpop.f32.mrb[0].mxu0
  %v690 = vadd.f32 %v451, %v689
  %v691 = vpop.f32.mrb[0].mxu0
  %692 = vmatprep.mubr.f32.mxu0 0.0
  %693 = vmatmul.mubr.f32.gmra.mrb[0].mxu0 %v401
  %v694 = vpop.f32.mrb[0].mxu0
  %v695 = vadd.f32 %v451, %v694
  %v696 = vpop.f32.mrb[0].mxu0
  %697 = vmatprep.mubr.f32.mxu0 0.0
  %698 = vmatmul.mubr.f32.gmra.mrb[0].mxu0 %v402
  %v699 = vpop.f32.mrb[0].mxu0
  %v700 = vadd.f32 %v451, %v699
  %v701 = vpop.f32.mrb[0].mxu0
  %702 = vmatprep.mubr.f32.mxu0 0.0
  %703 = vmatmul.mubr.f32.gmra.mrb[0].mxu0 %v403
  %v704 = vpop.f32.mrb[0].mxu0
  %v705 = vadd.f32 %v451, %v704
  %v706 = vpop.f32.mrb[0].mxu0
  %707 = vmatprep.mubr.f32.mxu0 0.0
  %708 = vmatmul.mubr.f32.gmra.mrb[0].mxu0 %v404
  %v709 = vpop.f32.mrb[0].mxu0
  %v710 = vadd.f32 %v451, %v709
  %v711 = vpop.f32.mrb[0].mxu0
  %712 = vmatprep.mubr.f32.mxu0 0.0
  %713 = vmatmul.mubr.f32.gmra.mrb[0].mxu0 %v405
  %v714 = vpop.f32.mrb[0].mxu0
  %v715 = vadd.f32 %v451, %v714
  %v716 = vpop.f32.mrb[0].mxu0
  %717 = vmatprep.mubr.f32.mxu0 0.0
  %718 = vmatmul.mubr.f32.gmra.mrb[0].mxu0 %v406
  %v719 = vpop.f32.mrb[0].mxu0
  %v720 = vadd.f32 %v451, %v719
  %v721 = vpop.f32.mrb[0].mxu0
  %722 = vmatprep.mubr.f32.mxu0 0.0
  %723 = vmatmul.mubr.f32.gmra.mrb[0].mxu0 %v407
  %v724 = vpop.f32.mrb[0].mxu0
  %v725 = vadd.f32 %v451, %v724
  %v726 = vpop.f32.mrb[0].mxu0
  %727 = vmatprep.mubr.f32.mxu0 0.0
  %728 = vmatmul.mubr.f32.gmra.mrb[0].mxu0 %v408
  %v729 = vpop.f32.mrb[0].mxu0
  %v730 = vadd.f32 %v451, %v729
  %v731 = vpop.f32.mrb[0].mxu0
  %732 = vmatprep.mubr.f32.mxu0 0.0
  %733 = vmatmul.mubr.f32.gmra.mrb[0].mxu0 %v409
  %v734 = vpop.f32.mrb[0].mxu0
  %v735 = vadd.f32 %v451, %v734
  %v736 = vpop.f32.mrb[0].mxu0
  %737 = vmatprep.mubr.f32.mxu0 0.0
  %738 = vmatmul.mubr.f32.gmra.mrb[0].mxu0 %v410
  %v739 = vpop.f32.mrb[0].mxu0
  %v740 = vadd.f32 %v451, %v739
  %v741 = vpop.f32.mrb[0].mxu0
  %742 = vmatprep.mubr.f32.mxu0 0.0
  %743 = vmatmul.mubr.f32.gmra.mrb[0].mxu0 %v411
  %v744 = vpop.f32.mrb[0].mxu0
  %v745 = vadd.f32 %v451, %v744
  %v746 = vpop.f32.mrb[0].mxu0
  %747 = vmatprep.mubr.f32.mxu0 0.0
  %748 = vmatmul.mubr.f32.gmra.mrb[0].mxu0 %v412
  %v749 = vpop.f32.mrb[0].mxu0
  %v750 = vadd.f32 %v451, %v749
  %v751 = vpop.f32.mrb[0].mxu0
  %752 = vmatprep.mubr.f32.mxu0 0.0
  %753 = vmatmul.mubr.f32.gmra.mrb[0].mxu0 %v413
  %v754 = vpop.f32.mrb[0].mxu0
  %v755 = vadd.f32 %v451, %v754
  %v756 = vpop.f32.mrb[0].mxu0
  %757 = vmatprep.mubr.f32.mxu0 0.0
  %758 = vmatmul.mubr.f32.gmra.mrb[0].mxu0 %v414
  %v759 = vpop.f32.mrb[0].mxu0
  %v760 = vadd.f32 %v451, %v759
  %v761 = vpop.f32.mrb[0].mxu0
  %762 = vmatprep.mubr.f32.mxu0 0.0
  %763 = vmatmul.mubr.f32.gmra.mrb[0].mxu0 %v415
  %v764 = vpop.f32.mrb[0].mxu0
  %v765 = vadd.f32 %v451, %v764
  %v766 = vpop.f32.mrb[0].mxu0
  %767 = vmatprep.mubr.f32.mxu0 0.0
  %768 = vmatmul.mubr.f32.gmra.mrb[0].mxu0 %v416
  %v769 = vpop.f32.mrb[0].mxu0
  %v770 = vadd.f32 %v451, %v769
  %v771 = vpop.f32.mrb[0].mxu0
  %772 = vmatprep.mubr.f32.mxu0 0.0
  %773 = vmatmul.mubr.f32.gmra.mrb[0].mxu0 %v417
  %v774 = vpop.f32.mrb[0].mxu0
  %v775 = vadd.f32 %v451, %v774
  %v776 = vpop.f32.mrb[0].mxu0
  %777 = vmatprep.mubr.f32.mxu0 0.0
  %778 = vmatmul.mubr.f32.gmra.mrb[0].mxu0 %v418
  %v779 = vpop.f32.mrb[0].mxu0
  %v780 = vadd.f32 %v451, %v779
  %v781 = vpop.f32.mrb[0].mxu0
  %782 = vmatprep.mubr.f32.mxu0 0.0
  %783 = vmatmul.mubr.f32.gmra.mrb[0].mxu0 %v419
  %v784 = vpop.f32.mrb[0].mxu0
  %v785 = vadd.f32 %v451, %v784
  %v786 = vpop.f32.mrb[0].mxu0
  %787 = vmatprep.mubr.f32.mxu0 0.0
  %788 = vmatmul.mubr.f32.gmra.mrb[0].mxu0 %v420
  %v789 = vpop.f32.mrb[0].mxu0
  %v790 = vadd.f32 %v451, %v789
  %v791 = vpop.f32.mrb[0].mxu0
  %792 = vmatprep.mubr.f32.mxu0 0.0
  %793 = vmatmul.mubr.f32.gmra.mrb[0].mxu0 %v421
  %v794 = vpop.f32.mrb[0].mxu0
  %v795 = vadd.f32 %v451, %v794
  %v796 = vpop.f32.mrb[0].mxu0
  %797 = vmatprep.mubr.f32.mxu0 0.0
  %798 = vmatmul.mubr.f32.gmra.mrb[0].mxu0 %v422
  %v799 = vpop.f32.mrb[0].mxu0
  %v800 = vadd.f32 %v451, %v799
  %v801 = vpop.f32.mrb[0].mxu0
  %802 = vmatprep.mubr.f32.mxu0 0.0
  %803 = vmatmul.mubr.f32.gmra.mrb[0].mxu0 %v423
  %v804 = vpop.f32.mrb[0].mxu0
  %v805 = vadd.f32 %v451, %v804
  %v806 = vpop.f32.mrb[0].mxu0
  %807 = vmatprep.mubr.f32.mxu0 0.0
  %808 = vmatmul.mubr.f32.gmra.mrb[0].mxu0 %v424
  %v809 = vpop.f32.mrb[0].mxu0
  %v810 = vadd.f32 %v451, %v809
  %v811 = vpop.f32.mrb[0].mxu0
  %812 = vmatprep.mubr.f32.mxu0 0.0
  %813 = vmatmul.mubr.f32.gmra.mrb[0].mxu0 %v425
  %v814 = vpop.f32.mrb[0].mxu0
  %v815 = vadd.f32 %v451, %v814
  %v816 = vpop.f32.mrb[0].mxu0
  %817 = vmatprep.mubr.f32.mxu0 0.0
  %818 = vmatmul.mubr.f32.gmra.mrb[0].mxu0 %v426
  %v819 = vpop.f32.mrb[0].mxu0
  %v820 = vadd.f32 %v451, %v819
  %v821 = vpop.f32.mrb[0].mxu0
  %822 = vmatprep.mubr.f32.mxu0 0.0
  %823 = vmatmul.mubr.f32.gmra.mrb[0].mxu0 %v427
  %v824 = vpop.f32.mrb[0].mxu0
  %v825 = vadd.f32 %v451, %v824
  %v826 = vpop.f32.mrb[0].mxu0
  %827 = vmatprep.mubr.f32.mxu0 0.0
  %828 = vmatmul.mubr.f32.gmra.mrb[0].mxu0 %v428
  %v829 = vpop.f32.mrb[0].mxu0
  %v830 = vadd.f32 %v451, %v829
  %v831 = vpop.f32.mrb[0].mxu0
  %832 = vmatprep.mubr.f32.mxu0 0.0
  %833 = vmatmul.mubr.f32.gmra.mrb[0].mxu0 %v429
  %v834 = vpop.f32.mrb[0].mxu0
  %v835 = vadd.f32 %v451, %v834
  %v836 = vpop.f32.mrb[0].mxu0
  %837 = vdwg.mxu0
  %838 = vst [vmem:[%s7] sm:$0xff] %v520
  %839 = vst [vmem:[%s7 + $0x8] sm:$0xff] %v525
  %840 = vst [vmem:[%s7 + $0x10] sm:$0xff] %v530
  %841 = vst [vmem:[%s7 + $0x18] sm:$0xff] %v535
  %842 = vst [vmem:[%s7 + $0x20] sm:$0xff] %v540
  %843 = vst [vmem:[%s7 + $0x28] sm:$0xff] %v545
  %844 = vst [vmem:[%s7 + $0x30] sm:$0xff] %v550
  %845 = vst [vmem:[%s7 + $0x38] sm:$0xff] %v555
  %846 = vst [vmem:[%s7 + $0x40] sm:$0xff] %v560
  %847 = vst [vmem:[%s7 + $0x48] sm:$0xff] %v565
  %848 = vst [vmem:[%s7 + $0x50] sm:$0xff] %v570
  %849 = vst [vmem:[%s7 + $0x58] sm:$0xff] %v575
  %850 = vst [vmem:[%s7 + $0x60] sm:$0xff] %v580
  %851 = vst [vmem:[%s7 + $0x68] sm:$0xff] %v585
  %852 = vst [vmem:[%s7 + $0x70] sm:$0xff] %v590
  %853 = vst [vmem:[%s7 + $0x78] sm:$0xff] %v595
  %854 = vst [vmem:[%s7 + $0x80] sm:$0xff] %v600
  %855 = vst [vmem:[%s7 + $0x88] sm:$0xff] %v605
  %856 = vst [vmem:[%s7 + $0x90] sm:$0xff] %v610
  %857 = vst [vmem:[%s7 + $0x98] sm:$0xff] %v615
  %858 = vst [vmem:[%s7 + $0xa0] sm:$0xff] %v620
  %859 = vst [vmem:[%s7 + $0xa8] sm:$0xff] %v625
  %860 = vst [vmem:[%s7 + $0xb0] sm:$0xff] %v630
  %861 = vst [vmem:[%s7 + $0xb8] sm:$0xff] %v635
  %862 = vst [vmem:[%s7 + $0xc0] sm:$0xff] %v640
  %863 = vst [vmem:[%s7 + $0xc8] sm:$0xff] %v645
  %864 = vst [vmem:[%s7 + $0xd0] sm:$0xff] %v650
  %865 = vst [vmem:[%s7 + $0xd8] sm:$0xff] %v655
  %866 = vst [vmem:[%s7 + $0xe0] sm:$0xff] %v660
  %867 = vst [vmem:[%s7 + $0xe8] sm:$0xff] %v665
  %868 = vst [vmem:[%s7 + $0xf0] sm:$0xff] %v670
  %869 = vst [vmem:[%s7 + $0xf8] sm:$0xff] %v675
  %870 = vst [vmem:[%s7 + $0x100] sm:$0xff] %v680
  %871 = vst [vmem:[%s7 + $0x108] sm:$0xff] %v685
  %872 = vst [vmem:[%s7 + $0x110] sm:$0xff] %v690
  %873 = vst [vmem:[%s7 + $0x118] sm:$0xff] %v695
  %874 = vst [vmem:[%s7 + $0x120] sm:$0xff] %v700
  %875 = vst [vmem:[%s7 + $0x128] sm:$0xff] %v705
  %876 = vst [vmem:[%s7 + $0x130] sm:$0xff] %v710
  %877 = vst [vmem:[%s7 + $0x138] sm:$0xff] %v715
  %878 = vst [vmem:[%s7 + $0x140] sm:$0xff] %v720
  %879 = vst [vmem:[%s7 + $0x148] sm:$0xff] %v725
  %880 = vst [vmem:[%s7 + $0x150] sm:$0xff] %v730
  %881 = vst [vmem:[%s7 + $0x158] sm:$0xff] %v735
  %882 = vst [vmem:[%s7 + $0x160] sm:$0xff] %v740
  %883 = vst [vmem:[%s7 + $0x168] sm:$0xff] %v745
  %884 = vst [vmem:[%s7 + $0x170] sm:$0xff] %v750
  %885 = vst [vmem:[%s7 + $0x178] sm:$0xff] %v755
  %886 = vst [vmem:[%s7 + $0x180] sm:$0xff] %v760
  %887 = vst [vmem:[%s7 + $0x188] sm:$0xff] %v765
  %888 = vst [vmem:[%s7 + $0x190] sm:$0xff] %v770
  %889 = vst [vmem:[%s7 + $0x198] sm:$0xff] %v775
  %890 = vst [vmem:[%s7 + $0x1a0] sm:$0xff] %v780
  %891 = vst [vmem:[%s7 + $0x1a8] sm:$0xff] %v785
  %892 = vst [vmem:[%s7 + $0x1b0] sm:$0xff] %v790
  %893 = vst [vmem:[%s7 + $0x1b8] sm:$0xff] %v795
  %894 = vst [vmem:[%s7 + $0x1c0] sm:$0xff] %v800
  %895 = vst [vmem:[%s7 + $0x1c8] sm:$0xff] %v805
  %896 = vst [vmem:[%s7 + $0x1d0] sm:$0xff] %v810
  %897 = vst [vmem:[%s7 + $0x1d8] sm:$0xff] %v815
  %898 = vst [vmem:[%s7 + $0x1e0] sm:$0xff] %v820
  %899 = vst [vmem:[%s7 + $0x1e8] sm:$0xff] %v825
  %900 = vst [vmem:[%s7 + $0x1f0] sm:$0xff] %v830
  %901 = vst [vmem:[%s7 + $0x1f8] sm:$0xff] %v835
  %s902 = smul.u32 0, 512
  %s903 = sld [smem:[#allocation2]]
  %v904 = vlaneseq
  %v905 = vshrl.u32 %v904, 7
  %v906 = vadd.s32 %v905, 8
  %v907 = vadd.s32 %v905, 16
  %v908 = vadd.s32 %v905, 24
  %v909 = vadd.s32 %v905, 32
  %v910 = vadd.s32 %v905, 40
  %v911 = vadd.s32 %v905, 48
  %v912 = vadd.s32 %v905, 56
  %v913 = vadd.s32 %v905, 64
  %v914 = vadd.s32 %v905, 72
  %v915 = vadd.s32 %v905, 80
  %v916 = vadd.s32 %v905, 88
  %v917 = vadd.s32 %v905, 96
  %v918 = vadd.s32 %v905, 104
  %v919 = vadd.s32 %v905, 112
  %v920 = vadd.s32 %v905, 120
  %v921 = vadd.s32 %v905, 128
  %v922 = vadd.s32 %v905, 136
  %v923 = vadd.s32 %v905, 144
  %v924 = vadd.s32 %v905, 152
  %v925 = vadd.s32 %v905, 160
  %v926 = vadd.s32 %v905, 168
  %v927 = vadd.s32 %v905, 176
  %v928 = vadd.s32 %v905, 184
  %v929 = vadd.s32 %v905, 192
  %v930 = vadd.s32 %v905, 200
  %v931 = vadd.s32 %v905, 208
  %v932 = vadd.s32 %v905, 216
  %v933 = vadd.s32 %v905, 224
  %v934 = vadd.s32 %v905, 232
  %v935 = vadd.s32 %v905, 240
  %v936 = vadd.s32 %v905, 248
  %v937 = vadd.s32 %v905, 256
  %v938 = vadd.s32 %v905, 264
  %v939 = vadd.s32 %v905, 272
  %v940 = vadd.s32 %v905, 280
  %v941 = vadd.s32 %v905, 288
  %v942 = vadd.s32 %v905, 296
  %v943 = vadd.s32 %v905, 304
  %v944 = vadd.s32 %v905, 312
  %v945 = vadd.s32 %v905, 320
  %v946 = vadd.s32 %v905, 328
  %v947 = vadd.s32 %v905, 336
  %v948 = vadd.s32 %v905, 344
  %v949 = vadd.s32 %v905, 352
  %v950 = vadd.s32 %v905, 360
  %v951 = vadd.s32 %v905, 368
  %v952 = vadd.s32 %v905, 376
  %v953 = vadd.s32 %v905, 384
  %v954 = vadd.s32 %v905, 392
  %v955 = vadd.s32 %v905, 400
  %v956 = vadd.s32 %v905, 408
  %v957 = vadd.s32 %v905, 416
  %v958 = vadd.s32 %v905, 424
  %v959 = vadd.s32 %v905, 432
  %v960 = vadd.s32 %v905, 440
  %v961 = vadd.s32 %v905, 448
  %v962 = vadd.s32 %v905, 456
  %v963 = vadd.s32 %v905, 464
  %v964 = vadd.s32 %v905, 472
  %v965 = vadd.s32 %v905, 480
  %v966 = vadd.s32 %v905, 488
  %v967 = vadd.s32 %v905, 496
  %v968 = vadd.s32 %v905, 504
  %v969 = vstv %s902
  %v970 = vadd.s32 %v969, %v905
  %v971 = vadd.s32 %v969, %v906
  %v972 = vadd.s32 %v969, %v907
  %v973 = vadd.s32 %v969, %v908
  %v974 = vadd.s32 %v969, %v909
  %v975 = vadd.s32 %v969, %v910
  %v976 = vadd.s32 %v969, %v911
  %v977 = vadd.s32 %v969, %v912
  %v978 = vadd.s32 %v969, %v913
  %v979 = vadd.s32 %v969, %v914
  %v980 = vadd.s32 %v969, %v915
  %v981 = vadd.s32 %v969, %v916
  %v982 = vadd.s32 %v969, %v917
  %v983 = vadd.s32 %v969, %v918
  %v984 = vadd.s32 %v969, %v919
  %v985 = vadd.s32 %v969, %v920
  %v986 = vadd.s32 %v969, %v921
  %v987 = vadd.s32 %v969, %v922
  %v988 = vadd.s32 %v969, %v923
  %v989 = vadd.s32 %v969, %v924
  %v990 = vadd.s32 %v969, %v925
  %v991 = vadd.s32 %v969, %v926
  %v992 = vadd.s32 %v969, %v927
  %v993 = vadd.s32 %v969, %v928
  %v994 = vadd.s32 %v969, %v929
  %v995 = vadd.s32 %v969, %v930
  %v996 = vadd.s32 %v969, %v931
  %v997 = vadd.s32 %v969, %v932
  %v998 = vadd.s32 %v969, %v933
  %v999 = vadd.s32 %v969, %v934
  %v1000 = vadd.s32 %v969, %v935
  %v1001 = vadd.s32 %v969, %v936
  %v1002 = vadd.s32 %v969, %v937
  %v1003 = vadd.s32 %v969, %v938
  %v1004 = vadd.s32 %v969, %v939
  %v1005 = vadd.s32 %v969, %v940
  %v1006 = vadd.s32 %v969, %v941
  %v1007 = vadd.s32 %v969, %v942
  %v1008 = vadd.s32 %v969, %v943
  %v1009 = vadd.s32 %v969, %v944
  %v1010 = vadd.s32 %v969, %v945
  %v1011 = vadd.s32 %v969, %v946
  %v1012 = vadd.s32 %v969, %v947
  %v1013 = vadd.s32 %v969, %v948
  %v1014 = vadd.s32 %v969, %v949
  %v1015 = vadd.s32 %v969, %v950
  %v1016 = vadd.s32 %v969, %v951
  %v1017 = vadd.s32 %v969, %v952
  %v1018 = vadd.s32 %v969, %v953
  %v1019 = vadd.s32 %v969, %v954
  %v1020 = vadd.s32 %v969, %v955
  %v1021 = vadd.s32 %v969, %v956
  %v1022 = vadd.s32 %v969, %v957
  %v1023 = vadd.s32 %v969, %v958
  %v1024 = vadd.s32 %v969, %v959
  %v1025 = vadd.s32 %v969, %v960
  %v1026 = vadd.s32 %v969, %v961
  %v1027 = vadd.s32 %v969, %v962
  %v1028 = vadd.s32 %v969, %v963
  %v1029 = vadd.s32 %v969, %v964
  %v1030 = vadd.s32 %v969, %v965
  %v1031 = vadd.s32 %v969, %v966
  %v1032 = vadd.s32 %v969, %v967
  %v1033 = vadd.s32 %v969, %v968
  %v1034 = vstv %s903
  %vm1035 = vcmp.lt.s32.totalorder %v970, %v1034
  %vm1036 = vcmp.lt.s32.totalorder %v971, %v1034
  %vm1037 = vcmp.lt.s32.totalorder %v972, %v1034
  %vm1038 = vcmp.lt.s32.totalorder %v973, %v1034
  %vm1039 = vcmp.lt.s32.totalorder %v974, %v1034
  %vm1040 = vcmp.lt.s32.totalorder %v975, %v1034
  %vm1041 = vcmp.lt.s32.totalorder %v976, %v1034
  %vm1042 = vcmp.lt.s32.totalorder %v977, %v1034
  %vm1043 = vcmp.lt.s32.totalorder %v978, %v1034
  %vm1044 = vcmp.lt.s32.totalorder %v979, %v1034
  %vm1045 = vcmp.lt.s32.totalorder %v980, %v1034
  %vm1046 = vcmp.lt.s32.totalorder %v981, %v1034
  %vm1047 = vcmp.lt.s32.totalorder %v982, %v1034
  %vm1048 = vcmp.lt.s32.totalorder %v983, %v1034
  %vm1049 = vcmp.lt.s32.totalorder %v984, %v1034
  %vm1050 = vcmp.lt.s32.totalorder %v985, %v1034
  %vm1051 = vcmp.lt.s32.totalorder %v986, %v1034
  %vm1052 = vcmp.lt.s32.totalorder %v987, %v1034
  %vm1053 = vcmp.lt.s32.totalorder %v988, %v1034
  %vm1054 = vcmp.lt.s32.totalorder %v989, %v1034
  %vm1055 = vcmp.lt.s32.totalorder %v990, %v1034
  %vm1056 = vcmp.lt.s32.totalorder %v991, %v1034
  %vm1057 = vcmp.lt.s32.totalorder %v992, %v1034
  %vm1058 = vcmp.lt.s32.totalorder %v993, %v1034
  %vm1059 = vcmp.lt.s32.totalorder %v994, %v1034
  %vm1060 = vcmp.lt.s32.totalorder %v995, %v1034
  %vm1061 = vcmp.lt.s32.totalorder %v996, %v1034
  %vm1062 = vcmp.lt.s32.totalorder %v997, %v1034
  %vm1063 = vcmp.lt.s32.totalorder %v998, %v1034
  %vm1064 = vcmp.lt.s32.totalorder %v999, %v1034
  %vm1065 = vcmp.lt.s32.totalorder %v1000, %v1034
  %vm1066 = vcmp.lt.s32.totalorder %v1001, %v1034
  %vm1067 = vcmp.lt.s32.totalorder %v1002, %v1034
  %vm1068 = vcmp.lt.s32.totalorder %v1003, %v1034
  %vm1069 = vcmp.lt.s32.totalorder %v1004, %v1034
  %vm1070 = vcmp.lt.s32.totalorder %v1005, %v1034
  %vm1071 = vcmp.lt.s32.totalorder %v1006, %v1034
  %vm1072 = vcmp.lt.s32.totalorder %v1007, %v1034
  %vm1073 = vcmp.lt.s32.totalorder %v1008, %v1034
  %vm1074 = vcmp.lt.s32.totalorder %v1009, %v1034
  %vm1075 = vcmp.lt.s32.totalorder %v1010, %v1034
  %vm1076 = vcmp.lt.s32.totalorder %v1011, %v1034
  %vm1077 = vcmp.lt.s32.totalorder %v1012, %v1034
  %vm1078 = vcmp.lt.s32.totalorder %v1013, %v1034
  %vm1079 = vcmp.lt.s32.totalorder %v1014, %v1034
  %vm1080 = vcmp.lt.s32.totalorder %v1015, %v1034
  %vm1081 = vcmp.lt.s32.totalorder %v1016, %v1034
  %vm1082 = vcmp.lt.s32.totalorder %v1017, %v1034
  %vm1083 = vcmp.lt.s32.totalorder %v1018, %v1034
  %vm1084 = vcmp.lt.s32.totalorder %v1019, %v1034
  %vm1085 = vcmp.lt.s32.totalorder %v1020, %v1034
  %vm1086 = vcmp.lt.s32.totalorder %v1021, %v1034
  %vm1087 = vcmp.lt.s32.totalorder %v1022, %v1034
  %vm1088 = vcmp.lt.s32.totalorder %v1023, %v1034
  %vm1089 = vcmp.lt.s32.totalorder %v1024, %v1034
  %vm1090 = vcmp.lt.s32.totalorder %v1025, %v1034
  %vm1091 = vcmp.lt.s32.totalorder %v1026, %v1034
  %vm1092 = vcmp.lt.s32.totalorder %v1027, %v1034
  %vm1093 = vcmp.lt.s32.totalorder %v1028, %v1034
  %vm1094 = vcmp.lt.s32.totalorder %v1029, %v1034
  %vm1095 = vcmp.lt.s32.totalorder %v1030, %v1034
  %vm1096 = vcmp.lt.s32.totalorder %v1031, %v1034
  %vm1097 = vcmp.lt.s32.totalorder %v1032, %v1034
  %vm1098 = vcmp.lt.s32.totalorder %v1033, %v1034
  %v1099 = vsel %vm1035, 1, 0
  %v1100 = vsel %vm1036, 1, 0
  %v1101 = vsel %vm1037, 1, 0
  %v1102 = vsel %vm1038, 1, 0
  %v1103 = vsel %vm1039, 1, 0
  %v1104 = vsel %vm1040, 1, 0
  %v1105 = vsel %vm1041, 1, 0
  %v1106 = vsel %vm1042, 1, 0
  %v1107 = vsel %vm1043, 1, 0
  %v1108 = vsel %vm1044, 1, 0
  %v1109 = vsel %vm1045, 1, 0
  %v1110 = vsel %vm1046, 1, 0
  %v1111 = vsel %vm1047, 1, 0
  %v1112 = vsel %vm1048, 1, 0
  %v1113 = vsel %vm1049, 1, 0
  %v1114 = vsel %vm1050, 1, 0
  %v1115 = vsel %vm1051, 1, 0
  %v1116 = vsel %vm1052, 1, 0
  %v1117 = vsel %vm1053, 1, 0
  %v1118 = vsel %vm1054, 1, 0
  %v1119 = vsel %vm1055, 1, 0
  %v1120 = vsel %vm1056, 1, 0
  %v1121 = vsel %vm1057, 1, 0
  %v1122 = vsel %vm1058, 1, 0
  %v1123 = vsel %vm1059, 1, 0
  %v1124 = vsel %vm1060, 1, 0
  %v1125 = vsel %vm1061, 1, 0
  %v1126 = vsel %vm1062, 1, 0
  %v1127 = vsel %vm1063, 1, 0
  %v1128 = vsel %vm1064, 1, 0
  %v1129 = vsel %vm1065, 1, 0
  %v1130 = vsel %vm1066, 1, 0
  %v1131 = vsel %vm1067, 1, 0
  %v1132 = vsel %vm1068, 1, 0
  %v1133 = vsel %vm1069, 1, 0
  %v1134 = vsel %vm1070, 1, 0
  %v1135 = vsel %vm1071, 1, 0
  %v1136 = vsel %vm1072, 1, 0
  %v1137 = vsel %vm1073, 1, 0
  %v1138 = vsel %vm1074, 1, 0
  %v1139 = vsel %vm1075, 1, 0
  %v1140 = vsel %vm1076, 1, 0
  %v1141 = vsel %vm1077, 1, 0
  %v1142 = vsel %vm1078, 1, 0
  %v1143 = vsel %vm1079, 1, 0
  %v1144 = vsel %vm1080, 1, 0
  %v1145 = vsel %vm1081, 1, 0
  %v1146 = vsel %vm1082, 1, 0
  %v1147 = vsel %vm1083, 1, 0
  %v1148 = vsel %vm1084, 1, 0
  %v1149 = vsel %vm1085, 1, 0
  %v1150 = vsel %vm1086, 1, 0
  %v1151 = vsel %vm1087, 1, 0
  %v1152 = vsel %vm1088, 1, 0
  %v1153 = vsel %vm1089, 1, 0
  %v1154 = vsel %vm1090, 1, 0
  %v1155 = vsel %vm1091, 1, 0
  %v1156 = vsel %vm1092, 1, 0
  %v1157 = vsel %vm1093, 1, 0
  %v1158 = vsel %vm1094, 1, 0
  %v1159 = vsel %vm1095, 1, 0
  %v1160 = vsel %vm1096, 1, 0
  %v1161 = vsel %vm1097, 1, 0
  %v1162 = vsel %vm1098, 1, 0
  %v1163 = vcvt.s32.f32 %v1099
  %v1164 = vcvt.s32.f32 %v1100
  %v1165 = vcvt.s32.f32 %v1101
  %v1166 = vcvt.s32.f32 %v1102
  %v1167 = vcvt.s32.f32 %v1103
  %v1168 = vcvt.s32.f32 %v1104
  %v1169 = vcvt.s32.f32 %v1105
  %v1170 = vcvt.s32.f32 %v1106
  %v1171 = vcvt.s32.f32 %v1107
  %v1172 = vcvt.s32.f32 %v1108
  %v1173 = vcvt.s32.f32 %v1109
  %v1174 = vcvt.s32.f32 %v1110
  %v1175 = vcvt.s32.f32 %v1111
  %v1176 = vcvt.s32.f32 %v1112
  %v1177 = vcvt.s32.f32 %v1113
  %v1178 = vcvt.s32.f32 %v1114
  %v1179 = vcvt.s32.f32 %v1115
  %v1180 = vcvt.s32.f32 %v1116
  %v1181 = vcvt.s32.f32 %v1117
  %v1182 = vcvt.s32.f32 %v1118
  %v1183 = vcvt.s32.f32 %v1119
  %v1184 = vcvt.s32.f32 %v1120
  %v1185 = vcvt.s32.f32 %v1121
  %v1186 = vcvt.s32.f32 %v1122
  %v1187 = vcvt.s32.f32 %v1123
  %v1188 = vcvt.s32.f32 %v1124
  %v1189 = vcvt.s32.f32 %v1125
  %v1190 = vcvt.s32.f32 %v1126
  %v1191 = vcvt.s32.f32 %v1127
  %v1192 = vcvt.s32.f32 %v1128
  %v1193 = vcvt.s32.f32 %v1129
  %v1194 = vcvt.s32.f32 %v1130
  %v1195 = vcvt.s32.f32 %v1131
  %v1196 = vcvt.s32.f32 %v1132
  %v1197 = vcvt.s32.f32 %v1133
  %v1198 = vcvt.s32.f32 %v1134
  %v1199 = vcvt.s32.f32 %v1135
  %v1200 = vcvt.s32.f32 %v1136
  %v1201 = vcvt.s32.f32 %v1137
  %v1202 = vcvt.s32.f32 %v1138
  %v1203 = vcvt.s32.f32 %v1139
  %v1204 = vcvt.s32.f32 %v1140
  %v1205 = vcvt.s32.f32 %v1141
  %v1206 = vcvt.s32.f32 %v1142
  %v1207 = vcvt.s32.f32 %v1143
  %v1208 = vcvt.s32.f32 %v1144
  %v1209 = vcvt.s32.f32 %v1145
  %v1210 = vcvt.s32.f32 %v1146
  %v1211 = vcvt.s32.f32 %v1147
  %v1212 = vcvt.s32.f32 %v1148
  %v1213 = vcvt.s32.f32 %v1149
  %v1214 = vcvt.s32.f32 %v1150
  %v1215 = vcvt.s32.f32 %v1151
  %v1216 = vcvt.s32.f32 %v1152
  %v1217 = vcvt.s32.f32 %v1153
  %v1218 = vcvt.s32.f32 %v1154
  %v1219 = vcvt.s32.f32 %v1155
  %v1220 = vcvt.s32.f32 %v1156
  %v1221 = vcvt.s32.f32 %v1157
  %v1222 = vcvt.s32.f32 %v1158
  %v1223 = vcvt.s32.f32 %v1159
  %v1224 = vcvt.s32.f32 %v1160
  %v1225 = vcvt.s32.f32 %v1161
  %v1226 = vcvt.s32.f32 %v1162
  %v1227 = vmul.f32 %v520, %v1163
  %v1228 = vmul.f32 %v525, %v1164
  %v1229 = vmul.f32 %v530, %v1165
  %v1230 = vmul.f32 %v535, %v1166
  %v1231 = vmul.f32 %v540, %v1167
  %v1232 = vmul.f32 %v545, %v1168
  %v1233 = vmul.f32 %v550, %v1169
  %v1234 = vmul.f32 %v555, %v1170
  %v1235 = vmul.f32 %v560, %v1171
  %v1236 = vmul.f32 %v565, %v1172
  %v1237 = vmul.f32 %v570, %v1173
  %v1238 = vmul.f32 %v575, %v1174
  %v1239 = vmul.f32 %v580, %v1175
  %v1240 = vmul.f32 %v585, %v1176
  %v1241 = vmul.f32 %v590, %v1177
  %v1242 = vmul.f32 %v595, %v1178
  %v1243 = vmul.f32 %v600, %v1179
  %v1244 = vmul.f32 %v605, %v1180
  %v1245 = vmul.f32 %v610, %v1181
  %v1246 = vmul.f32 %v615, %v1182
  %v1247 = vmul.f32 %v620, %v1183
  %v1248 = vmul.f32 %v625, %v1184
  %v1249 = vmul.f32 %v630, %v1185
  %v1250 = vmul.f32 %v635, %v1186
  %v1251 = vmul.f32 %v640, %v1187
  %v1252 = vmul.f32 %v645, %v1188
  %v1253 = vmul.f32 %v650, %v1189
  %v1254 = vmul.f32 %v655, %v1190
  %v1255 = vmul.f32 %v660, %v1191
  %v1256 = vmul.f32 %v665, %v1192
  %v1257 = vmul.f32 %v670, %v1193
  %v1258 = vmul.f32 %v675, %v1194
  %v1259 = vmul.f32 %v680, %v1195
  %v1260 = vmul.f32 %v685, %v1196
  %v1261 = vmul.f32 %v690, %v1197
  %v1262 = vmul.f32 %v695, %v1198
  %v1263 = vmul.f32 %v700, %v1199
  %v1264 = vmul.f32 %v705, %v1200
  %v1265 = vmul.f32 %v710, %v1201
  %v1266 = vmul.f32 %v715, %v1202
  %v1267 = vmul.f32 %v720, %v1203
  %v1268 = vmul.f32 %v725, %v1204
  %v1269 = vmul.f32 %v730, %v1205
  %v1270 = vmul.f32 %v735, %v1206
  %v1271 = vmul.f32 %v740, %v1207
  %v1272 = vmul.f32 %v745, %v1208
  %v1273 = vmul.f32 %v750, %v1209
  %v1274 = vmul.f32 %v755, %v1210
  %v1275 = vmul.f32 %v760, %v1211
  %v1276 = vmul.f32 %v765, %v1212
  %v1277 = vmul.f32 %v770, %v1213
  %v1278 = vmul.f32 %v775, %v1214
  %v1279 = vmul.f32 %v780, %v1215
  %v1280 = vmul.f32 %v785, %v1216
  %v1281 = vmul.f32 %v790, %v1217
  %v1282 = vmul.f32 %v795, %v1218
  %v1283 = vmul.f32 %v800, %v1219
  %v1284 = vmul.f32 %v805, %v1220
  %v1285 = vmul.f32 %v810, %v1221
  %v1286 = vmul.f32 %v815, %v1222
  %v1287 = vmul.f32 %v820, %v1223
  %v1288 = vmul.f32 %v825, %v1224
  %v1289 = vmul.f32 %v830, %v1225
  %v1290 = vmul.f32 %v835, %v1226
  %v1291 = vadd.f32 %v1227, %v1228
  %v1292 = vadd.f32 %v1291, %v1229
  %v1293 = vadd.f32 %v1292, %v1230
  %v1294 = vadd.f32 %v1293, %v1231
  %v1295 = vadd.f32 %v1294, %v1232
  %v1296 = vadd.f32 %v1295, %v1233
  %v1297 = vadd.f32 %v1296, %v1234
  %v1298 = vadd.f32 %v1297, %v1235
  %v1299 = vadd.f32 %v1298, %v1236
  %v1300 = vadd.f32 %v1299, %v1237
  %v1301 = vadd.f32 %v1300, %v1238
  %v1302 = vadd.f32 %v1301, %v1239
  %v1303 = vadd.f32 %v1302, %v1240
  %v1304 = vadd.f32 %v1303, %v1241
  %v1305 = vadd.f32 %v1304, %v1242
  %v1306 = vadd.f32 %v1305, %v1243
  %v1307 = vadd.f32 %v1306, %v1244
  %v1308 = vadd.f32 %v1307, %v1245
  %v1309 = vadd.f32 %v1308, %v1246
  %v1310 = vadd.f32 %v1309, %v1247
  %v1311 = vadd.f32 %v1310, %v1248
  %v1312 = vadd.f32 %v1311, %v1249
  %v1313 = vadd.f32 %v1312, %v1250
  %v1314 = vadd.f32 %v1313, %v1251
  %v1315 = vadd.f32 %v1314, %v1252
  %v1316 = vadd.f32 %v1315, %v1253
  %v1317 = vadd.f32 %v1316, %v1254
  %v1318 = vadd.f32 %v1317, %v1255
  %v1319 = vadd.f32 %v1318, %v1256
  %v1320 = vadd.f32 %v1319, %v1257
  %v1321 = vadd.f32 %v1320, %v1258
  %v1322 = vadd.f32 %v1321, %v1259
  %v1323 = vadd.f32 %v1322, %v1260
  %v1324 = vadd.f32 %v1323, %v1261
  %v1325 = vadd.f32 %v1324, %v1262
  %v1326 = vadd.f32 %v1325, %v1263
  %v1327 = vadd.f32 %v1326, %v1264
  %v1328 = vadd.f32 %v1327, %v1265
  %v1329 = vadd.f32 %v1328, %v1266
  %v1330 = vadd.f32 %v1329, %v1267
  %v1331 = vadd.f32 %v1330, %v1268
  %v1332 = vadd.f32 %v1331, %v1269
  %v1333 = vadd.f32 %v1332, %v1270
  %v1334 = vadd.f32 %v1333, %v1271
  %v1335 = vadd.f32 %v1334, %v1272
  %v1336 = vadd.f32 %v1335, %v1273
  %v1337 = vadd.f32 %v1336, %v1274
  %v1338 = vadd.f32 %v1337, %v1275
  %v1339 = vadd.f32 %v1338, %v1276
  %v1340 = vadd.f32 %v1339, %v1277
  %v1341 = vadd.f32 %v1340, %v1278
  %v1342 = vadd.f32 %v1341, %v1279
  %v1343 = vadd.f32 %v1342, %v1280
  %v1344 = vadd.f32 %v1343, %v1281
  %v1345 = vadd.f32 %v1344, %v1282
  %v1346 = vadd.f32 %v1345, %v1283
  %v1347 = vadd.f32 %v1346, %v1284
  %v1348 = vadd.f32 %v1347, %v1285
  %v1349 = vadd.f32 %v1348, %v1286
  %v1350 = vadd.f32 %v1349, %v1287
  %v1351 = vadd.f32 %v1350, %v1288
  %v1352 = vadd.f32 %v1351, %v1289
  %v1353 = vadd.f32 %v1352, %v1290
  %v1354 = vrot.slane %v1353, 4
  %v1355 = vadd.f32 %v1353, %v1354
  %v1356 = vrot.slane %v1355, 2
  %v1357 = vadd.f32 %v1355, %v1356
  %v1358 = vrot.slane %v1357, 1
  %v1359 = vadd.f32 %v1357, %v1358
  %v1360 = vmul.f32 %v1227, %v520
  %v1361 = vmul.f32 %v1228, %v525
  %v1362 = vmul.f32 %v1229, %v530
  %v1363 = vmul.f32 %v1230, %v535
  %v1364 = vmul.f32 %v1231, %v540
  %v1365 = vmul.f32 %v1232, %v545
  %v1366 = vmul.f32 %v1233, %v550
  %v1367 = vmul.f32 %v1234, %v555
  %v1368 = vmul.f32 %v1235, %v560
  %v1369 = vmul.f32 %v1236, %v565
  %v1370 = vmul.f32 %v1237, %v570
  %v1371 = vmul.f32 %v1238, %v575
  %v1372 = vmul.f32 %v1239, %v580
  %v1373 = vmul.f32 %v1240, %v585
  %v1374 = vmul.f32 %v1241, %v590
  %v1375 = vmul.f32 %v1242, %v595
  %v1376 = vmul.f32 %v1243, %v600
  %v1377 = vmul.f32 %v1244, %v605
  %v1378 = vmul.f32 %v1245, %v610
  %v1379 = vmul.f32 %v1246, %v615
  %v1380 = vmul.f32 %v1247, %v620
  %v1381 = vmul.f32 %v1248, %v625
  %v1382 = vmul.f32 %v1249, %v630
  %v1383 = vmul.f32 %v1250, %v635
  %v1384 = vmul.f32 %v1251, %v640
  %v1385 = vmul.f32 %v1252, %v645
  %v1386 = vmul.f32 %v1253, %v650
  %v1387 = vmul.f32 %v1254, %v655
  %v1388 = vmul.f32 %v1255, %v660
  %v1389 = vmul.f32 %v1256, %v665
  %v1390 = vmul.f32 %v1257, %v670
  %v1391 = vmul.f32 %v1258, %v675
  %v1392 = vmul.f32 %v1259, %v680
  %v1393 = vmul.f32 %v1260, %v685
  %v1394 = vmul.f32 %v1261, %v690
  %v1395 = vmul.f32 %v1262, %v695
  %v1396 = vmul.f32 %v1263, %v700
  %v1397 = vmul.f32 %v1264, %v705
  %v1398 = vmul.f32 %v1265, %v710
  %v1399 = vmul.f32 %v1266, %v715
  %v1400 = vmul.f32 %v1267, %v720
  %v1401 = vmul.f32 %v1268, %v725
  %v1402 = vmul.f32 %v1269, %v730
  %v1403 = vmul.f32 %v1270, %v735
  %v1404 = vmul.f32 %v1271, %v740
  %v1405 = vmul.f32 %v1272, %v745
  %v1406 = vmul.f32 %v1273, %v750
  %v1407 = vmul.f32 %v1274, %v755
  %v1408 = vmul.f32 %v1275, %v760
  %v1409 = vmul.f32 %v1276, %v765
  %v1410 = vmul.f32 %v1277, %v770
  %v1411 = vmul.f32 %v1278, %v775
  %v1412 = vmul.f32 %v1279, %v780
  %v1413 = vmul.f32 %v1280, %v785
  %v1414 = vmul.f32 %v1281, %v790
  %v1415 = vmul.f32 %v1282, %v795
  %v1416 = vmul.f32 %v1283, %v800
  %v1417 = vmul.f32 %v1284, %v805
  %v1418 = vmul.f32 %v1285, %v810
  %v1419 = vmul.f32 %v1286, %v815
  %v1420 = vmul.f32 %v1287, %v820
  %v1421 = vmul.f32 %v1288, %v825
  %v1422 = vmul.f32 %v1289, %v830
  %v1423 = vmul.f32 %v1290, %v835
  %v1424 = vadd.f32 %v1360, %v1361
  %v1425 = vadd.f32 %v1424, %v1362
  %v1426 = vadd.f32 %v1425, %v1363
  %v1427 = vadd.f32 %v1426, %v1364
  %v1428 = vadd.f32 %v1427, %v1365
  %v1429 = vadd.f32 %v1428, %v1366
  %v1430 = vadd.f32 %v1429, %v1367
  %v1431 = vadd.f32 %v1430, %v1368
  %v1432 = vadd.f32 %v1431, %v1369
  %v1433 = vadd.f32 %v1432, %v1370
  %v1434 = vadd.f32 %v1433, %v1371
  %v1435 = vadd.f32 %v1434, %v1372
  %v1436 = vadd.f32 %v1435, %v1373
  %v1437 = vadd.f32 %v1436, %v1374
  %v1438 = vadd.f32 %v1437, %v1375
  %v1439 = vadd.f32 %v1438, %v1376
  %v1440 = vadd.f32 %v1439, %v1377
  %v1441 = vadd.f32 %v1440, %v1378
  %v1442 = vadd.f32 %v1441, %v1379
  %v1443 = vadd.f32 %v1442, %v1380
  %v1444 = vadd.f32 %v1443, %v1381
  %v1445 = vadd.f32 %v1444, %v1382
  %v1446 = vadd.f32 %v1445, %v1383
  %v1447 = vadd.f32 %v1446, %v1384
  %v1448 = vadd.f32 %v1447, %v1385
  %v1449 = vadd.f32 %v1448, %v1386
  %v1450 = vadd.f32 %v1449, %v1387
  %v1451 = vadd.f32 %v1450, %v1388
  %v1452 = vadd.f32 %v1451, %v1389
  %v1453 = vadd.f32 %v1452, %v1390
  %v1454 = vadd.f32 %v1453, %v1391
  %v1455 = vadd.f32 %v1454, %v1392
  %v1456 = vadd.f32 %v1455, %v1393
  %v1457 = vadd.f32 %v1456, %v1394
  %v1458 = vadd.f32 %v1457, %v1395
  %v1459 = vadd.f32 %v1458, %v1396
  %v1460 = vadd.f32 %v1459, %v1397
  %v1461 = vadd.f32 %v1460, %v1398
  %v1462 = vadd.f32 %v1461, %v1399
  %v1463 = vadd.f32 %v1462, %v1400
  %v1464 = vadd.f32 %v1463, %v1401
  %v1465 = vadd.f32 %v1464, %v1402
  %v1466 = vadd.f32 %v1465, %v1403
  %v1467 = vadd.f32 %v1466, %v1404
  %v1468 = vadd.f32 %v1467, %v1405
  %v1469 = vadd.f32 %v1468, %v1406
  %v1470 = vadd.f32 %v1469, %v1407
  %v1471 = vadd.f32 %v1470, %v1408
  %v1472 = vadd.f32 %v1471, %v1409
  %v1473 = vadd.f32 %v1472, %v1410
  %v1474 = vadd.f32 %v1473, %v1411
  %v1475 = vadd.f32 %v1474, %v1412
  %v1476 = vadd.f32 %v1475, %v1413
  %v1477 = vadd.f32 %v1476, %v1414
  %v1478 = vadd.f32 %v1477, %v1415
  %v1479 = vadd.f32 %v1478, %v1416
  %v1480 = vadd.f32 %v1479, %v1417
  %v1481 = vadd.f32 %v1480, %v1418
  %v1482 = vadd.f32 %v1481, %v1419
  %v1483 = vadd.f32 %v1482, %v1420
  %v1484 = vadd.f32 %v1483, %v1421
  %v1485 = vadd.f32 %v1484, %v1422
  %v1486 = vadd.f32 %v1485, %v1423
  %v1487 = vrot.slane %v1486, 4
  %v1488 = vadd.f32 %v1486, %v1487
  %v1489 = vrot.slane %v1488, 2
  %v1490 = vadd.f32 %v1488, %v1489
  %v1491 = vrot.slane %v1490, 1
  %v1492 = vadd.f32 %v1490, %v1491
  %vm1493 = vcmp.eq.s32.totalorder %v905, 0
  %v1494 = vsel %vm1493, %v1359, 0.0
  %vm1495 = vcmp.eq.s32.totalorder %v905, 1
  %v1496 = vsel %vm1495, %v1492, 0.0
  %v1497 = vadd.f32 %v1494, %v1496
  %1498 = vst [vmem:[%s8] sm:$0xff] %v1497
  // Predicated region
  $region30: #{maegin_forward.4} parent=0 // pred_check
    _
  $region31: #{maegin_forward.4} parent=0 // pred_check_branch
    %1500 = sbr.rel (0) target = $region33
  $region32: #{maegin_forward.4} parent=0 // pred_region
    _
  $region33: #{maegin_forward.4} parent=0 // pred_fallthru
    _
  // Predicated region
  $region34: #{maegin_forward.4} parent=0 // pred_check
    _
  $region35: #{maegin_forward.4} parent=0 // pred_check_branch
    %1502 = sbr.rel (0) target = $region37
  $region36: #{maegin_forward.4} parent=0 // pred_region
    _
  $region37: #{maegin_forward.4} parent=0 // pred_fallthru
    _
  // Predicated region
  $region38: #{maegin_forward.4} parent=0 // pred_check
    _
  $region39: #{maegin_forward.4} parent=0 // pred_check_branch
    %1504 = sbr.rel (0) target = $region41
  $region40: #{maegin_forward.4} parent=0 // pred_region
    _
  $region41: #{maegin_forward.4} parent=0 // pred_fallthru
    _
  // Predicated region
  $region42: #{maegin_forward.4} parent=0 // pred_check
    _
  $region43: #{maegin_forward.4} parent=0 // pred_check_branch
    %1506 = sbr.rel (0) target = $region45
  $region44: #{maegin_forward.4} parent=0 // pred_region
    _
  $region45: #{maegin_forward.4} parent=0 // pred_fallthru
    _

// kernel: maegin_forward.3
$region0: #{maegin_forward.3}
  #allocation0 [shape = 'u32[]', space=smem, size = 0x4, offset = 0x4, fixed_abs, tag = 'smem constant byte address 0x4 - core index']
  #allocation1 [shape = 'u32[144,128]{1,0:T(1,128)}', space=vmem, size = 0x12000, scoped, tag = 'internal scratch']
  #allocation2 [shape = 'f32[256,128]{1,0:T(8,128)}', space=vmem, size = 0x20000, scoped, tag = 'scratch operand']
  #allocation3 [shape = 's32[1]{0:T(128)S(6)}', space=smem, size = 0x200, scoped, tag = 'scoped memory for maegin_forward.3']
  %s0 = inlined_call_operand.<no memory space> [shape: s32[1], index: 0, kind: input, shape index: {}]
  %s1 = inlined_call_operand.vmem [shape: bf16[512,512], index: 1, kind: input, shape index: {}]
  %s2 = inlined_call_operand.vmem [shape: bf16[512,128], index: 2, kind: input, shape index: {}]
  %s3 = inlined_call_operand.vmem [shape: bf16[512,128], index: 3, kind: input, shape index: {}]
  %s4 = inlined_call_operand.vmem [shape: f32[128,128], index: 4, kind: input, shape index: {}]
  %s5 = inlined_call_operand.vmem [shape: f32[1,128], index: 5, kind: input, shape index: {}]
  %s6 = inlined_call_operand.vmem [shape: f32[512,128], index: 6, kind: output, shape index: {0}]
  %s7 = inlined_call_operand.vmem [shape: f32[16,128], index: 7, kind: output, shape index: {1}]
  %8 = xla_tuple %s6, %s7
  %s9 = sld [smem:[#allocation0]]
  $region73: #{maegin_forward.3} parent=0
    _
  %s11 = ssub.s32 1, %s9
  %s12 = scalar_select 0, %s11, %s9
  %13 = sst [smem:[#allocation3]] %s0
  loop: start=0, step=1, limit=4
  $region2: #{maegin_forward.3} parent=0 // loop_pre_header
    _
  $region3: #{maegin_forward.3} parent=0 // loop_header
    %s15 = sphi 0, %s19
    %p16 = scmp.ge.s32.totalorder %s15, 4
    %s22 = sphi 0, %s34
    %s23 = sphi 0, %s30
    %s24 = sphi 0, %s22
    %s25 = sphi 0, %s23
    %s26 = sphi 0, %s24
    %s27 = sphi 0, %s25
    %s35 = sphi 0, %s35
    %s37 = sphi 0, %s35
    %s38 = sphi 0, %s37
    %s52 = sphi 0, %s38
    %s60 = sphi 0, %s62
    %s63 = sphi 0, %s60
    %s64 = sphi 0, %s63
    %s80 = sphi 0, %s64
    %s84 = sphi 0, %s84
    %s86 = sphi 0, %s84
    %s87 = sphi 0, %s86
    %s101 = sphi 0, %s87
    %s105 = sphi 0, %s105
    %s107 = sphi 0, %s105
    %s108 = sphi 0, %s107
    %s122 = sphi 0, %s108
    %s126 = sphi 0, %s126
    %s128 = sphi 0, %s126
    %s129 = sphi 0, %s128
    %s143 = sphi 0, %s129
    %s147 = sphi 0, %s147
    %s149 = sphi 0, %s147
    %s150 = sphi 0, %s149
    %s164 = sphi 0, %s150
    %s170 = sphi 0, %s172
    %s173 = sphi 0, %s170
    %s174 = sphi 0, %s173
    %s190 = sphi 0, %s174
    %s196 = sphi 0, %s198
    %s199 = sphi 0, %s196
    %s200 = sphi 0, %s199
    %s216 = sphi 0, %s200
  $region4: #{maegin_forward.3} parent=0 // loop_header_branch
    %18 = sbr.rel (%p16) target = $region8
  $region5: #{maegin_forward.3} parent=0 // loop_body
    %s20 = ssub.s32 %s15, 1
    %s21 = ssub.s32 %s15, 2
    %s28 = sadd.s32 1, %s23
    %p29 = scmp.ge.s32.totalorder %s28, 1
    %s30 = scalar_select %p29, 0, %s28
    %s31 = sadd.s32 1, %s22
    %s32 = scalar_select %p29, %s31, %s22
    %p33 = scmp.ge.s32.totalorder %s32, 2
    %s34 = scalar_select %p33, 0, %s32
    %s36 = sadd.s32 %s35, 1
    %p39 = scmp.eq.s32.totalorder %s15, 1
    %p40 = scmp.ne.s32.totalorder %s35, %s37
    %p41 = scmp.eq.s32.totalorder %s15, 0
    %p42 = por %p40, %p41
    %p43 = scmp.ne.s32.totalorder %s35, %s37
    %p44 = scmp.eq.s32.totalorder %s20, 1
    %p45 = por %p43, %p44
    %p46 = scmp.ne.s32.totalorder %s37, %s38
    %p47 = scmp.eq.s32.totalorder %s20, 0
    %p48 = por %p46, %p47
    %p49 = scmp.ne.s32.totalorder %s37, %s38
    %p50 = scmp.eq.s32.totalorder %s21, 1
    %p51 = por %p49, %p50
    %p53 = scmp.ne.s32.totalorder %s38, %s52
    %p54 = scmp.eq.s32.totalorder %s21, 0
    %p55 = por %p53, %p54
    %s56 = ssub.s32 %s22, %s34
    %s57 = ssub.s32 %s23, %s30
    %s58 = sor.u32 %s56, %s57
    %p59 = scmp.eq.s32.totalorder %s58, 0
    %s61 = sadd.s32 %s60, 1
    %s62 = scalar_select %p59, %s60, %s61
    %p65 = pneg %p59
    %p66 = scmp.eq.s32.totalorder %s15, 1
    %p67 = por %p65, %p66
    %p68 = scmp.ne.s32.totalorder %s60, %s63
    %p69 = scmp.eq.s32.totalorder %s15, 0
    %p70 = por %p68, %p69
    %p71 = scmp.ne.s32.totalorder %s60, %s63
    %p72 = scmp.eq.s32.totalorder %s20, 1
    %p73 = por %p71, %p72
    %p74 = scmp.ne.s32.totalorder %s63, %s64
    %p75 = scmp.eq.s32.totalorder %s20, 0
    %p76 = por %p74, %p75
    %p77 = scmp.ne.s32.totalorder %s63, %s64
    %p78 = scmp.eq.s32.totalorder %s21, 1
    %p79 = por %p77, %p78
    %p81 = scmp.ne.s32.totalorder %s64, %s80
    %p82 = scmp.eq.s32.totalorder %s21, 0
    %p83 = por %p81, %p82
    %s85 = sadd.s32 %s84, 1
    %p88 = scmp.eq.s32.totalorder %s15, 1
    %p89 = scmp.ne.s32.totalorder %s84, %s86
    %p90 = scmp.eq.s32.totalorder %s15, 0
    %p91 = por %p89, %p90
    %p92 = scmp.ne.s32.totalorder %s84, %s86
    %p93 = scmp.eq.s32.totalorder %s20, 1
    %p94 = por %p92, %p93
    %p95 = scmp.ne.s32.totalorder %s86, %s87
    %p96 = scmp.eq.s32.totalorder %s20, 0
    %p97 = por %p95, %p96
    %p98 = scmp.ne.s32.totalorder %s86, %s87
    %p99 = scmp.eq.s32.totalorder %s21, 1
    %p100 = por %p98, %p99
    %p102 = scmp.ne.s32.totalorder %s87, %s101
    %p103 = scmp.eq.s32.totalorder %s21, 0
    %p104 = por %p102, %p103
    %s106 = sadd.s32 %s105, 1
    %p109 = scmp.eq.s32.totalorder %s15, 1
    %p110 = scmp.ne.s32.totalorder %s105, %s107
    %p111 = scmp.eq.s32.totalorder %s15, 0
    %p112 = por %p110, %p111
    %p113 = scmp.ne.s32.totalorder %s105, %s107
    %p114 = scmp.eq.s32.totalorder %s20, 1
    %p115 = por %p113, %p114
    %p116 = scmp.ne.s32.totalorder %s107, %s108
    %p117 = scmp.eq.s32.totalorder %s20, 0
    %p118 = por %p116, %p117
    %p119 = scmp.ne.s32.totalorder %s107, %s108
    %p120 = scmp.eq.s32.totalorder %s21, 1
    %p121 = por %p119, %p120
    %p123 = scmp.ne.s32.totalorder %s108, %s122
    %p124 = scmp.eq.s32.totalorder %s21, 0
    %p125 = por %p123, %p124
    %s127 = sadd.s32 %s126, 1
    %p130 = scmp.eq.s32.totalorder %s15, 1
    %p131 = scmp.ne.s32.totalorder %s126, %s128
    %p132 = scmp.eq.s32.totalorder %s15, 0
    %p133 = por %p131, %p132
    %p134 = scmp.ne.s32.totalorder %s126, %s128
    %p135 = scmp.eq.s32.totalorder %s20, 1
    %p136 = por %p134, %p135
    %p137 = scmp.ne.s32.totalorder %s128, %s129
    %p138 = scmp.eq.s32.totalorder %s20, 0
    %p139 = por %p137, %p138
    %p140 = scmp.ne.s32.totalorder %s128, %s129
    %p141 = scmp.eq.s32.totalorder %s21, 1
    %p142 = por %p140, %p141
    %p144 = scmp.ne.s32.totalorder %s129, %s143
    %p145 = scmp.eq.s32.totalorder %s21, 0
    %p146 = por %p144, %p145
    %s148 = sadd.s32 %s147, 1
    %p151 = scmp.eq.s32.totalorder %s15, 1
    %p152 = scmp.ne.s32.totalorder %s147, %s149
    %p153 = scmp.eq.s32.totalorder %s15, 0
    %p154 = por %p152, %p153
    %p155 = scmp.ne.s32.totalorder %s147, %s149
    %p156 = scmp.eq.s32.totalorder %s20, 1
    %p157 = por %p155, %p156
    %p158 = scmp.ne.s32.totalorder %s149, %s150
    %p159 = scmp.eq.s32.totalorder %s20, 0
    %p160 = por %p158, %p159
    %p161 = scmp.ne.s32.totalorder %s149, %s150
    %p162 = scmp.eq.s32.totalorder %s21, 1
    %p163 = por %p161, %p162
    %p165 = scmp.ne.s32.totalorder %s150, %s164
    %p166 = scmp.eq.s32.totalorder %s21, 0
    %p167 = por %p165, %p166
    %s168 = ssub.s32 %s22, %s34
    %p169 = scmp.eq.s32.totalorder %s168, 0
    %s171 = sadd.s32 %s170, 1
    %s172 = scalar_select %p169, %s170, %s171
    %p175 = pneg %p169
    %p176 = scmp.eq.s32.totalorder %s15, 1
    %p177 = por %p175, %p176
    %p178 = scmp.ne.s32.totalorder %s170, %s173
    %p179 = scmp.eq.s32.totalorder %s15, 0
    %p180 = por %p178, %p179
    %p181 = scmp.ne.s32.totalorder %s170, %s173
    %p182 = scmp.eq.s32.totalorder %s20, 1
    %p183 = por %p181, %p182
    %p184 = scmp.ne.s32.totalorder %s173, %s174
    %p185 = scmp.eq.s32.totalorder %s20, 0
    %p186 = por %p184, %p185
    %p187 = scmp.ne.s32.totalorder %s173, %s174
    %p188 = scmp.eq.s32.totalorder %s21, 1
    %p189 = por %p187, %p188
    %p191 = scmp.ne.s32.totalorder %s174, %s190
    %p192 = scmp.eq.s32.totalorder %s21, 0
    %p193 = por %p191, %p192
    %s194 = ssub.s32 %s22, %s34
    %p195 = scmp.eq.s32.totalorder %s194, 0
    %s197 = sadd.s32 %s196, 1
    %s198 = scalar_select %p195, %s196, %s197
    %p201 = pneg %p195
    %p202 = scmp.eq.s32.totalorder %s15, 1
    %p203 = por %p201, %p202
    %p204 = scmp.ne.s32.totalorder %s196, %s199
    %p205 = scmp.eq.s32.totalorder %s15, 0
    %p206 = por %p204, %p205
    %p207 = scmp.ne.s32.totalorder %s196, %s199
    %p208 = scmp.eq.s32.totalorder %s20, 1
    %p209 = por %p207, %p208
    %p210 = scmp.ne.s32.totalorder %s199, %s200
    %p211 = scmp.eq.s32.totalorder %s20, 0
    %p212 = por %p210, %p211
    %p213 = scmp.ne.s32.totalorder %s199, %s200
    %p214 = scmp.eq.s32.totalorder %s21, 1
    %p215 = por %p213, %p214
    %p217 = scmp.ne.s32.totalorder %s200, %s216
    %p218 = scmp.eq.s32.totalorder %s21, 0
    %p219 = por %p217, %p218
    %p220 = scmp.le.s32.totalorder 1, %s15
    %p221 = scmp.lt.s32.totalorder %s15, 3
    %p222 = pnand %p220, %p221
    %p223 = pneg %p222
    // Predicated region
    $region9: #{maegin_forward.3} parent=5 // pred_check
      _
    $region10: #{maegin_forward.3} parent=5 // pred_check_branch
      %225 = sbr.rel (%p222) target = $region12
    $region11: #{maegin_forward.3} parent=5 // pred_region
      %s226 = ssub.s32 %s15, 1
      // Predicated region
      $region13: #{maegin_forward.3} parent=11 // pred_check
        %p227 = pneg %p48
      $region14: #{maegin_forward.3} parent=11 // pred_check_branch
        %229 = sbr.rel (%p227) target = $region16
      $region15: #{maegin_forward.3} parent=11 // pred_region
        _
      $region16: #{maegin_forward.3} parent=11 // pred_fallthru
        _
      // Predicated region
      $region17: #{maegin_forward.3} parent=11 // pred_check
        %p230 = pneg %p97
      $region18: #{maegin_forward.3} parent=11 // pred_check_branch
        %232 = sbr.rel (%p230) target = $region20
      $region19: #{maegin_forward.3} parent=11 // pred_region
        _
      $region20: #{maegin_forward.3} parent=11 // pred_fallthru
        _
      // Predicated region
      $region21: #{maegin_forward.3} parent=11 // pred_check
        %p233 = pneg %p118
      $region22: #{maegin_forward.3} parent=11 // pred_check_branch
        %235 = sbr.rel (%p233) target = $region24
      $region23: #{maegin_forward.3} parent=11 // pred_region
        _
      $region24: #{maegin_forward.3} parent=11 // pred_fallthru
        _
      // Predicated region
      $region25: #{maegin_forward.3} parent=11 // pred_check
        %p236 = pneg %p139
      $region26: #{maegin_forward.3} parent=11 // pred_check_branch
        %238 = sbr.rel (%p236) target = $region28
      $region27: #{maegin_forward.3} parent=11 // pred_region
        _
      $region28: #{maegin_forward.3} parent=11 // pred_fallthru
        _
      // Predicated region
      $region29: #{maegin_forward.3} parent=11 // pred_check
        %p239 = pneg %p160
      $region30: #{maegin_forward.3} parent=11 // pred_check_branch
        %241 = sbr.rel (%p239) target = $region32
      $region31: #{maegin_forward.3} parent=11 // pred_region
        _
      $region32: #{maegin_forward.3} parent=11 // pred_fallthru
        _
    $region12: #{maegin_forward.3} parent=5 // pred_fallthru
      _
    %p242 = scmp.lt.s32.totalorder %s15, 2
    // Predicated region
    $region33: #{maegin_forward.3} parent=5 // pred_check
      %p243 = pneg %p242
    $region34: #{maegin_forward.3} parent=5 // pred_check_branch
      %245 = sbr.rel (%p243) target = $region36
    $region35: #{maegin_forward.3} parent=5 // pred_region
      // Predicated region
      $region37: #{maegin_forward.3} parent=35 // pred_check
        %p246 = pneg %p70
      $region38: #{maegin_forward.3} parent=35 // pred_check_branch
        %248 = sbr.rel (%p246) target = $region40
      $region39: #{maegin_forward.3} parent=35 // pred_region
        %s249 = smul.u32 32, %s22
        %s250 = smul.u32 4, %s23
        %p251 = scmp.lt.s32.totalorder %s249, 63
        %s252 = scalar_select %p251, %s249, 63
        %p253 = scmp.lt.s32.totalorder %s250, 3
        %s254 = scalar_select %p253, %s250, 3
        %s255 = smul.addr %s252, 4
        %s256 = sadd.s32 %s254, %s255
        %s257 = smul.addr %s256, 4
        %s258 = scalar_lea.vmem %s1, %s257
        %s259 = smul.u32 32, %s22
        %s260 = smul.u32 4, %s23
      $region40: #{maegin_forward.3} parent=35 // pred_fallthru
        _
    $region36: #{maegin_forward.3} parent=5 // pred_fallthru
      _
    %p261 = scmp.le.s32.totalorder 1, %s15
    %p262 = scmp.lt.s32.totalorder %s15, 3
    %p263 = pnand %p261, %p262
    %p264 = pneg %p263
    // Predicated region
    $region41: #{maegin_forward.3} parent=5 // pred_check
      _
    $region42: #{maegin_forward.3} parent=5 // pred_check_branch
      %266 = sbr.rel (%p263) target = $region44
    $region43: #{maegin_forward.3} parent=5 // pred_region
      %s267 = ssub.s32 %s15, 1
      %p268 = pneg %p48
      %p269 = pneg %p45
      %s270 = smul.u32 32, %s24
      %s271 = smul.u32 4, %s25
      %p272 = scmp.lt.s32.totalorder %s270, 63
      %s273 = scalar_select %p272, %s270, 63
      %p274 = scmp.lt.s32.totalorder %s271, 3
      %s275 = scalar_select %p274, %s271, 3
      %s276 = smul.addr %s273, 4
      %s277 = sadd.s32 %s275, %s276
      %s278 = smul.addr %s277, 4
      %s279 = scalar_lea.vmem %s1, %s278
      %p280 = pneg %p76
      %p281 = pneg %p73
      %p282 = pneg %p97
      %p283 = pneg %p94
      %p284 = pneg %p118
      %p285 = pneg %p115
      %p286 = pneg %p139
      %p287 = pneg %p136
      %p288 = pneg %p160
      %p289 = pneg %p157
      %p290 = pneg %p186
      %p291 = pneg %p183
      %s292 = smul.u32 32, %s24
      %p293 = scmp.lt.s32.totalorder %s292, 63
      %s294 = scalar_select %p293, %s292, 63
      %s295 = smul.addr %s294, 8
      %s296 = scalar_lea.vmem %s6, %s295
      %p297 = pneg %p212
      %p298 = pneg %p209
      %p299 = scmp.lt.s32.totalorder %s24, 1
      %s300 = scalar_select %p299, %s24, 1
      %s301 = smul.addr %s300, 8
      %s302 = scalar_lea.vmem %s7, %s301
      %s303 = smul.u32 32, %s24
      %s304 = smul.u32 4, %s25
      %p305 = scmp.lt.s32.totalorder %s303, 63
      %s306 = scalar_select %p305, %s303, 63
      %p307 = scmp.lt.s32.totalorder %s304, 3
      %s308 = scalar_select %p307, %s304, 3
      %s309 = smul.addr %s306, 4
      %s310 = sadd.s32 %s308, %s309
      %s311 = smul.addr %s310, 4
      %s312 = scalar_lea.vmem %s1, %s311
      %s313 = smul.u32 32, %s24
      %s314 = smul.u32 4, %s25
      %s315 = smul.u32 32, %s24
      %p316 = scmp.lt.s32.totalorder %s315, 63
      %s317 = scalar_select %p316, %s315, 63
      %s318 = smul.addr %s317, 8
      %s319 = scalar_lea.vmem %s6, %s318
      %s320 = smul.u32 32, %s24
      %p321 = scmp.lt.s32.totalorder %s24, 1
      %s322 = scalar_select %p321, %s24, 1
      %s323 = smul.addr %s322, 8
      %s324 = scalar_lea.vmem %s7, %s323
      %p326 = scmp.eq.s32.totalorder %s25, 0
      // Predicated region
      $region45: #{maegin_forward.3} parent=43 // pred_check
        %p327 = pneg %p326
      $region46: #{maegin_forward.3} parent=43 // pred_check_branch
        %329 = sbr.rel (%p327) target = $region48
      $region47: #{maegin_forward.3} parent=43 // pred_region
        %330 = vst [vmem:[#allocation2] sm:$0xff] 0.0
        %331 = vst [vmem:[#allocation2 + $0x8] sm:$0xff] 0.0
        %332 = vst [vmem:[#allocation2 + $0x10] sm:$0xff] 0.0
        %333 = vst [vmem:[#allocation2 + $0x18] sm:$0xff] 0.0
        %334 = vst [vmem:[#allocation2 + $0x20] sm:$0xff] 0.0
        %335 = vst [vmem:[#allocation2 + $0x28] sm:$0xff] 0.0
        %336 = vst [vmem:[#allocation2 + $0x30] sm:$0xff] 0.0
        %337 = vst [vmem:[#allocation2 + $0x38] sm:$0xff] 0.0
        %338 = vst [vmem:[#allocation2 + $0x40] sm:$0xff] 0.0
        %339 = vst [vmem:[#allocation2 + $0x48] sm:$0xff] 0.0
        %340 = vst [vmem:[#allocation2 + $0x50] sm:$0xff] 0.0
        %341 = vst [vmem:[#allocation2 + $0x58] sm:$0xff] 0.0
        %342 = vst [vmem:[#allocation2 + $0x60] sm:$0xff] 0.0
        %343 = vst [vmem:[#allocation2 + $0x68] sm:$0xff] 0.0
        %344 = vst [vmem:[#allocation2 + $0x70] sm:$0xff] 0.0
        %345 = vst [vmem:[#allocation2 + $0x78] sm:$0xff] 0.0
        %346 = vst [vmem:[#allocation2 + $0x80] sm:$0xff] 0.0
        %347 = vst [vmem:[#allocation2 + $0x88] sm:$0xff] 0.0
        %348 = vst [vmem:[#allocation2 + $0x90] sm:$0xff] 0.0
        %349 = vst [vmem:[#allocation2 + $0x98] sm:$0xff] 0.0
        %350 = vst [vmem:[#allocation2 + $0xa0] sm:$0xff] 0.0
        %351 = vst [vmem:[#allocation2 + $0xa8] sm:$0xff] 0.0
        %352 = vst [vmem:[#allocation2 + $0xb0] sm:$0xff] 0.0
        %353 = vst [vmem:[#allocation2 + $0xb8] sm:$0xff] 0.0
        %354 = vst [vmem:[#allocation2 + $0xc0] sm:$0xff] 0.0
        %355 = vst [vmem:[#allocation2 + $0xc8] sm:$0xff] 0.0
        %356 = vst [vmem:[#allocation2 + $0xd0] sm:$0xff] 0.0
        %357 = vst [vmem:[#allocation2 + $0xd8] sm:$0xff] 0.0
        %358 = vst [vmem:[#allocation2 + $0xe0] sm:$0xff] 0.0
        %359 = vst [vmem:[#allocation2 + $0xe8] sm:$0xff] 0.0
        %360 = vst [vmem:[#allocation2 + $0xf0] sm:$0xff] 0.0
        %361 = vst [vmem:[#allocation2 + $0xf8] sm:$0xff] 0.0
      $region48: #{maegin_forward.3} parent=43 // pred_fallthru
        _
      %s362 = smul.u32 %s25, 512
      %s363 = sshra.s32 %s362, 3
      %s364 = sand.u32 %s362, 7
      %s365 = smul.addr %s363, 4
      %s366 = scalar_lea.vmem %s2, %s365
      %v367 = vld [vmem:[%s366] sm:$0xf]
      %v368 = vld [vmem:[%s366 + $0x4] sm:$0xf]
      %v369 = vld [vmem:[%s366 + $0x8] sm:$0xf]
      %v370 = vld [vmem:[%s366 + $0xc] sm:$0xf]
      %v371 = vld [vmem:[%s366 + $0x10] sm:$0xf]
      %v372 = vld [vmem:[%s366 + $0x14] sm:$0xf]
      %v373 = vld [vmem:[%s366 + $0x18] sm:$0xf]
      %v374 = vld [vmem:[%s366 + $0x1c] sm:$0xf]
      %v375 = vld [vmem:[%s366 + $0x20] sm:$0xf]
      %v376 = vld [vmem:[%s366 + $0x24] sm:$0xf]
      %v377 = vld [vmem:[%s366 + $0x28] sm:$0xf]
      %v378 = vld [vmem:[%s366 + $0x2c] sm:$0xf]
      %v379 = vld [vmem:[%s366 + $0x30] sm:$0xf]
      %v380 = vld [vmem:[%s366 + $0x34] sm:$0xf]
      %v381 = vld [vmem:[%s366 + $0x38] sm:$0xf]
      %v382 = vld [vmem:[%s366 + $0x3c] sm:$0xf]
      %v383 = vld [vmem:[%s366 + $0x40] sm:$0xf]
      %v384 = vld [vmem:[%s366 + $0x44] sm:$0xf]
      %v385 = vld [vmem:[%s366 + $0x48] sm:$0xf]
      %v386 = vld [vmem:[%s366 + $0x4c] sm:$0xf]
      %v387 = vld [vmem:[%s366 + $0x50] sm:$0xf]
      %v388 = vld [vmem:[%s366 + $0x54] sm:$0xf]
      %v389 = vld [vmem:[%s366 + $0x58] sm:$0xf]
      %v390 = vld [vmem:[%s366 + $0x5c] sm:$0xf]
      %v391 = vld [vmem:[%s366 + $0x60] sm:$0xf]
      %v392 = vld [vmem:[%s366 + $0x64] sm:$0xf]
      %v393 = vld [vmem:[%s366 + $0x68] sm:$0xf]
      %v394 = vld [vmem:[%s366 + $0x6c] sm:$0xf]
      %v395 = vld [vmem:[%s366 + $0x70] sm:$0xf]
      %v396 = vld [vmem:[%s366 + $0x74] sm:$0xf]
      %v397 = vld [vmem:[%s366 + $0x78] sm:$0xf]
      %v398 = vld [vmem:[%s366 + $0x7c] sm:$0xf]
      %v399 = vld [vmem:[%s366 + $0x80] sm:$0xf]
      %v400 = vld [vmem:[%s366 + $0x84] sm:$0xf]
      %v401 = vld [vmem:[%s366 + $0x88] sm:$0xf]
      %v402 = vld [vmem:[%s366 + $0x8c] sm:$0xf]
      %v403 = vld [vmem:[%s366 + $0x90] sm:$0xf]
      %v404 = vld [vmem:[%s366 + $0x94] sm:$0xf]
      %v405 = vld [vmem:[%s366 + $0x98] sm:$0xf]
      %v406 = vld [vmem:[%s366 + $0x9c] sm:$0xf]
      %v407 = vld [vmem:[%s366 + $0xa0] sm:$0xf]
      %v408 = vld [vmem:[%s366 + $0xa4] sm:$0xf]
      %v409 = vld [vmem:[%s366 + $0xa8] sm:$0xf]
      %v410 = vld [vmem:[%s366 + $0xac] sm:$0xf]
      %v411 = vld [vmem:[%s366 + $0xb0] sm:$0xf]
      %v412 = vld [vmem:[%s366 + $0xb4] sm:$0xf]
      %v413 = vld [vmem:[%s366 + $0xb8] sm:$0xf]
      %v414 = vld [vmem:[%s366 + $0xbc] sm:$0xf]
      %v415 = vld [vmem:[%s366 + $0xc0] sm:$0xf]
      %v416 = vld [vmem:[%s366 + $0xc4] sm:$0xf]
      %v417 = vld [vmem:[%s366 + $0xc8] sm:$0xf]
      %v418 = vld [vmem:[%s366 + $0xcc] sm:$0xf]
      %v419 = vld [vmem:[%s366 + $0xd0] sm:$0xf]
      %v420 = vld [vmem:[%s366 + $0xd4] sm:$0xf]
      %v421 = vld [vmem:[%s366 + $0xd8] sm:$0xf]
      %v422 = vld [vmem:[%s366 + $0xdc] sm:$0xf]
      %v423 = vld [vmem:[%s366 + $0xe0] sm:$0xf]
      %v424 = vld [vmem:[%s366 + $0xe4] sm:$0xf]
      %v425 = vld [vmem:[%s366 + $0xe8] sm:$0xf]
      %v426 = vld [vmem:[%s366 + $0xec] sm:$0xf]
      %v427 = vld [vmem:[%s366 + $0xf0] sm:$0xf]
      %v428 = vld [vmem:[%s366 + $0xf4] sm:$0xf]
      %v429 = vld [vmem:[%s366 + $0xf8] sm:$0xf]
      %v430 = vld [vmem:[%s366 + $0xfc] sm:$0xf]
      %s431 = smul.addr %s363, 4
      %s432 = scalar_lea.vmem %s3, %s431
      %v433 = vld [vmem:[%s432] sm:$0xf]
      %v434 = vld [vmem:[%s432 + $0x4] sm:$0xf]
      %v435 = vld [vmem:[%s432 + $0x8] sm:$0xf]
      %v436 = vld [vmem:[%s432 + $0xc] sm:$0xf]
      %v437 = vld [vmem:[%s432 + $0x10] sm:$0xf]
      %v438 = vld [vmem:[%s432 + $0x14] sm:$0xf]
      %v439 = vld [vmem:[%s432 + $0x18] sm:$0xf]
      %v440 = vld [vmem:[%s432 + $0x1c] sm:$0xf]
      %v441 = vld [vmem:[%s432 + $0x20] sm:$0xf]
      %v442 = vld [vmem:[%s432 + $0x24] sm:$0xf]
      %v443 = vld [vmem:[%s432 + $0x28] sm:$0xf]
      %v444 = vld [vmem:[%s432 + $0x2c] sm:$0xf]
      %v445 = vld [vmem:[%s432 + $0x30] sm:$0xf]
      %v446 = vld [vmem:[%s432 + $0x34] sm:$0xf]
      %v447 = vld [vmem:[%s432 + $0x38] sm:$0xf]
      %v448 = vld [vmem:[%s432 + $0x3c] sm:$0xf]
      %v449 = vld [vmem:[%s432 + $0x40] sm:$0xf]
      %v450 = vld [vmem:[%s432 + $0x44] sm:$0xf]
      %v451 = vld [vmem:[%s432 + $0x48] sm:$0xf]
      %v452 = vld [vmem:[%s432 + $0x4c] sm:$0xf]
      %v453 = vld [vmem:[%s432 + $0x50] sm:$0xf]
      %v454 = vld [vmem:[%s432 + $0x54] sm:$0xf]
      %v455 = vld [vmem:[%s432 + $0x58] sm:$0xf]
      %v456 = vld [vmem:[%s432 + $0x5c] sm:$0xf]
      %v457 = vld [vmem:[%s432 + $0x60] sm:$0xf]
      %v458 = vld [vmem:[%s432 + $0x64] sm:$0xf]
      %v459 = vld [vmem:[%s432 + $0x68] sm:$0xf]
      %v460 = vld [vmem:[%s432 + $0x6c] sm:$0xf]
      %v461 = vld [vmem:[%s432 + $0x70] sm:$0xf]
      %v462 = vld [vmem:[%s432 + $0x74] sm:$0xf]
      %v463 = vld [vmem:[%s432 + $0x78] sm:$0xf]
      %v464 = vld [vmem:[%s432 + $0x7c] sm:$0xf]
      %v465 = vld [vmem:[%s432 + $0x80] sm:$0xf]
      %v466 = vld [vmem:[%s432 + $0x84] sm:$0xf]
      %v467 = vld [vmem:[%s432 + $0x88] sm:$0xf]
      %v468 = vld [vmem:[%s432 + $0x8c] sm:$0xf]
      %v469 = vld [vmem:[%s432 + $0x90] sm:$0xf]
      %v470 = vld [vmem:[%s432 + $0x94] sm:$0xf]
      %v471 = vld [vmem:[%s432 + $0x98] sm:$0xf]
      %v472 = vld [vmem:[%s432 + $0x9c] sm:$0xf]
      %v473 = vld [vmem:[%s432 + $0xa0] sm:$0xf]
      %v474 = vld [vmem:[%s432 + $0xa4] sm:$0xf]
      %v475 = vld [vmem:[%s432 + $0xa8] sm:$0xf]
      %v476 = vld [vmem:[%s432 + $0xac] sm:$0xf]
      %v477 = vld [vmem:[%s432 + $0xb0] sm:$0xf]
      %v478 = vld [vmem:[%s432 + $0xb4] sm:$0xf]
      %v479 = vld [vmem:[%s432 + $0xb8] sm:$0xf]
      %v480 = vld [vmem:[%s432 + $0xbc] sm:$0xf]
      %v481 = vld [vmem:[%s432 + $0xc0] sm:$0xf]
      %v482 = vld [vmem:[%s432 + $0xc4] sm:$0xf]
      %v483 = vld [vmem:[%s432 + $0xc8] sm:$0xf]
      %v484 = vld [vmem:[%s432 + $0xcc] sm:$0xf]
      %v485 = vld [vmem:[%s432 + $0xd0] sm:$0xf]
      %v486 = vld [vmem:[%s432 + $0xd4] sm:$0xf]
      %v487 = vld [vmem:[%s432 + $0xd8] sm:$0xf]
      %v488 = vld [vmem:[%s432 + $0xdc] sm:$0xf]
      %v489 = vld [vmem:[%s432 + $0xe0] sm:$0xf]
      %v490 = vld [vmem:[%s432 + $0xe4] sm:$0xf]
      %v491 = vld [vmem:[%s432 + $0xe8] sm:$0xf]
      %v492 = vld [vmem:[%s432 + $0xec] sm:$0xf]
      %v493 = vld [vmem:[%s432 + $0xf0] sm:$0xf]
      %v494 = vld [vmem:[%s432 + $0xf4] sm:$0xf]
      %v495 = vld [vmem:[%s432 + $0xf8] sm:$0xf]
      %v496 = vld [vmem:[%s432 + $0xfc] sm:$0xf]
      %v497 = vld [vmem:[%s312] sm:$0xff]
      %v498 = vld [vmem:[%s312 + $0x8] sm:$0xff]
      %v499 = vld [vmem:[%s312 + $0x10] sm:$0xff]
      %v500 = vld [vmem:[%s312 + $0x18] sm:$0xff]
      %v501 = vld [vmem:[%s312 + $0x20] sm:$0xff]
      %v502 = vld [vmem:[%s312 + $0x28] sm:$0xff]
      %v503 = vld [vmem:[%s312 + $0x30] sm:$0xff]
      %v504 = vld [vmem:[%s312 + $0x38] sm:$0xff]
      %v505 = vld [vmem:[%s312 + $0x40] sm:$0xff]
      %v506 = vld [vmem:[%s312 + $0x48] sm:$0xff]
      %v507 = vld [vmem:[%s312 + $0x50] sm:$0xff]
      %v508 = vld [vmem:[%s312 + $0x58] sm:$0xff]
      %v509 = vld [vmem:[%s312 + $0x60] sm:$0xff]
      %v510 = vld [vmem:[%s312 + $0x68] sm:$0xff]
      %v511 = vld [vmem:[%s312 + $0x70] sm:$0xff]
      %v512 = vld [vmem:[%s312 + $0x78] sm:$0xff]
      %v513 = vld [vmem:[%s312 + $0x80] sm:$0xff]
      %v514 = vld [vmem:[%s312 + $0x88] sm:$0xff]
      %v515 = vld [vmem:[%s312 + $0x90] sm:$0xff]
      %v516 = vld [vmem:[%s312 + $0x98] sm:$0xff]
      %v517 = vld [vmem:[%s312 + $0xa0] sm:$0xff]
      %v518 = vld [vmem:[%s312 + $0xa8] sm:$0xff]
      %v519 = vld [vmem:[%s312 + $0xb0] sm:$0xff]
      %v520 = vld [vmem:[%s312 + $0xb8] sm:$0xff]
      %v521 = vld [vmem:[%s312 + $0xc0] sm:$0xff]
      %v522 = vld [vmem:[%s312 + $0xc8] sm:$0xff]
      %v523 = vld [vmem:[%s312 + $0xd0] sm:$0xff]
      %v524 = vld [vmem:[%s312 + $0xd8] sm:$0xff]
      %v525 = vld [vmem:[%s312 + $0xe0] sm:$0xff]
      %v526 = vld [vmem:[%s312 + $0xe8] sm:$0xff]
      %v527 = vld [vmem:[%s312 + $0xf0] sm:$0xff]
      %v528 = vld [vmem:[%s312 + $0xf8] sm:$0xff]
      %v529 = vld [vmem:[%s312 + $0x100] sm:$0xff]
      %v530 = vld [vmem:[%s312 + $0x108] sm:$0xff]
      %v531 = vld [vmem:[%s312 + $0x110] sm:$0xff]
      %v532 = vld [vmem:[%s312 + $0x118] sm:$0xff]
      %v533 = vld [vmem:[%s312 + $0x120] sm:$0xff]
      %v534 = vld [vmem:[%s312 + $0x128] sm:$0xff]
      %v535 = vld [vmem:[%s312 + $0x130] sm:$0xff]
      %v536 = vld [vmem:[%s312 + $0x138] sm:$0xff]
      %v537 = vld [vmem:[%s312 + $0x140] sm:$0xff]
      %v538 = vld [vmem:[%s312 + $0x148] sm:$0xff]
      %v539 = vld [vmem:[%s312 + $0x150] sm:$0xff]
      %v540 = vld [vmem:[%s312 + $0x158] sm:$0xff]
      %v541 = vld [vmem:[%s312 + $0x160] sm:$0xff]
      %v542 = vld [vmem:[%s312 + $0x168] sm:$0xff]
      %v543 = vld [vmem:[%s312 + $0x170] sm:$0xff]
      %v544 = vld [vmem:[%s312 + $0x178] sm:$0xff]
      %v545 = vld [vmem:[%s312 + $0x180] sm:$0xff]
      %v546 = vld [vmem:[%s312 + $0x188] sm:$0xff]
      %v547 = vld [vmem:[%s312 + $0x190] sm:$0xff]
      %v548 = vld [vmem:[%s312 + $0x198] sm:$0xff]
      %v549 = vld [vmem:[%s312 + $0x1a0] sm:$0xff]
      %v550 = vld [vmem:[%s312 + $0x1a8] sm:$0xff]
      %v551 = vld [vmem:[%s312 + $0x1b0] sm:$0xff]
      %v552 = vld [vmem:[%s312 + $0x1b8] sm:$0xff]
      %v553 = vld [vmem:[%s312 + $0x1c0] sm:$0xff]
      %v554 = vld [vmem:[%s312 + $0x1c8] sm:$0xff]
      %v555 = vld [vmem:[%s312 + $0x1d0] sm:$0xff]
      %v556 = vld [vmem:[%s312 + $0x1d8] sm:$0xff]
      %v557 = vld [vmem:[%s312 + $0x1e0] sm:$0xff]
      %v558 = vld [vmem:[%s312 + $0x1e8] sm:$0xff]
      %v559 = vld [vmem:[%s312 + $0x1f0] sm:$0xff]
      %v560 = vld [vmem:[%s312 + $0x1f8] sm:$0xff]
      %v561 = vld [vmem:[#allocation2] sm:$0xff]
      %v562 = vld [vmem:[#allocation2 + $0x8] sm:$0xff]
      %v563 = vld [vmem:[#allocation2 + $0x10] sm:$0xff]
      %v564 = vld [vmem:[#allocation2 + $0x18] sm:$0xff]
      %v565 = vld [vmem:[#allocation2 + $0x20] sm:$0xff]
      %v566 = vld [vmem:[#allocation2 + $0x28] sm:$0xff]
      %v567 = vld [vmem:[#allocation2 + $0x30] sm:$0xff]
      %v568 = vld [vmem:[#allocation2 + $0x38] sm:$0xff]
      %v569 = vld [vmem:[#allocation2 + $0x40] sm:$0xff]
      %v570 = vld [vmem:[#allocation2 + $0x48] sm:$0xff]
      %v571 = vld [vmem:[#allocation2 + $0x50] sm:$0xff]
      %v572 = vld [vmem:[#allocation2 + $0x58] sm:$0xff]
      %v573 = vld [vmem:[#allocation2 + $0x60] sm:$0xff]
      %v574 = vld [vmem:[#allocation2 + $0x68] sm:$0xff]
      %v575 = vld [vmem:[#allocation2 + $0x70] sm:$0xff]
      %v576 = vld [vmem:[#allocation2 + $0x78] sm:$0xff]
      %v577 = vld [vmem:[#allocation2 + $0x80] sm:$0xff]
      %v578 = vld [vmem:[#allocation2 + $0x88] sm:$0xff]
      %v579 = vld [vmem:[#allocation2 + $0x90] sm:$0xff]
      %v580 = vld [vmem:[#allocation2 + $0x98] sm:$0xff]
      %v581 = vld [vmem:[#allocation2 + $0xa0] sm:$0xff]
      %v582 = vld [vmem:[#allocation2 + $0xa8] sm:$0xff]
      %v583 = vld [vmem:[#allocation2 + $0xb0] sm:$0xff]
      %v584 = vld [vmem:[#allocation2 + $0xb8] sm:$0xff]
      %v585 = vld [vmem:[#allocation2 + $0xc0] sm:$0xff]
      %v586 = vld [vmem:[#allocation2 + $0xc8] sm:$0xff]
      %v587 = vld [vmem:[#allocation2 + $0xd0] sm:$0xff]
      %v588 = vld [vmem:[#allocation2 + $0xd8] sm:$0xff]
      %v589 = vld [vmem:[#allocation2 + $0xe0] sm:$0xff]
      %v590 = vld [vmem:[#allocation2 + $0xe8] sm:$0xff]
      %v591 = vld [vmem:[#allocation2 + $0xf0] sm:$0xff]
      %v592 = vld [vmem:[#allocation2 + $0xf8] sm:$0xff]
      %v657 = vunpack.c.l.b16 %v497
      %v658 = vunpack.c.h.b16 %v497
      %v659 = vunpack.c.l.b16 %v498
      %v660 = vunpack.c.h.b16 %v498
      %v661 = vunpack.c.l.b16 %v499
      %v662 = vunpack.c.h.b16 %v499
      %v663 = vunpack.c.l.b16 %v500
      %v664 = vunpack.c.h.b16 %v500
      %v665 = vunpack.c.l.b16 %v501
      %v666 = vunpack.c.h.b16 %v501
      %v667 = vunpack.c.l.b16 %v502
      %v668 = vunpack.c.h.b16 %v502
      %v669 = vunpack.c.l.b16 %v503
      %v670 = vunpack.c.h.b16 %v503
      %v671 = vunpack.c.l.b16 %v504
      %v672 = vunpack.c.h.b16 %v504
      %v673 = vunpack.c.l.b16 %v505
      %v674 = vunpack.c.h.b16 %v505
      %v675 = vunpack.c.l.b16 %v506
      %v676 = vunpack.c.h.b16 %v506
      %v677 = vunpack.c.l.b16 %v507
      %v678 = vunpack.c.h.b16 %v507
      %v679 = vunpack.c.l.b16 %v508
      %v680 = vunpack.c.h.b16 %v508
      %v681 = vunpack.c.l.b16 %v509
      %v682 = vunpack.c.h.b16 %v509
      %v683 = vunpack.c.l.b16 %v510
      %v684 = vunpack.c.h.b16 %v510
      %v685 = vunpack.c.l.b16 %v511
      %v686 = vunpack.c.h.b16 %v511
      %v687 = vunpack.c.l.b16 %v512
      %v688 = vunpack.c.h.b16 %v512
      %v689 = vunpack.c.l.b16 %v513
      %v690 = vunpack.c.h.b16 %v513
      %v691 = vunpack.c.l.b16 %v514
      %v692 = vunpack.c.h.b16 %v514
      %v693 = vunpack.c.l.b16 %v515
      %v694 = vunpack.c.h.b16 %v515
      %v695 = vunpack.c.l.b16 %v516
      %v696 = vunpack.c.h.b16 %v516
      %v697 = vunpack.c.l.b16 %v517
      %v698 = vunpack.c.h.b16 %v517
      %v699 = vunpack.c.l.b16 %v518
      %v700 = vunpack.c.h.b16 %v518
      %v701 = vunpack.c.l.b16 %v519
      %v702 = vunpack.c.h.b16 %v519
      %v703 = vunpack.c.l.b16 %v520
      %v704 = vunpack.c.h.b16 %v520
      %v705 = vunpack.c.l.b16 %v521
      %v706 = vunpack.c.h.b16 %v521
      %v707 = vunpack.c.l.b16 %v522
      %v708 = vunpack.c.h.b16 %v522
      %v709 = vunpack.c.l.b16 %v523
      %v710 = vunpack.c.h.b16 %v523
      %v711 = vunpack.c.l.b16 %v524
      %v712 = vunpack.c.h.b16 %v524
      %v713 = vunpack.c.l.b16 %v525
      %v714 = vunpack.c.h.b16 %v525
      %v715 = vunpack.c.l.b16 %v526
      %v716 = vunpack.c.h.b16 %v526
      %v717 = vunpack.c.l.b16 %v527
      %v718 = vunpack.c.h.b16 %v527
      %v719 = vunpack.c.l.b16 %v528
      %v720 = vunpack.c.h.b16 %v528
      %v721 = vunpack.c.l.b16 %v529
      %v722 = vunpack.c.h.b16 %v529
      %v723 = vunpack.c.l.b16 %v530
      %v724 = vunpack.c.h.b16 %v530
      %v725 = vunpack.c.l.b16 %v531
      %v726 = vunpack.c.h.b16 %v531
      %v727 = vunpack.c.l.b16 %v532
      %v728 = vunpack.c.h.b16 %v532
      %v729 = vunpack.c.l.b16 %v533
      %v730 = vunpack.c.h.b16 %v533
      %v731 = vunpack.c.l.b16 %v534
      %v732 = vunpack.c.h.b16 %v534
      %v733 = vunpack.c.l.b16 %v535
      %v734 = vunpack.c.h.b16 %v535
      %v735 = vunpack.c.l.b16 %v536
      %v736 = vunpack.c.h.b16 %v536
      %v737 = vunpack.c.l.b16 %v537
      %v738 = vunpack.c.h.b16 %v537
      %v739 = vunpack.c.l.b16 %v538
      %v740 = vunpack.c.h.b16 %v538
      %v741 = vunpack.c.l.b16 %v539
      %v742 = vunpack.c.h.b16 %v539
      %v743 = vunpack.c.l.b16 %v540
      %v744 = vunpack.c.h.b16 %v540
      %v745 = vunpack.c.l.b16 %v541
      %v746 = vunpack.c.h.b16 %v541
      %v747 = vunpack.c.l.b16 %v542
      %v748 = vunpack.c.h.b16 %v542
      %v749 = vunpack.c.l.b16 %v543
      %v750 = vunpack.c.h.b16 %v543
      %v751 = vunpack.c.l.b16 %v544
      %v752 = vunpack.c.h.b16 %v544
      %v753 = vunpack.c.l.b16 %v545
      %v754 = vunpack.c.h.b16 %v545
      %v755 = vunpack.c.l.b16 %v546
      %v756 = vunpack.c.h.b16 %v546
      %v757 = vunpack.c.l.b16 %v547
      %v758 = vunpack.c.h.b16 %v547
      %v759 = vunpack.c.l.b16 %v548
      %v760 = vunpack.c.h.b16 %v548
      %v761 = vunpack.c.l.b16 %v549
      %v762 = vunpack.c.h.b16 %v549
      %v763 = vunpack.c.l.b16 %v550
      %v764 = vunpack.c.h.b16 %v550
      %v765 = vunpack.c.l.b16 %v551
      %v766 = vunpack.c.h.b16 %v551
      %v767 = vunpack.c.l.b16 %v552
      %v768 = vunpack.c.h.b16 %v552
      %v769 = vunpack.c.l.b16 %v553
      %v770 = vunpack.c.h.b16 %v553
      %v771 = vunpack.c.l.b16 %v554
      %v772 = vunpack.c.h.b16 %v554
      %v773 = vunpack.c.l.b16 %v555
      %v774 = vunpack.c.h.b16 %v555
      %v775 = vunpack.c.l.b16 %v556
      %v776 = vunpack.c.h.b16 %v556
      %v777 = vunpack.c.l.b16 %v557
      %v778 = vunpack.c.h.b16 %v557
      %v779 = vunpack.c.l.b16 %v558
      %v780 = vunpack.c.h.b16 %v558
      %v781 = vunpack.c.l.b16 %v559
      %v782 = vunpack.c.h.b16 %v559
      %v783 = vunpack.c.l.b16 %v560
      %v784 = vunpack.c.h.b16 %v560
      %v785 = vpack.c.b16 %v661, %v657
      %v786 = vpack.c.b16 %v662, %v658
      %v787 = vpack.c.b16 %v663, %v659
      %v788 = vpack.c.b16 %v664, %v660
      %v789 = vpack.c.b16 %v669, %v665
      %v790 = vpack.c.b16 %v670, %v666
      %v791 = vpack.c.b16 %v671, %v667
      %v792 = vpack.c.b16 %v672, %v668
      %v793 = vpack.c.b16 %v677, %v673
      %v794 = vpack.c.b16 %v678, %v674
      %v795 = vpack.c.b16 %v679, %v675
      %v796 = vpack.c.b16 %v680, %v676
      %v797 = vpack.c.b16 %v685, %v681
      %v798 = vpack.c.b16 %v686, %v682
      %v799 = vpack.c.b16 %v687, %v683
      %v800 = vpack.c.b16 %v688, %v684
      %v801 = vpack.c.b16 %v693, %v689
      %v802 = vpack.c.b16 %v694, %v690
      %v803 = vpack.c.b16 %v695, %v691
      %v804 = vpack.c.b16 %v696, %v692
      %v805 = vpack.c.b16 %v701, %v697
      %v806 = vpack.c.b16 %v702, %v698
      %v807 = vpack.c.b16 %v703, %v699
      %v808 = vpack.c.b16 %v704, %v700
      %v809 = vpack.c.b16 %v709, %v705
      %v810 = vpack.c.b16 %v710, %v706
      %v811 = vpack.c.b16 %v711, %v707
      %v812 = vpack.c.b16 %v712, %v708
      %v813 = vpack.c.b16 %v717, %v713
      %v814 = vpack.c.b16 %v718, %v714
      %v815 = vpack.c.b16 %v719, %v715
      %v816 = vpack.c.b16 %v720, %v716
      %v817 = vpack.c.b16 %v725, %v721
      %v818 = vpack.c.b16 %v726, %v722
      %v819 = vpack.c.b16 %v727, %v723
      %v820 = vpack.c.b16 %v728, %v724
      %v821 = vpack.c.b16 %v733, %v729
      %v822 = vpack.c.b16 %v734, %v730
      %v823 = vpack.c.b16 %v735, %v731
      %v824 = vpack.c.b16 %v736, %v732
      %v825 = vpack.c.b16 %v741, %v737
      %v826 = vpack.c.b16 %v742, %v738
      %v827 = vpack.c.b16 %v743, %v739
      %v828 = vpack.c.b16 %v744, %v740
      %v829 = vpack.c.b16 %v749, %v745
      %v830 = vpack.c.b16 %v750, %v746
      %v831 = vpack.c.b16 %v751, %v747
      %v832 = vpack.c.b16 %v752, %v748
      %v833 = vpack.c.b16 %v757, %v753
      %v834 = vpack.c.b16 %v758, %v754
      %v835 = vpack.c.b16 %v759, %v755
      %v836 = vpack.c.b16 %v760, %v756
      %v837 = vpack.c.b16 %v765, %v761
      %v838 = vpack.c.b16 %v766, %v762
      %v839 = vpack.c.b16 %v767, %v763
      %v840 = vpack.c.b16 %v768, %v764
      %v841 = vpack.c.b16 %v773, %v769
      %v842 = vpack.c.b16 %v774, %v770
      %v843 = vpack.c.b16 %v775, %v771
      %v844 = vpack.c.b16 %v776, %v772
      %v845 = vpack.c.b16 %v781, %v777
      %v846 = vpack.c.b16 %v782, %v778
      %v847 = vpack.c.b16 %v783, %v779
      %v848 = vpack.c.b16 %v784, %v780
      %v977 = vunpack.c.l.b16 %v433
      %v978 = vunpack.c.l.b16 %v434
      %v979 = vunpack.c.l.b16 %v435
      %v980 = vunpack.c.l.b16 %v436
      %v981 = vunpack.c.l.b16 %v437
      %v982 = vunpack.c.l.b16 %v438
      %v983 = vunpack.c.l.b16 %v439
      %v984 = vunpack.c.l.b16 %v440
      %v985 = vunpack.c.l.b16 %v441
      %v986 = vunpack.c.l.b16 %v442
      %v987 = vunpack.c.l.b16 %v443
      %v988 = vunpack.c.l.b16 %v444
      %v989 = vunpack.c.l.b16 %v445
      %v990 = vunpack.c.l.b16 %v446
      %v991 = vunpack.c.l.b16 %v447
      %v992 = vunpack.c.l.b16 %v448
      %v993 = vunpack.c.l.b16 %v449
      %v994 = vunpack.c.l.b16 %v450
      %v995 = vunpack.c.l.b16 %v451
      %v996 = vunpack.c.l.b16 %v452
      %v997 = vunpack.c.l.b16 %v453
      %v998 = vunpack.c.l.b16 %v454
      %v999 = vunpack.c.l.b16 %v455
      %v1000 = vunpack.c.l.b16 %v456
      %v1001 = vunpack.c.l.b16 %v457
      %v1002 = vunpack.c.l.b16 %v458
      %v1003 = vunpack.c.l.b16 %v459
      %v1004 = vunpack.c.l.b16 %v460
      %v1005 = vunpack.c.l.b16 %v461
      %v1006 = vunpack.c.l.b16 %v462
      %v1007 = vunpack.c.l.b16 %v463
      %v1008 = vunpack.c.l.b16 %v464
      %v1009 = vunpack.c.l.b16 %v465
      %v1010 = vunpack.c.l.b16 %v466
      %v1011 = vunpack.c.l.b16 %v467
      %v1012 = vunpack.c.l.b16 %v468
      %v1013 = vunpack.c.l.b16 %v469
      %v1014 = vunpack.c.l.b16 %v470
      %v1015 = vunpack.c.l.b16 %v471
      %v1016 = vunpack.c.l.b16 %v472
      %v1017 = vunpack.c.l.b16 %v473
      %v1018 = vunpack.c.l.b16 %v474
      %v1019 = vunpack.c.l.b16 %v475
      %v1020 = vunpack.c.l.b16 %v476
      %v1021 = vunpack.c.l.b16 %v477
      %v1022 = vunpack.c.l.b16 %v478
      %v1023 = vunpack.c.l.b16 %v479
      %v1024 = vunpack.c.l.b16 %v480
      %v1025 = vunpack.c.l.b16 %v481
      %v1026 = vunpack.c.l.b16 %v482
      %v1027 = vunpack.c.l.b16 %v483
      %v1028 = vunpack.c.l.b16 %v484
      %v1029 = vunpack.c.l.b16 %v485
      %v1030 = vunpack.c.l.b16 %v486
      %v1031 = vunpack.c.l.b16 %v487
      %v1032 = vunpack.c.l.b16 %v488
      %v1033 = vunpack.c.l.b16 %v489
      %v1034 = vunpack.c.l.b16 %v490
      %v1035 = vunpack.c.l.b16 %v491
      %v1036 = vunpack.c.l.b16 %v492
      %v1037 = vunpack.c.l.b16 %v493
      %v1038 = vunpack.c.l.b16 %v494
      %v1039 = vunpack.c.l.b16 %v495
      %v1040 = vunpack.c.l.b16 %v496
      %v1041 = vpack.c.b16 %v978, %v977
      %v1042 = vpack.c.b16 %v980, %v979
      %v1043 = vpack.c.b16 %v982, %v981
      %v1044 = vpack.c.b16 %v984, %v983
      %v1045 = vpack.c.b16 %v986, %v985
      %v1046 = vpack.c.b16 %v988, %v987
      %v1047 = vpack.c.b16 %v990, %v989
      %v1048 = vpack.c.b16 %v992, %v991
      %v1049 = vpack.c.b16 %v994, %v993
      %v1050 = vpack.c.b16 %v996, %v995
      %v1051 = vpack.c.b16 %v998, %v997
      %v1052 = vpack.c.b16 %v1000, %v999
      %v1053 = vpack.c.b16 %v1002, %v1001
      %v1054 = vpack.c.b16 %v1004, %v1003
      %v1055 = vpack.c.b16 %v1006, %v1005
      %v1056 = vpack.c.b16 %v1008, %v1007
      %v1057 = vpack.c.b16 %v1010, %v1009
      %v1058 = vpack.c.b16 %v1012, %v1011
      %v1059 = vpack.c.b16 %v1014, %v1013
      %v1060 = vpack.c.b16 %v1016, %v1015
      %v1061 = vpack.c.b16 %v1018, %v1017
      %v1062 = vpack.c.b16 %v1020, %v1019
      %v1063 = vpack.c.b16 %v1022, %v1021
      %v1064 = vpack.c.b16 %v1024, %v1023
      %v1065 = vpack.c.b16 %v1026, %v1025
      %v1066 = vpack.c.b16 %v1028, %v1027
      %v1067 = vpack.c.b16 %v1030, %v1029
      %v1068 = vpack.c.b16 %v1032, %v1031
      %v1069 = vpack.c.b16 %v1034, %v1033
      %v1070 = vpack.c.b16 %v1036, %v1035
      %v1071 = vpack.c.b16 %v1038, %v1037
      %v1072 = vpack.c.b16 %v1040, %v1039
      %1105 = vmatprep.subr.bf16.mxu0 0
      %1106 = vmatpush1.bf16.msra.mxu0 %v1041
      %1107 = vmatprep.subr.bf16.mxu0 0
      %1108 = vmatpush1.bf16.msra.mxu0 %v1042
      %1109 = vmatprep.subr.bf16.mxu0 0
      %1110 = vmatpush1.bf16.msra.mxu0 %v1043
      %1111 = vmatprep.subr.bf16.mxu0 0
      %1112 = vmatpush1.bf16.msra.mxu0 %v1044
      %1113 = vmatprep.subr.bf16.mxu0 0
      %1114 = vmatpush1.bf16.msra.mxu0 %v1045
      %1115 = vmatprep.subr.bf16.mxu0 0
      %1116 = vmatpush1.bf16.msra.mxu0 %v1046
      %1117 = vmatprep.subr.bf16.mxu0 0
      %1118 = vmatpush1.bf16.msra.mxu0 %v1047
      %1119 = vmatprep.subr.bf16.mxu0 0
      %1120 = vmatpush1.bf16.msra.mxu0 %v1048
      %1121 = vmatprep.subr.bf16.mxu0 0
      %1122 = vmatpush1.bf16.msra.mxu0 %v1049
      %1123 = vmatprep.subr.bf16.mxu0 0
      %1124 = vmatpush1.bf16.msra.mxu0 %v1050
      %1125 = vmatprep.subr.bf16.mxu0 0
      %1126 = vmatpush1.bf16.msra.mxu0 %v1051
      %1127 = vmatprep.subr.bf16.mxu0 0
      %1128 = vmatpush1.bf16.msra.mxu0 %v1052
      %1129 = vmatprep.subr.bf16.mxu0 0
      %1130 = vmatpush1.bf16.msra.mxu0 %v1053
      %1131 = vmatprep.subr.bf16.mxu0 0
      %1132 = vmatpush1.bf16.msra.mxu0 %v1054
      %1133 = vmatprep.subr.bf16.mxu0 0
      %1134 = vmatpush1.bf16.msra.mxu0 %v1055
      %1135 = vmatprep.subr.bf16.mxu0 0
      %1136 = vmatpush1.bf16.msra.mxu0 %v1056
      %1137 = vmatprep.mubr.bf16.mxu0 %v786
      %1138 = vmatmul.mubr.bf16.gmra.mrb[0].mxu0 %v785
      %v1139 = vpop.f32.mrb[0].mxu0
      %v1140 = vadd.f32 0.0, %v1139
      %v1141 = vpop.f32.mrb[0].mxu0
      %v1142 = vpop.f32.mrb[0].mxu0
      %v1143 = vadd.f32 0.0, %v1142
      %v1144 = vpop.f32.mrb[0].mxu0
      %1145 = vmatprep.mubr.bf16.mxu0 %v790
      %1146 = vmatmul.mubr.bf16.gmra.mrb[0].mxu0 %v789
      %v1147 = vpop.f32.mrb[0].mxu0
      %v1148 = vadd.f32 0.0, %v1147
      %v1149 = vpop.f32.mrb[0].mxu0
      %v1150 = vpop.f32.mrb[0].mxu0
      %v1151 = vadd.f32 0.0, %v1150
      %v1152 = vpop.f32.mrb[0].mxu0
      %1153 = vmatprep.mubr.bf16.mxu0 %v794
      %1154 = vmatmul.mubr.bf16.gmra.mrb[0].mxu0 %v793
      %v1155 = vpop.f32.mrb[0].mxu0
      %v1156 = vadd.f32 0.0, %v1155
      %v1157 = vpop.f32.mrb[0].mxu0
      %v1158 = vpop.f32.mrb[0].mxu0
      %v1159 = vadd.f32 0.0, %v1158
      %v1160 = vpop.f32.mrb[0].mxu0
      %1161 = vmatprep.mubr.bf16.mxu0 %v798
      %1162 = vmatmul.mubr.bf16.gmra.mrb[0].mxu0 %v797
      %v1163 = vpop.f32.mrb[0].mxu0
      %v1164 = vadd.f32 0.0, %v1163
      %v1165 = vpop.f32.mrb[0].mxu0
      %v1166 = vpop.f32.mrb[0].mxu0
      %v1167 = vadd.f32 0.0, %v1166
      %v1168 = vpop.f32.mrb[0].mxu0
      %1169 = vmatprep.mubr.bf16.mxu0 %v802
      %1170 = vmatmul.mubr.bf16.gmra.mrb[0].mxu0 %v801
      %v1171 = vpop.f32.mrb[0].mxu0
      %v1172 = vadd.f32 0.0, %v1171
      %v1173 = vpop.f32.mrb[0].mxu0
      %v1174 = vpop.f32.mrb[0].mxu0
      %v1175 = vadd.f32 0.0, %v1174
      %v1176 = vpop.f32.mrb[0].mxu0
      %1177 = vmatprep.mubr.bf16.mxu0 %v806
      %1178 = vmatmul.mubr.bf16.gmra.mrb[0].mxu0 %v805
      %v1179 = vpop.f32.mrb[0].mxu0
      %v1180 = vadd.f32 0.0, %v1179
      %v1181 = vpop.f32.mrb[0].mxu0
      %v1182 = vpop.f32.mrb[0].mxu0
      %v1183 = vadd.f32 0.0, %v1182
      %v1184 = vpop.f32.mrb[0].mxu0
      %1185 = vmatprep.mubr.bf16.mxu0 %v810
      %1186 = vmatmul.mubr.bf16.gmra.mrb[0].mxu0 %v809
      %v1187 = vpop.f32.mrb[0].mxu0
      %v1188 = vadd.f32 0.0, %v1187
      %v1189 = vpop.f32.mrb[0].mxu0
      %v1190 = vpop.f32.mrb[0].mxu0
      %v1191 = vadd.f32 0.0, %v1190
      %v1192 = vpop.f32.mrb[0].mxu0
      %1193 = vmatprep.mubr.bf16.mxu0 %v814
      %1194 = vmatmul.mubr.bf16.gmra.mrb[0].mxu0 %v813
      %v1195 = vpop.f32.mrb[0].mxu0
      %v1196 = vadd.f32 0.0, %v1195
      %v1197 = vpop.f32.mrb[0].mxu0
      %v1198 = vpop.f32.mrb[0].mxu0
      %v1199 = vadd.f32 0.0, %v1198
      %v1200 = vpop.f32.mrb[0].mxu0
      %1201 = vmatprep.mubr.bf16.mxu0 %v818
      %1202 = vmatmul.mubr.bf16.gmra.mrb[0].mxu0 %v817
      %v1203 = vpop.f32.mrb[0].mxu0
      %v1204 = vadd.f32 0.0, %v1203
      %v1205 = vpop.f32.mrb[0].mxu0
      %v1206 = vpop.f32.mrb[0].mxu0
      %v1207 = vadd.f32 0.0, %v1206
      %v1208 = vpop.f32.mrb[0].mxu0
      %1209 = vmatprep.mubr.bf16.mxu0 %v822
      %1210 = vmatmul.mubr.bf16.gmra.mrb[0].mxu0 %v821
      %v1211 = vpop.f32.mrb[0].mxu0
      %v1212 = vadd.f32 0.0, %v1211
      %v1213 = vpop.f32.mrb[0].mxu0
      %v1214 = vpop.f32.mrb[0].mxu0
      %v1215 = vadd.f32 0.0, %v1214
      %v1216 = vpop.f32.mrb[0].mxu0
      %1217 = vmatprep.mubr.bf16.mxu0 %v826
      %1218 = vmatmul.mubr.bf16.gmra.mrb[0].mxu0 %v825
      %v1219 = vpop.f32.mrb[0].mxu0
      %v1220 = vadd.f32 0.0, %v1219
      %v1221 = vpop.f32.mrb[0].mxu0
      %v1222 = vpop.f32.mrb[0].mxu0
      %v1223 = vadd.f32 0.0, %v1222
      %v1224 = vpop.f32.mrb[0].mxu0
      %1225 = vmatprep.mubr.bf16.mxu0 %v830
      %1226 = vmatmul.mubr.bf16.gmra.mrb[0].mxu0 %v829
      %v1227 = vpop.f32.mrb[0].mxu0
      %v1228 = vadd.f32 0.0, %v1227
      %v1229 = vpop.f32.mrb[0].mxu0
      %v1230 = vpop.f32.mrb[0].mxu0
      %v1231 = vadd.f32 0.0, %v1230
      %v1232 = vpop.f32.mrb[0].mxu0
      %1233 = vmatprep.mubr.bf16.mxu0 %v834
      %1234 = vmatmul.mubr.bf16.gmra.mrb[0].mxu0 %v833
      %v1235 = vpop.f32.mrb[0].mxu0
      %v1236 = vadd.f32 0.0, %v1235
      %v1237 = vpop.f32.mrb[0].mxu0
      %v1238 = vpop.f32.mrb[0].mxu0
      %v1239 = vadd.f32 0.0, %v1238
      %v1240 = vpop.f32.mrb[0].mxu0
      %1241 = vmatprep.mubr.bf16.mxu0 %v838
      %1242 = vmatmul.mubr.bf16.gmra.mrb[0].mxu0 %v837
      %v1243 = vpop.f32.mrb[0].mxu0
      %v1244 = vadd.f32 0.0, %v1243
      %v1245 = vpop.f32.mrb[0].mxu0
      %v1246 = vpop.f32.mrb[0].mxu0
      %v1247 = vadd.f32 0.0, %v1246
      %v1248 = vpop.f32.mrb[0].mxu0
      %1249 = vmatprep.mubr.bf16.mxu0 %v842
      %1250 = vmatmul.mubr.bf16.gmra.mrb[0].mxu0 %v841
      %v1251 = vpop.f32.mrb[0].mxu0
      %v1252 = vadd.f32 0.0, %v1251
      %v1253 = vpop.f32.mrb[0].mxu0
      %v1254 = vpop.f32.mrb[0].mxu0
      %v1255 = vadd.f32 0.0, %v1254
      %v1256 = vpop.f32.mrb[0].mxu0
      %1257 = vmatprep.mubr.bf16.mxu0 %v846
      %1258 = vmatmul.mubr.bf16.gmra.mrb[0].mxu0 %v845
      %v1259 = vpop.f32.mrb[0].mxu0
      %v1260 = vadd.f32 0.0, %v1259
      %v1261 = vpop.f32.mrb[0].mxu0
      %v1262 = vpop.f32.mrb[0].mxu0
      %v1263 = vadd.f32 0.0, %v1262
      %v1264 = vpop.f32.mrb[0].mxu0
      %1265 = vdwg.mxu0
      %1266 = vmatprep.subr.bf16.mxu0 0
      %1267 = vmatpush1.bf16.msra.mxu0 %v1057
      %1268 = vmatprep.subr.bf16.mxu0 0
      %1269 = vmatpush1.bf16.msra.mxu0 %v1058
      %1270 = vmatprep.subr.bf16.mxu0 0
      %1271 = vmatpush1.bf16.msra.mxu0 %v1059
      %1272 = vmatprep.subr.bf16.mxu0 0
      %1273 = vmatpush1.bf16.msra.mxu0 %v1060
      %1274 = vmatprep.subr.bf16.mxu0 0
      %1275 = vmatpush1.bf16.msra.mxu0 %v1061
      %1276 = vmatprep.subr.bf16.mxu0 0
      %1277 = vmatpush1.bf16.msra.mxu0 %v1062
      %1278 = vmatprep.subr.bf16.mxu0 0
      %1279 = vmatpush1.bf16.msra.mxu0 %v1063
      %1280 = vmatprep.subr.bf16.mxu0 0
      %1281 = vmatpush1.bf16.msra.mxu0 %v1064
      %1282 = vmatprep.subr.bf16.mxu0 0
      %1283 = vmatpush1.bf16.msra.mxu0 %v1065
      %1284 = vmatprep.subr.bf16.mxu0 0
      %1285 = vmatpush1.bf16.msra.mxu0 %v1066
      %1286 = vmatprep.subr.bf16.mxu0 0
      %1287 = vmatpush1.bf16.msra.mxu0 %v1067
      %1288 = vmatprep.subr.bf16.mxu0 0
      %1289 = vmatpush1.bf16.msra.mxu0 %v1068
      %1290 = vmatprep.subr.bf16.mxu0 0
      %1291 = vmatpush1.bf16.msra.mxu0 %v1069
      %1292 = vmatprep.subr.bf16.mxu0 0
      %1293 = vmatpush1.bf16.msra.mxu0 %v1070
      %1294 = vmatprep.subr.bf16.mxu0 0
      %1295 = vmatpush1.bf16.msra.mxu0 %v1071
      %1296 = vmatprep.subr.bf16.mxu0 0
      %1297 = vmatpush1.bf16.msra.mxu0 %v1072
      %1298 = vmatprep.mubr.bf16.mxu0 %v788
      %1299 = vmatmul.mubr.bf16.gmra.mrb[0].mxu0 %v787
      %v1300 = vpop.f32.mrb[0].mxu0
      %v1301 = vadd.f32 %v1140, %v1300
      %v1302 = vpop.f32.mrb[0].mxu0
      %v1303 = vpop.f32.mrb[0].mxu0
      %v1304 = vadd.f32 %v1143, %v1303
      %v1305 = vpop.f32.mrb[0].mxu0
      %1306 = vmatprep.mubr.bf16.mxu0 %v792
      %1307 = vmatmul.mubr.bf16.gmra.mrb[0].mxu0 %v791
      %v1308 = vpop.f32.mrb[0].mxu0
      %v1309 = vadd.f32 %v1148, %v1308
      %v1310 = vpop.f32.mrb[0].mxu0
      %v1311 = vpop.f32.mrb[0].mxu0
      %v1312 = vadd.f32 %v1151, %v1311
      %v1313 = vpop.f32.mrb[0].mxu0
      %1314 = vmatprep.mubr.bf16.mxu0 %v796
      %1315 = vmatmul.mubr.bf16.gmra.mrb[0].mxu0 %v795
      %v1316 = vpop.f32.mrb[0].mxu0
      %v1317 = vadd.f32 %v1156, %v1316
      %v1318 = vpop.f32.mrb[0].mxu0
      %v1319 = vpop.f32.mrb[0].mxu0
      %v1320 = vadd.f32 %v1159, %v1319
      %v1321 = vpop.f32.mrb[0].mxu0
      %1322 = vmatprep.mubr.bf16.mxu0 %v800
      %1323 = vmatmul.mubr.bf16.gmra.mrb[0].mxu0 %v799
      %v1324 = vpop.f32.mrb[0].mxu0
      %v1325 = vadd.f32 %v1164, %v1324
      %v1326 = vpop.f32.mrb[0].mxu0
      %v1327 = vpop.f32.mrb[0].mxu0
      %v1328 = vadd.f32 %v1167, %v1327
      %v1329 = vpop.f32.mrb[0].mxu0
      %1330 = vmatprep.mubr.bf16.mxu0 %v804
      %1331 = vmatmul.mubr.bf16.gmra.mrb[0].mxu0 %v803
      %v1332 = vpop.f32.mrb[0].mxu0
      %v1333 = vadd.f32 %v1172, %v1332
      %v1334 = vpop.f32.mrb[0].mxu0
      %v1335 = vpop.f32.mrb[0].mxu0
      %v1336 = vadd.f32 %v1175, %v1335
      %v1337 = vpop.f32.mrb[0].mxu0
      %1338 = vmatprep.mubr.bf16.mxu0 %v808
      %1339 = vmatmul.mubr.bf16.gmra.mrb[0].mxu0 %v807
      %v1340 = vpop.f32.mrb[0].mxu0
      %v1341 = vadd.f32 %v1180, %v1340
      %v1342 = vpop.f32.mrb[0].mxu0
      %v1343 = vpop.f32.mrb[0].mxu0
      %v1344 = vadd.f32 %v1183, %v1343
      %v1345 = vpop.f32.mrb[0].mxu0
      %1346 = vmatprep.mubr.bf16.mxu0 %v812
      %1347 = vmatmul.mubr.bf16.gmra.mrb[0].mxu0 %v811
      %v1348 = vpop.f32.mrb[0].mxu0
      %v1349 = vadd.f32 %v1188, %v1348
      %v1350 = vpop.f32.mrb[0].mxu0
      %v1351 = vpop.f32.mrb[0].mxu0
      %v1352 = vadd.f32 %v1191, %v1351
      %v1353 = vpop.f32.mrb[0].mxu0
      %1354 = vmatprep.mubr.bf16.mxu0 %v816
      %1355 = vmatmul.mubr.bf16.gmra.mrb[0].mxu0 %v815
      %v1356 = vpop.f32.mrb[0].mxu0
      %v1357 = vadd.f32 %v1196, %v1356
      %v1358 = vpop.f32.mrb[0].mxu0
      %v1359 = vpop.f32.mrb[0].mxu0
      %v1360 = vadd.f32 %v1199, %v1359
      %v1361 = vpop.f32.mrb[0].mxu0
      %1362 = vmatprep.mubr.bf16.mxu0 %v820
      %1363 = vmatmul.mubr.bf16.gmra.mrb[0].mxu0 %v819
      %v1364 = vpop.f32.mrb[0].mxu0
      %v1365 = vadd.f32 %v1204, %v1364
      %v1366 = vpop.f32.mrb[0].mxu0
      %v1367 = vpop.f32.mrb[0].mxu0
      %v1368 = vadd.f32 %v1207, %v1367
      %v1369 = vpop.f32.mrb[0].mxu0
      %1370 = vmatprep.mubr.bf16.mxu0 %v824
      %1371 = vmatmul.mubr.bf16.gmra.mrb[0].mxu0 %v823
      %v1372 = vpop.f32.mrb[0].mxu0
      %v1373 = vadd.f32 %v1212, %v1372
      %v1374 = vpop.f32.mrb[0].mxu0
      %v1375 = vpop.f32.mrb[0].mxu0
      %v1376 = vadd.f32 %v1215, %v1375
      %v1377 = vpop.f32.mrb[0].mxu0
      %1378 = vmatprep.mubr.bf16.mxu0 %v828
      %1379 = vmatmul.mubr.bf16.gmra.mrb[0].mxu0 %v827
      %v1380 = vpop.f32.mrb[0].mxu0
      %v1381 = vadd.f32 %v1220, %v1380
      %v1382 = vpop.f32.mrb[0].mxu0
      %v1383 = vpop.f32.mrb[0].mxu0
      %v1384 = vadd.f32 %v1223, %v1383
      %v1385 = vpop.f32.mrb[0].mxu0
      %1386 = vmatprep.mubr.bf16.mxu0 %v832
      %1387 = vmatmul.mubr.bf16.gmra.mrb[0].mxu0 %v831
      %v1388 = vpop.f32.mrb[0].mxu0
      %v1389 = vadd.f32 %v1228, %v1388
      %v1390 = vpop.f32.mrb[0].mxu0
      %v1391 = vpop.f32.mrb[0].mxu0
      %v1392 = vadd.f32 %v1231, %v1391
      %v1393 = vpop.f32.mrb[0].mxu0
      %1394 = vmatprep.mubr.bf16.mxu0 %v836
      %1395 = vmatmul.mubr.bf16.gmra.mrb[0].mxu0 %v835
      %v1396 = vpop.f32.mrb[0].mxu0
      %v1397 = vadd.f32 %v1236, %v1396
      %v1398 = vpop.f32.mrb[0].mxu0
      %v1399 = vpop.f32.mrb[0].mxu0
      %v1400 = vadd.f32 %v1239, %v1399
      %v1401 = vpop.f32.mrb[0].mxu0
      %1402 = vmatprep.mubr.bf16.mxu0 %v840
      %1403 = vmatmul.mubr.bf16.gmra.mrb[0].mxu0 %v839
      %v1404 = vpop.f32.mrb[0].mxu0
      %v1405 = vadd.f32 %v1244, %v1404
      %v1406 = vpop.f32.mrb[0].mxu0
      %v1407 = vpop.f32.mrb[0].mxu0
      %v1408 = vadd.f32 %v1247, %v1407
      %v1409 = vpop.f32.mrb[0].mxu0
      %1410 = vmatprep.mubr.bf16.mxu0 %v844
      %1411 = vmatmul.mubr.bf16.gmra.mrb[0].mxu0 %v843
      %v1412 = vpop.f32.mrb[0].mxu0
      %v1413 = vadd.f32 %v1252, %v1412
      %v1414 = vpop.f32.mrb[0].mxu0
      %v1415 = vpop.f32.mrb[0].mxu0
      %v1416 = vadd.f32 %v1255, %v1415
      %v1417 = vpop.f32.mrb[0].mxu0
      %1418 = vmatprep.mubr.bf16.mxu0 %v848
      %1419 = vmatmul.mubr.bf16.gmra.mrb[0].mxu0 %v847
      %v1420 = vpop.f32.mrb[0].mxu0
      %v1421 = vadd.f32 %v1260, %v1420
      %v1422 = vpop.f32.mrb[0].mxu0
      %v1423 = vpop.f32.mrb[0].mxu0
      %v1424 = vadd.f32 %v1263, %v1423
      %v1425 = vpop.f32.mrb[0].mxu0
      %1426 = vdwg.mxu0
      %v1491 = vunpack.c.l.b16 %v367
      %v1492 = vunpack.c.l.b16 %v368
      %v1493 = vunpack.c.l.b16 %v369
      %v1494 = vunpack.c.l.b16 %v370
      %v1495 = vunpack.c.l.b16 %v371
      %v1496 = vunpack.c.l.b16 %v372
      %v1497 = vunpack.c.l.b16 %v373
      %v1498 = vunpack.c.l.b16 %v374
      %v1499 = vunpack.c.l.b16 %v375
      %v1500 = vunpack.c.l.b16 %v376
      %v1501 = vunpack.c.l.b16 %v377
      %v1502 = vunpack.c.l.b16 %v378
      %v1503 = vunpack.c.l.b16 %v379
      %v1504 = vunpack.c.l.b16 %v380
      %v1505 = vunpack.c.l.b16 %v381
      %v1506 = vunpack.c.l.b16 %v382
      %v1507 = vunpack.c.l.b16 %v383
      %v1508 = vunpack.c.l.b16 %v384
      %v1509 = vunpack.c.l.b16 %v385
      %v1510 = vunpack.c.l.b16 %v386
      %v1511 = vunpack.c.l.b16 %v387
      %v1512 = vunpack.c.l.b16 %v388
      %v1513 = vunpack.c.l.b16 %v389
      %v1514 = vunpack.c.l.b16 %v390
      %v1515 = vunpack.c.l.b16 %v391
      %v1516 = vunpack.c.l.b16 %v392
      %v1517 = vunpack.c.l.b16 %v393
      %v1518 = vunpack.c.l.b16 %v394
      %v1519 = vunpack.c.l.b16 %v395
      %v1520 = vunpack.c.l.b16 %v396
      %v1521 = vunpack.c.l.b16 %v397
      %v1522 = vunpack.c.l.b16 %v398
      %v1523 = vunpack.c.l.b16 %v399
      %v1524 = vunpack.c.l.b16 %v400
      %v1525 = vunpack.c.l.b16 %v401
      %v1526 = vunpack.c.l.b16 %v402
      %v1527 = vunpack.c.l.b16 %v403
      %v1528 = vunpack.c.l.b16 %v404
      %v1529 = vunpack.c.l.b16 %v405
      %v1530 = vunpack.c.l.b16 %v406
      %v1531 = vunpack.c.l.b16 %v407
      %v1532 = vunpack.c.l.b16 %v408
      %v1533 = vunpack.c.l.b16 %v409
      %v1534 = vunpack.c.l.b16 %v410
      %v1535 = vunpack.c.l.b16 %v411
      %v1536 = vunpack.c.l.b16 %v412
      %v1537 = vunpack.c.l.b16 %v413
      %v1538 = vunpack.c.l.b16 %v414
      %v1539 = vunpack.c.l.b16 %v415
      %v1540 = vunpack.c.l.b16 %v416
      %v1541 = vunpack.c.l.b16 %v417
      %v1542 = vunpack.c.l.b16 %v418
      %v1543 = vunpack.c.l.b16 %v419
      %v1544 = vunpack.c.l.b16 %v420
      %v1545 = vunpack.c.l.b16 %v421
      %v1546 = vunpack.c.l.b16 %v422
      %v1547 = vunpack.c.l.b16 %v423
      %v1548 = vunpack.c.l.b16 %v424
      %v1549 = vunpack.c.l.b16 %v425
      %v1550 = vunpack.c.l.b16 %v426
      %v1551 = vunpack.c.l.b16 %v427
      %v1552 = vunpack.c.l.b16 %v428
      %v1553 = vunpack.c.l.b16 %v429
      %v1554 = vunpack.c.l.b16 %v430
      %v1555 = vpack.c.b16 %v1492, %v1491
      %v1556 = vpack.c.b16 %v1494, %v1493
      %v1557 = vpack.c.b16 %v1496, %v1495
      %v1558 = vpack.c.b16 %v1498, %v1497
      %v1559 = vpack.c.b16 %v1500, %v1499
      %v1560 = vpack.c.b16 %v1502, %v1501
      %v1561 = vpack.c.b16 %v1504, %v1503
      %v1562 = vpack.c.b16 %v1506, %v1505
      %v1563 = vpack.c.b16 %v1508, %v1507
      %v1564 = vpack.c.b16 %v1510, %v1509
      %v1565 = vpack.c.b16 %v1512, %v1511
      %v1566 = vpack.c.b16 %v1514, %v1513
      %v1567 = vpack.c.b16 %v1516, %v1515
      %v1568 = vpack.c.b16 %v1518, %v1517
      %v1569 = vpack.c.b16 %v1520, %v1519
      %v1570 = vpack.c.b16 %v1522, %v1521
      %v1571 = vpack.c.b16 %v1524, %v1523
      %v1572 = vpack.c.b16 %v1526, %v1525
      %v1573 = vpack.c.b16 %v1528, %v1527
      %v1574 = vpack.c.b16 %v1530, %v1529
      %v1575 = vpack.c.b16 %v1532, %v1531
      %v1576 = vpack.c.b16 %v1534, %v1533
      %v1577 = vpack.c.b16 %v1536, %v1535
      %v1578 = vpack.c.b16 %v1538, %v1537
      %v1579 = vpack.c.b16 %v1540, %v1539
      %v1580 = vpack.c.b16 %v1542, %v1541
      %v1581 = vpack.c.b16 %v1544, %v1543
      %v1582 = vpack.c.b16 %v1546, %v1545
      %v1583 = vpack.c.b16 %v1548, %v1547
      %v1584 = vpack.c.b16 %v1550, %v1549
      %v1585 = vpack.c.b16 %v1552, %v1551
      %v1586 = vpack.c.b16 %v1554, %v1553
      %1619 = vmatprep.subr.bf16.mxu0 0
      %1620 = vmatpush1.bf16.msra.mxu0 %v1555
      %1621 = vmatprep.subr.bf16.mxu0 0
      %1622 = vmatpush1.bf16.msra.mxu0 %v1556
      %1623 = vmatprep.subr.bf16.mxu0 0
      %1624 = vmatpush1.bf16.msra.mxu0 %v1557
      %1625 = vmatprep.subr.bf16.mxu0 0
      %1626 = vmatpush1.bf16.msra.mxu0 %v1558
      %1627 = vmatprep.subr.bf16.mxu0 0
      %1628 = vmatpush1.bf16.msra.mxu0 %v1559
      %1629 = vmatprep.subr.bf16.mxu0 0
      %1630 = vmatpush1.bf16.msra.mxu0 %v1560
      %1631 = vmatprep.subr.bf16.mxu0 0
      %1632 = vmatpush1.bf16.msra.mxu0 %v1561
      %1633 = vmatprep.subr.bf16.mxu0 0
      %1634 = vmatpush1.bf16.msra.mxu0 %v1562
      %1635 = vmatprep.subr.bf16.mxu0 0
      %1636 = vmatpush1.bf16.msra.mxu0 %v1563
      %1637 = vmatprep.subr.bf16.mxu0 0
      %1638 = vmatpush1.bf16.msra.mxu0 %v1564
      %1639 = vmatprep.subr.bf16.mxu0 0
      %1640 = vmatpush1.bf16.msra.mxu0 %v1565
      %1641 = vmatprep.subr.bf16.mxu0 0
      %1642 = vmatpush1.bf16.msra.mxu0 %v1566
      %1643 = vmatprep.subr.bf16.mxu0 0
      %1644 = vmatpush1.bf16.msra.mxu0 %v1567
      %1645 = vmatprep.subr.bf16.mxu0 0
      %1646 = vmatpush1.bf16.msra.mxu0 %v1568
      %1647 = vmatprep.subr.bf16.mxu0 0
      %1648 = vmatpush1.bf16.msra.mxu0 %v1569
      %1649 = vmatprep.subr.bf16.mxu0 0
      %1650 = vmatpush1.bf16.msra.mxu0 %v1570
      %1651 = vmatprep.mubr.bf16.mxu0 %v786
      %1652 = vmatmul.mubr.bf16.gmra.mrb[0].mxu0 %v785
      %v1653 = vpop.f32.mrb[0].mxu0
      %v1654 = vadd.f32 %v1301, %v1653
      %v1655 = vpop.f32.mrb[0].mxu0
      %v1656 = vpop.f32.mrb[0].mxu0
      %v1657 = vadd.f32 %v1304, %v1656
      %v1658 = vpop.f32.mrb[0].mxu0
      %1659 = vmatprep.mubr.bf16.mxu0 %v790
      %1660 = vmatmul.mubr.bf16.gmra.mrb[0].mxu0 %v789
      %v1661 = vpop.f32.mrb[0].mxu0
      %v1662 = vadd.f32 %v1309, %v1661
      %v1663 = vpop.f32.mrb[0].mxu0
      %v1664 = vpop.f32.mrb[0].mxu0
      %v1665 = vadd.f32 %v1312, %v1664
      %v1666 = vpop.f32.mrb[0].mxu0
      %1667 = vmatprep.mubr.bf16.mxu0 %v794
      %1668 = vmatmul.mubr.bf16.gmra.mrb[0].mxu0 %v793
      %v1669 = vpop.f32.mrb[0].mxu0
      %v1670 = vadd.f32 %v1317, %v1669
      %v1671 = vpop.f32.mrb[0].mxu0
      %v1672 = vpop.f32.mrb[0].mxu0
      %v1673 = vadd.f32 %v1320, %v1672
      %v1674 = vpop.f32.mrb[0].mxu0
      %1675 = vmatprep.mubr.bf16.mxu0 %v798
      %1676 = vmatmul.mubr.bf16.gmra.mrb[0].mxu0 %v797
      %v1677 = vpop.f32.mrb[0].mxu0
      %v1678 = vadd.f32 %v1325, %v1677
      %v1679 = vpop.f32.mrb[0].mxu0
      %v1680 = vpop.f32.mrb[0].mxu0
      %v1681 = vadd.f32 %v1328, %v1680
      %v1682 = vpop.f32.mrb[0].mxu0
      %1683 = vmatprep.mubr.bf16.mxu0 %v802
      %1684 = vmatmul.mubr.bf16.gmra.mrb[0].mxu0 %v801
      %v1685 = vpop.f32.mrb[0].mxu0
      %v1686 = vadd.f32 %v1333, %v1685
      %v1687 = vpop.f32.mrb[0].mxu0
      %v1688 = vpop.f32.mrb[0].mxu0
      %v1689 = vadd.f32 %v1336, %v1688
      %v1690 = vpop.f32.mrb[0].mxu0
      %1691 = vmatprep.mubr.bf16.mxu0 %v806
      %1692 = vmatmul.mubr.bf16.gmra.mrb[0].mxu0 %v805
      %v1693 = vpop.f32.mrb[0].mxu0
      %v1694 = vadd.f32 %v1341, %v1693
      %v1695 = vpop.f32.mrb[0].mxu0
      %v1696 = vpop.f32.mrb[0].mxu0
      %v1697 = vadd.f32 %v1344, %v1696
      %v1698 = vpop.f32.mrb[0].mxu0
      %1699 = vmatprep.mubr.bf16.mxu0 %v810
      %1700 = vmatmul.mubr.bf16.gmra.mrb[0].mxu0 %v809
      %v1701 = vpop.f32.mrb[0].mxu0
      %v1702 = vadd.f32 %v1349, %v1701
      %v1703 = vpop.f32.mrb[0].mxu0
      %v1704 = vpop.f32.mrb[0].mxu0
      %v1705 = vadd.f32 %v1352, %v1704
      %v1706 = vpop.f32.mrb[0].mxu0
      %1707 = vmatprep.mubr.bf16.mxu0 %v814
      %1708 = vmatmul.mubr.bf16.gmra.mrb[0].mxu0 %v813
      %v1709 = vpop.f32.mrb[0].mxu0
      %v1710 = vadd.f32 %v1357, %v1709
      %v1711 = vpop.f32.mrb[0].mxu0
      %v1712 = vpop.f32.mrb[0].mxu0
      %v1713 = vadd.f32 %v1360, %v1712
      %v1714 = vpop.f32.mrb[0].mxu0
      %1715 = vmatprep.mubr.bf16.mxu0 %v818
      %1716 = vmatmul.mubr.bf16.gmra.mrb[0].mxu0 %v817
      %v1717 = vpop.f32.mrb[0].mxu0
      %v1718 = vadd.f32 %v1365, %v1717
      %v1719 = vpop.f32.mrb[0].mxu0
      %v1720 = vpop.f32.mrb[0].mxu0
      %v1721 = vadd.f32 %v1368, %v1720
      %v1722 = vpop.f32.mrb[0].mxu0
      %1723 = vmatprep.mubr.bf16.mxu0 %v822
      %1724 = vmatmul.mubr.bf16.gmra.mrb[0].mxu0 %v821
      %v1725 = vpop.f32.mrb[0].mxu0
      %v1726 = vadd.f32 %v1373, %v1725
      %v1727 = vpop.f32.mrb[0].mxu0
      %v1728 = vpop.f32.mrb[0].mxu0
      %v1729 = vadd.f32 %v1376, %v1728
      %v1730 = vpop.f32.mrb[0].mxu0
      %1731 = vmatprep.mubr.bf16.mxu0 %v826
      %1732 = vmatmul.mubr.bf16.gmra.mrb[0].mxu0 %v825
      %v1733 = vpop.f32.mrb[0].mxu0
      %v1734 = vadd.f32 %v1381, %v1733
      %v1735 = vpop.f32.mrb[0].mxu0
      %v1736 = vpop.f32.mrb[0].mxu0
      %v1737 = vadd.f32 %v1384, %v1736
      %v1738 = vpop.f32.mrb[0].mxu0
      %1739 = vmatprep.mubr.bf16.mxu0 %v830
      %1740 = vmatmul.mubr.bf16.gmra.mrb[0].mxu0 %v829
      %v1741 = vpop.f32.mrb[0].mxu0
      %v1742 = vadd.f32 %v1389, %v1741
      %v1743 = vpop.f32.mrb[0].mxu0
      %v1744 = vpop.f32.mrb[0].mxu0
      %v1745 = vadd.f32 %v1392, %v1744
      %v1746 = vpop.f32.mrb[0].mxu0
      %1747 = vmatprep.mubr.bf16.mxu0 %v834
      %1748 = vmatmul.mubr.bf16.gmra.mrb[0].mxu0 %v833
      %v1749 = vpop.f32.mrb[0].mxu0
      %v1750 = vadd.f32 %v1397, %v1749
      %v1751 = vpop.f32.mrb[0].mxu0
      %v1752 = vpop.f32.mrb[0].mxu0
      %v1753 = vadd.f32 %v1400, %v1752
      %v1754 = vpop.f32.mrb[0].mxu0
      %1755 = vmatprep.mubr.bf16.mxu0 %v838
      %1756 = vmatmul.mubr.bf16.gmra.mrb[0].mxu0 %v837
      %v1757 = vpop.f32.mrb[0].mxu0
      %v1758 = vadd.f32 %v1405, %v1757
      %v1759 = vpop.f32.mrb[0].mxu0
      %v1760 = vpop.f32.mrb[0].mxu0
      %v1761 = vadd.f32 %v1408, %v1760
      %v1762 = vpop.f32.mrb[0].mxu0
      %1763 = vmatprep.mubr.bf16.mxu0 %v842
      %1764 = vmatmul.mubr.bf16.gmra.mrb[0].mxu0 %v841
      %v1765 = vpop.f32.mrb[0].mxu0
      %v1766 = vadd.f32 %v1413, %v1765
      %v1767 = vpop.f32.mrb[0].mxu0
      %v1768 = vpop.f32.mrb[0].mxu0
      %v1769 = vadd.f32 %v1416, %v1768
      %v1770 = vpop.f32.mrb[0].mxu0
      %1771 = vmatprep.mubr.bf16.mxu0 %v846
      %1772 = vmatmul.mubr.bf16.gmra.mrb[0].mxu0 %v845
      %v1773 = vpop.f32.mrb[0].mxu0
      %v1774 = vadd.f32 %v1421, %v1773
      %v1775 = vpop.f32.mrb[0].mxu0
      %v1776 = vpop.f32.mrb[0].mxu0
      %v1777 = vadd.f32 %v1424, %v1776
      %v1778 = vpop.f32.mrb[0].mxu0
      %1779 = vdwg.mxu0
      %1780 = vmatprep.subr.bf16.mxu0 0
      %1781 = vmatpush1.bf16.msra.mxu0 %v1571
      %1782 = vmatprep.subr.bf16.mxu0 0
      %1783 = vmatpush1.bf16.msra.mxu0 %v1572
      %1784 = vmatprep.subr.bf16.mxu0 0
      %1785 = vmatpush1.bf16.msra.mxu0 %v1573
      %1786 = vmatprep.subr.bf16.mxu0 0
      %1787 = vmatpush1.bf16.msra.mxu0 %v1574
      %1788 = vmatprep.subr.bf16.mxu0 0
      %1789 = vmatpush1.bf16.msra.mxu0 %v1575
      %1790 = vmatprep.subr.bf16.mxu0 0
      %1791 = vmatpush1.bf16.msra.mxu0 %v1576
      %1792 = vmatprep.subr.bf16.mxu0 0
      %1793 = vmatpush1.bf16.msra.mxu0 %v1577
      %1794 = vmatprep.subr.bf16.mxu0 0
      %1795 = vmatpush1.bf16.msra.mxu0 %v1578
      %1796 = vmatprep.subr.bf16.mxu0 0
      %1797 = vmatpush1.bf16.msra.mxu0 %v1579
      %1798 = vmatprep.subr.bf16.mxu0 0
      %1799 = vmatpush1.bf16.msra.mxu0 %v1580
      %1800 = vmatprep.subr.bf16.mxu0 0
      %1801 = vmatpush1.bf16.msra.mxu0 %v1581
      %1802 = vmatprep.subr.bf16.mxu0 0
      %1803 = vmatpush1.bf16.msra.mxu0 %v1582
      %1804 = vmatprep.subr.bf16.mxu0 0
      %1805 = vmatpush1.bf16.msra.mxu0 %v1583
      %1806 = vmatprep.subr.bf16.mxu0 0
      %1807 = vmatpush1.bf16.msra.mxu0 %v1584
      %1808 = vmatprep.subr.bf16.mxu0 0
      %1809 = vmatpush1.bf16.msra.mxu0 %v1585
      %1810 = vmatprep.subr.bf16.mxu0 0
      %1811 = vmatpush1.bf16.msra.mxu0 %v1586
      %1812 = vmatprep.mubr.bf16.mxu0 %v788
      %1813 = vmatmul.mubr.bf16.gmra.mrb[0].mxu0 %v787
      %v1814 = vpop.f32.mrb[0].mxu0
      %v1815 = vadd.f32 %v1654, %v1814
      %v1816 = vpop.f32.mrb[0].mxu0
      %v1817 = vpop.f32.mrb[0].mxu0
      %v1818 = vadd.f32 %v1657, %v1817
      %v1819 = vpop.f32.mrb[0].mxu0
      %1820 = vmatprep.mubr.bf16.mxu0 %v792
      %1821 = vmatmul.mubr.bf16.gmra.mrb[0].mxu0 %v791
      %v1822 = vpop.f32.mrb[0].mxu0
      %v1823 = vadd.f32 %v1662, %v1822
      %v1824 = vpop.f32.mrb[0].mxu0
      %v1825 = vpop.f32.mrb[0].mxu0
      %v1826 = vadd.f32 %v1665, %v1825
      %v1827 = vpop.f32.mrb[0].mxu0
      %1828 = vmatprep.mubr.bf16.mxu0 %v796
      %1829 = vmatmul.mubr.bf16.gmra.mrb[0].mxu0 %v795
      %v1830 = vpop.f32.mrb[0].mxu0
      %v1831 = vadd.f32 %v1670, %v1830
      %v1832 = vpop.f32.mrb[0].mxu0
      %v1833 = vpop.f32.mrb[0].mxu0
      %v1834 = vadd.f32 %v1673, %v1833
      %v1835 = vpop.f32.mrb[0].mxu0
      %1836 = vmatprep.mubr.bf16.mxu0 %v800
      %1837 = vmatmul.mubr.bf16.gmra.mrb[0].mxu0 %v799
      %v1838 = vpop.f32.mrb[0].mxu0
      %v1839 = vadd.f32 %v1678, %v1838
      %v1840 = vpop.f32.mrb[0].mxu0
      %v1841 = vpop.f32.mrb[0].mxu0
      %v1842 = vadd.f32 %v1681, %v1841
      %v1843 = vpop.f32.mrb[0].mxu0
      %1844 = vmatprep.mubr.bf16.mxu0 %v804
      %1845 = vmatmul.mubr.bf16.gmra.mrb[0].mxu0 %v803
      %v1846 = vpop.f32.mrb[0].mxu0
      %v1847 = vadd.f32 %v1686, %v1846
      %v1848 = vpop.f32.mrb[0].mxu0
      %v1849 = vpop.f32.mrb[0].mxu0
      %v1850 = vadd.f32 %v1689, %v1849
      %v1851 = vpop.f32.mrb[0].mxu0
      %1852 = vmatprep.mubr.bf16.mxu0 %v808
      %1853 = vmatmul.mubr.bf16.gmra.mrb[0].mxu0 %v807
      %v1854 = vpop.f32.mrb[0].mxu0
      %v1855 = vadd.f32 %v1694, %v1854
      %v1856 = vpop.f32.mrb[0].mxu0
      %v1857 = vpop.f32.mrb[0].mxu0
      %v1858 = vadd.f32 %v1697, %v1857
      %v1859 = vpop.f32.mrb[0].mxu0
      %1860 = vmatprep.mubr.bf16.mxu0 %v812
      %1861 = vmatmul.mubr.bf16.gmra.mrb[0].mxu0 %v811
      %v1862 = vpop.f32.mrb[0].mxu0
      %v1863 = vadd.f32 %v1702, %v1862
      %v1864 = vpop.f32.mrb[0].mxu0
      %v1865 = vpop.f32.mrb[0].mxu0
      %v1866 = vadd.f32 %v1705, %v1865
      %v1867 = vpop.f32.mrb[0].mxu0
      %1868 = vmatprep.mubr.bf16.mxu0 %v816
      %1869 = vmatmul.mubr.bf16.gmra.mrb[0].mxu0 %v815
      %v1870 = vpop.f32.mrb[0].mxu0
      %v1871 = vadd.f32 %v1710, %v1870
      %v1872 = vpop.f32.mrb[0].mxu0
      %v1873 = vpop.f32.mrb[0].mxu0
      %v1874 = vadd.f32 %v1713, %v1873
      %v1875 = vpop.f32.mrb[0].mxu0
      %1876 = vmatprep.mubr.bf16.mxu0 %v820
      %1877 = vmatmul.mubr.bf16.gmra.mrb[0].mxu0 %v819
      %v1878 = vpop.f32.mrb[0].mxu0
      %v1879 = vadd.f32 %v1718, %v1878
      %v1880 = vpop.f32.mrb[0].mxu0
      %v1881 = vpop.f32.mrb[0].mxu0
      %v1882 = vadd.f32 %v1721, %v1881
      %v1883 = vpop.f32.mrb[0].mxu0
      %1884 = vmatprep.mubr.bf16.mxu0 %v824
      %1885 = vmatmul.mubr.bf16.gmra.mrb[0].mxu0 %v823
      %v1886 = vpop.f32.mrb[0].mxu0
      %v1887 = vadd.f32 %v1726, %v1886
      %v1888 = vpop.f32.mrb[0].mxu0
      %v1889 = vpop.f32.mrb[0].mxu0
      %v1890 = vadd.f32 %v1729, %v1889
      %v1891 = vpop.f32.mrb[0].mxu0
      %1892 = vmatprep.mubr.bf16.mxu0 %v828
      %1893 = vmatmul.mubr.bf16.gmra.mrb[0].mxu0 %v827
      %v1894 = vpop.f32.mrb[0].mxu0
      %v1895 = vadd.f32 %v1734, %v1894
      %v1896 = vpop.f32.mrb[0].mxu0
      %v1897 = vpop.f32.mrb[0].mxu0
      %v1898 = vadd.f32 %v1737, %v1897
      %v1899 = vpop.f32.mrb[0].mxu0
      %1900 = vmatprep.mubr.bf16.mxu0 %v832
      %1901 = vmatmul.mubr.bf16.gmra.mrb[0].mxu0 %v831
      %v1902 = vpop.f32.mrb[0].mxu0
      %v1903 = vadd.f32 %v1742, %v1902
      %v1904 = vpop.f32.mrb[0].mxu0
      %v1905 = vpop.f32.mrb[0].mxu0
      %v1906 = vadd.f32 %v1745, %v1905
      %v1907 = vpop.f32.mrb[0].mxu0
      %1908 = vmatprep.mubr.bf16.mxu0 %v836
      %1909 = vmatmul.mubr.bf16.gmra.mrb[0].mxu0 %v835
      %v1910 = vpop.f32.mrb[0].mxu0
      %v1911 = vadd.f32 %v1750, %v1910
      %v1912 = vpop.f32.mrb[0].mxu0
      %v1913 = vpop.f32.mrb[0].mxu0
      %v1914 = vadd.f32 %v1753, %v1913
      %v1915 = vpop.f32.mrb[0].mxu0
      %1916 = vmatprep.mubr.bf16.mxu0 %v840
      %1917 = vmatmul.mubr.bf16.gmra.mrb[0].mxu0 %v839
      %v1918 = vpop.f32.mrb[0].mxu0
      %v1919 = vadd.f32 %v1758, %v1918
      %v1920 = vpop.f32.mrb[0].mxu0
      %v1921 = vpop.f32.mrb[0].mxu0
      %v1922 = vadd.f32 %v1761, %v1921
      %v1923 = vpop.f32.mrb[0].mxu0
      %1924 = vmatprep.mubr.bf16.mxu0 %v844
      %1925 = vmatmul.mubr.bf16.gmra.mrb[0].mxu0 %v843
      %v1926 = vpop.f32.mrb[0].mxu0
      %v1927 = vadd.f32 %v1766, %v1926
      %v1928 = vpop.f32.mrb[0].mxu0
      %v1929 = vpop.f32.mrb[0].mxu0
      %v1930 = vadd.f32 %v1769, %v1929
      %v1931 = vpop.f32.mrb[0].mxu0
      %1932 = vmatprep.mubr.bf16.mxu0 %v848
      %1933 = vmatmul.mubr.bf16.gmra.mrb[0].mxu0 %v847
      %v1934 = vpop.f32.mrb[0].mxu0
      %v1935 = vadd.f32 %v1774, %v1934
      %v1936 = vpop.f32.mrb[0].mxu0
      %v1937 = vpop.f32.mrb[0].mxu0
      %v1938 = vadd.f32 %v1777, %v1937
      %v1939 = vpop.f32.mrb[0].mxu0
      %1940 = vdwg.mxu0
      %v1941 = vadd.f32 %v561, %v1815
      %v1942 = vadd.f32 %v562, %v1818
      %v1943 = vadd.f32 %v563, %v1823
      %v1944 = vadd.f32 %v564, %v1826
      %v1945 = vadd.f32 %v565, %v1831
      %v1946 = vadd.f32 %v566, %v1834
      %v1947 = vadd.f32 %v567, %v1839
      %v1948 = vadd.f32 %v568, %v1842
      %v1949 = vadd.f32 %v569, %v1847
      %v1950 = vadd.f32 %v570, %v1850
      %v1951 = vadd.f32 %v571, %v1855
      %v1952 = vadd.f32 %v572, %v1858
      %v1953 = vadd.f32 %v573, %v1863
      %v1954 = vadd.f32 %v574, %v1866
      %v1955 = vadd.f32 %v575, %v1871
      %v1956 = vadd.f32 %v576, %v1874
      %v1957 = vadd.f32 %v577, %v1879
      %v1958 = vadd.f32 %v578, %v1882
      %v1959 = vadd.f32 %v579, %v1887
      %v1960 = vadd.f32 %v580, %v1890
      %v1961 = vadd.f32 %v581, %v1895
      %v1962 = vadd.f32 %v582, %v1898
      %v1963 = vadd.f32 %v583, %v1903
      %v1964 = vadd.f32 %v584, %v1906
      %v1965 = vadd.f32 %v585, %v1911
      %v1966 = vadd.f32 %v586, %v1914
      %v1967 = vadd.f32 %v587, %v1919
      %v1968 = vadd.f32 %v588, %v1922
      %v1969 = vadd.f32 %v589, %v1927
      %v1970 = vadd.f32 %v590, %v1930
      %v1971 = vadd.f32 %v591, %v1935
      %v1972 = vadd.f32 %v592, %v1938
      %1973 = vst [vmem:[#allocation2] sm:$0xff] %v1941
      %1974 = vst [vmem:[#allocation2 + $0x8] sm:$0xff] %v1942
      %1975 = vst [vmem:[#allocation2 + $0x10] sm:$0xff] %v1943
      %1976 = vst [vmem:[#allocation2 + $0x18] sm:$0xff] %v1944
      %1977 = vst [vmem:[#allocation2 + $0x20] sm:$0xff] %v1945
      %1978 = vst [vmem:[#allocation2 + $0x28] sm:$0xff] %v1946
      %1979 = vst [vmem:[#allocation2 + $0x30] sm:$0xff] %v1947
      %1980 = vst [vmem:[#allocation2 + $0x38] sm:$0xff] %v1948
      %1981 = vst [vmem:[#allocation2 + $0x40] sm:$0xff] %v1949
      %1982 = vst [vmem:[#allocation2 + $0x48] sm:$0xff] %v1950
      %1983 = vst [vmem:[#allocation2 + $0x50] sm:$0xff] %v1951
      %1984 = vst [vmem:[#allocation2 + $0x58] sm:$0xff] %v1952
      %1985 = vst [vmem:[#allocation2 + $0x60] sm:$0xff] %v1953
      %1986 = vst [vmem:[#allocation2 + $0x68] sm:$0xff] %v1954
      %1987 = vst [vmem:[#allocation2 + $0x70] sm:$0xff] %v1955
      %1988 = vst [vmem:[#allocation2 + $0x78] sm:$0xff] %v1956
      %1989 = vst [vmem:[#allocation2 + $0x80] sm:$0xff] %v1957
      %1990 = vst [vmem:[#allocation2 + $0x88] sm:$0xff] %v1958
      %1991 = vst [vmem:[#allocation2 + $0x90] sm:$0xff] %v1959
      %1992 = vst [vmem:[#allocation2 + $0x98] sm:$0xff] %v1960
      %1993 = vst [vmem:[#allocation2 + $0xa0] sm:$0xff] %v1961
      %1994 = vst [vmem:[#allocation2 + $0xa8] sm:$0xff] %v1962
      %1995 = vst [vmem:[#allocation2 + $0xb0] sm:$0xff] %v1963
      %1996 = vst [vmem:[#allocation2 + $0xb8] sm:$0xff] %v1964
      %1997 = vst [vmem:[#allocation2 + $0xc0] sm:$0xff] %v1965
      %1998 = vst [vmem:[#allocation2 + $0xc8] sm:$0xff] %v1966
      %1999 = vst [vmem:[#allocation2 + $0xd0] sm:$0xff] %v1967
      %2000 = vst [vmem:[#allocation2 + $0xd8] sm:$0xff] %v1968
      %2001 = vst [vmem:[#allocation2 + $0xe0] sm:$0xff] %v1969
      %2002 = vst [vmem:[#allocation2 + $0xe8] sm:$0xff] %v1970
      %2003 = vst [vmem:[#allocation2 + $0xf0] sm:$0xff] %v1971
      %2004 = vst [vmem:[#allocation2 + $0xf8] sm:$0xff] %v1972
      // Predicated region
      $region49: #{maegin_forward.3} parent=43 // pred_check
        %p2005 = pneg %p326
      $region50: #{maegin_forward.3} parent=43 // pred_check_branch
        %2007 = sbr.rel (%p2005) target = $region52
      $region51: #{maegin_forward.3} parent=43 // pred_region
        %v2008 = vld [vmem:[#allocation2] sm:$0xff]
        %v2009 = vld [vmem:[#allocation2 + $0x8] sm:$0xff]
        %v2010 = vld [vmem:[#allocation2 + $0x10] sm:$0xff]
        %v2011 = vld [vmem:[#allocation2 + $0x18] sm:$0xff]
        %v2012 = vld [vmem:[#allocation2 + $0x20] sm:$0xff]
        %v2013 = vld [vmem:[#allocation2 + $0x28] sm:$0xff]
        %v2014 = vld [vmem:[#allocation2 + $0x30] sm:$0xff]
        %v2015 = vld [vmem:[#allocation2 + $0x38] sm:$0xff]
        %v2016 = vld [vmem:[#allocation2 + $0x40] sm:$0xff]
        %v2017 = vld [vmem:[#allocation2 + $0x48] sm:$0xff]
        %v2018 = vld [vmem:[#allocation2 + $0x50] sm:$0xff]
        %v2019 = vld [vmem:[#allocation2 + $0x58] sm:$0xff]
        %v2020 = vld [vmem:[#allocation2 + $0x60] sm:$0xff]
        %v2021 = vld [vmem:[#allocation2 + $0x68] sm:$0xff]
        %v2022 = vld [vmem:[#allocation2 + $0x70] sm:$0xff]
        %v2023 = vld [vmem:[#allocation2 + $0x78] sm:$0xff]
        %v2024 = vld [vmem:[#allocation2 + $0x80] sm:$0xff]
        %v2025 = vld [vmem:[#allocation2 + $0x88] sm:$0xff]
        %v2026 = vld [vmem:[#allocation2 + $0x90] sm:$0xff]
        %v2027 = vld [vmem:[#allocation2 + $0x98] sm:$0xff]
        %v2028 = vld [vmem:[#allocation2 + $0xa0] sm:$0xff]
        %v2029 = vld [vmem:[#allocation2 + $0xa8] sm:$0xff]
        %v2030 = vld [vmem:[#allocation2 + $0xb0] sm:$0xff]
        %v2031 = vld [vmem:[#allocation2 + $0xb8] sm:$0xff]
        %v2032 = vld [vmem:[#allocation2 + $0xc0] sm:$0xff]
        %v2033 = vld [vmem:[#allocation2 + $0xc8] sm:$0xff]
        %v2034 = vld [vmem:[#allocation2 + $0xd0] sm:$0xff]
        %v2035 = vld [vmem:[#allocation2 + $0xd8] sm:$0xff]
        %v2036 = vld [vmem:[#allocation2 + $0xe0] sm:$0xff]
        %v2037 = vld [vmem:[#allocation2 + $0xe8] sm:$0xff]
        %v2038 = vld [vmem:[#allocation2 + $0xf0] sm:$0xff]
        %v2039 = vld [vmem:[#allocation2 + $0xf8] sm:$0xff]
        %v2040 = vld [vmem:[%s4] sm:$0xff]
        %v2041 = vld [vmem:[%s4 + $0x8] sm:$0xff]
        %v2042 = vld [vmem:[%s4 + $0x10] sm:$0xff]
        %v2043 = vld [vmem:[%s4 + $0x18] sm:$0xff]
        %v2044 = vld [vmem:[%s4 + $0x20] sm:$0xff]
        %v2045 = vld [vmem:[%s4 + $0x28] sm:$0xff]
        %v2046 = vld [vmem:[%s4 + $0x30] sm:$0xff]
        %v2047 = vld [vmem:[%s4 + $0x38] sm:$0xff]
        %v2048 = vld [vmem:[%s4 + $0x40] sm:$0xff]
        %v2049 = vld [vmem:[%s4 + $0x48] sm:$0xff]
        %v2050 = vld [vmem:[%s4 + $0x50] sm:$0xff]
        %v2051 = vld [vmem:[%s4 + $0x58] sm:$0xff]
        %v2052 = vld [vmem:[%s4 + $0x60] sm:$0xff]
        %v2053 = vld [vmem:[%s4 + $0x68] sm:$0xff]
        %v2054 = vld [vmem:[%s4 + $0x70] sm:$0xff]
        %v2055 = vld [vmem:[%s4 + $0x78] sm:$0xff]
        %v2056 = vld [vmem:[%s5] sm:$0x1]
        %v2058 = vlaneseq
        %v2059 = vshrl.u32 %v2058, 7
        %v2060 = vsub.s32 0, %v2059
        %v2061 = vrot.slane %v2056, %v2060
        %2063 = vmatprep.subr.mxu0 0.0
        %2064 = vmatpush1.msra.mxu0 %v2040
        %2065 = vmatprep.subr.mxu0 0.0
        %2066 = vmatpush1.msra.mxu0 %v2041
        %2067 = vmatprep.subr.mxu0 0.0
        %2068 = vmatpush1.msra.mxu0 %v2042
        %2069 = vmatprep.subr.mxu0 0.0
        %2070 = vmatpush1.msra.mxu0 %v2043
        %2071 = vmatprep.subr.mxu0 0.0
        %2072 = vmatpush1.msra.mxu0 %v2044
        %2073 = vmatprep.subr.mxu0 0.0
        %2074 = vmatpush1.msra.mxu0 %v2045
        %2075 = vmatprep.subr.mxu0 0.0
        %2076 = vmatpush1.msra.mxu0 %v2046
        %2077 = vmatprep.subr.mxu0 0.0
        %2078 = vmatpush1.msra.mxu0 %v2047
        %2079 = vmatprep.subr.mxu0 0.0
        %2080 = vmatpush1.msra.mxu0 %v2048
        %2081 = vmatprep.subr.mxu0 0.0
        %2082 = vmatpush1.msra.mxu0 %v2049
        %2083 = vmatprep.subr.mxu0 0.0
        %2084 = vmatpush1.msra.mxu0 %v2050
        %2085 = vmatprep.subr.mxu0 0.0
        %2086 = vmatpush1.msra.mxu0 %v2051
        %2087 = vmatprep.subr.mxu0 0.0
        %2088 = vmatpush1.msra.mxu0 %v2052
        %2089 = vmatprep.subr.mxu0 0.0
        %2090 = vmatpush1.msra.mxu0 %v2053
        %2091 = vmatprep.subr.mxu0 0.0
        %2092 = vmatpush1.msra.mxu0 %v2054
        %2093 = vmatprep.subr.mxu0 0.0
        %2094 = vmatpush1.msra.mxu0 %v2055
        %2095 = vmatprep.subr.mxu0 0.0
        %2096 = vmatpush1.msra.mxu0 0.0
        %2097 = vmatprep.subr.mxu0 0.0
        %2098 = vmatpush1.msra.mxu0 0.0
        %2099 = vmatprep.subr.mxu0 0.0
        %2100 = vmatpush1.msra.mxu0 0.0
        %2101 = vmatprep.subr.mxu0 0.0
        %2102 = vmatpush1.msra.mxu0 0.0
        %2103 = vmatprep.subr.mxu0 0.0
        %2104 = vmatpush1.msra.mxu0 0.0
        %2105 = vmatprep.subr.mxu0 0.0
        %2106 = vmatpush1.msra.mxu0 0.0
        %2107 = vmatprep.subr.mxu0 0.0
        %2108 = vmatpush1.msra.mxu0 0.0
        %2109 = vmatprep.subr.mxu0 0.0
        %2110 = vmatpush1.msra.mxu0 0.0
        %2111 = vmatprep.subr.mxu0 0.0
        %2112 = vmatpush1.msra.mxu0 0.0
        %2113 = vmatprep.subr.mxu0 0.0
        %2114 = vmatpush1.msra.mxu0 0.0
        %2115 = vmatprep.subr.mxu0 0.0
        %2116 = vmatpush1.msra.mxu0 0.0
        %2117 = vmatprep.subr.mxu0 0.0
        %2118 = vmatpush1.msra.mxu0 0.0
        %2119 = vmatprep.subr.mxu0 0.0
        %2120 = vmatpush1.msra.mxu0 0.0
        %2121 = vmatprep.subr.mxu0 0.0
        %2122 = vmatpush1.msra.mxu0 0.0
        %2123 = vmatprep.subr.mxu0 0.0
        %2124 = vmatpush1.msra.mxu0 0.0
        %2125 = vmatprep.subr.mxu0 0.0
        %2126 = vmatpush1.msra.mxu0 0.0
        %2127 = vmatprep.mubr.f32.mxu0 0.0
        %2128 = vmatmul.mubr.f32.gmra.mrb[0].mxu0 %v2008
        %v2129 = vpop.f32.mrb[0].mxu0
        %v2130 = vadd.f32 %v2061, %v2129
        %v2131 = vpop.f32.mrb[0].mxu0
        %2132 = vmatprep.mubr.f32.mxu0 0.0
        %2133 = vmatmul.mubr.f32.gmra.mrb[0].mxu0 %v2009
        %v2134 = vpop.f32.mrb[0].mxu0
        %v2135 = vadd.f32 %v2061, %v2134
        %v2136 = vpop.f32.mrb[0].mxu0
        %2137 = vmatprep.mubr.f32.mxu0 0.0
        %2138 = vmatmul.mubr.f32.gmra.mrb[0].mxu0 %v2010
        %v2139 = vpop.f32.mrb[0].mxu0
        %v2140 = vadd.f32 %v2061, %v2139
        %v2141 = vpop.f32.mrb[0].mxu0
        %2142 = vmatprep.mubr.f32.mxu0 0.0
        %2143 = vmatmul.mubr.f32.gmra.mrb[0].mxu0 %v2011
        %v2144 = vpop.f32.mrb[0].mxu0
        %v2145 = vadd.f32 %v2061, %v2144
        %v2146 = vpop.f32.mrb[0].mxu0
        %2147 = vmatprep.mubr.f32.mxu0 0.0
        %2148 = vmatmul.mubr.f32.gmra.mrb[0].mxu0 %v2012
        %v2149 = vpop.f32.mrb[0].mxu0
        %v2150 = vadd.f32 %v2061, %v2149
        %v2151 = vpop.f32.mrb[0].mxu0
        %2152 = vmatprep.mubr.f32.mxu0 0.0
        %2153 = vmatmul.mubr.f32.gmra.mrb[0].mxu0 %v2013
        %v2154 = vpop.f32.mrb[0].mxu0
        %v2155 = vadd.f32 %v2061, %v2154
        %v2156 = vpop.f32.mrb[0].mxu0
        %2157 = vmatprep.mubr.f32.mxu0 0.0
        %2158 = vmatmul.mubr.f32.gmra.mrb[0].mxu0 %v2014
        %v2159 = vpop.f32.mrb[0].mxu0
        %v2160 = vadd.f32 %v2061, %v2159
        %v2161 = vpop.f32.mrb[0].mxu0
        %2162 = vmatprep.mubr.f32.mxu0 0.0
        %2163 = vmatmul.mubr.f32.gmra.mrb[0].mxu0 %v2015
        %v2164 = vpop.f32.mrb[0].mxu0
        %v2165 = vadd.f32 %v2061, %v2164
        %v2166 = vpop.f32.mrb[0].mxu0
        %2167 = vmatprep.mubr.f32.mxu0 0.0
        %2168 = vmatmul.mubr.f32.gmra.mrb[0].mxu0 %v2016
        %v2169 = vpop.f32.mrb[0].mxu0
        %v2170 = vadd.f32 %v2061, %v2169
        %v2171 = vpop.f32.mrb[0].mxu0
        %2172 = vmatprep.mubr.f32.mxu0 0.0
        %2173 = vmatmul.mubr.f32.gmra.mrb[0].mxu0 %v2017
        %v2174 = vpop.f32.mrb[0].mxu0
        %v2175 = vadd.f32 %v2061, %v2174
        %v2176 = vpop.f32.mrb[0].mxu0
        %2177 = vmatprep.mubr.f32.mxu0 0.0
        %2178 = vmatmul.mubr.f32.gmra.mrb[0].mxu0 %v2018
        %v2179 = vpop.f32.mrb[0].mxu0
        %v2180 = vadd.f32 %v2061, %v2179
        %v2181 = vpop.f32.mrb[0].mxu0
        %2182 = vmatprep.mubr.f32.mxu0 0.0
        %2183 = vmatmul.mubr.f32.gmra.mrb[0].mxu0 %v2019
        %v2184 = vpop.f32.mrb[0].mxu0
        %v2185 = vadd.f32 %v2061, %v2184
        %v2186 = vpop.f32.mrb[0].mxu0
        %2187 = vmatprep.mubr.f32.mxu0 0.0
        %2188 = vmatmul.mubr.f32.gmra.mrb[0].mxu0 %v2020
        %v2189 = vpop.f32.mrb[0].mxu0
        %v2190 = vadd.f32 %v2061, %v2189
        %v2191 = vpop.f32.mrb[0].mxu0
        %2192 = vmatprep.mubr.f32.mxu0 0.0
        %2193 = vmatmul.mubr.f32.gmra.mrb[0].mxu0 %v2021
        %v2194 = vpop.f32.mrb[0].mxu0
        %v2195 = vadd.f32 %v2061, %v2194
        %v2196 = vpop.f32.mrb[0].mxu0
        %2197 = vmatprep.mubr.f32.mxu0 0.0
        %2198 = vmatmul.mubr.f32.gmra.mrb[0].mxu0 %v2022
        %v2199 = vpop.f32.mrb[0].mxu0
        %v2200 = vadd.f32 %v2061, %v2199
        %v2201 = vpop.f32.mrb[0].mxu0
        %2202 = vmatprep.mubr.f32.mxu0 0.0
        %2203 = vmatmul.mubr.f32.gmra.mrb[0].mxu0 %v2023
        %v2204 = vpop.f32.mrb[0].mxu0
        %v2205 = vadd.f32 %v2061, %v2204
        %v2206 = vpop.f32.mrb[0].mxu0
        %2207 = vmatprep.mubr.f32.mxu0 0.0
        %2208 = vmatmul.mubr.f32.gmra.mrb[0].mxu0 %v2024
        %v2209 = vpop.f32.mrb[0].mxu0
        %v2210 = vadd.f32 %v2061, %v2209
        %v2211 = vpop.f32.mrb[0].mxu0
        %2212 = vmatprep.mubr.f32.mxu0 0.0
        %2213 = vmatmul.mubr.f32.gmra.mrb[0].mxu0 %v2025
        %v2214 = vpop.f32.mrb[0].mxu0
        %v2215 = vadd.f32 %v2061, %v2214
        %v2216 = vpop.f32.mrb[0].mxu0
        %2217 = vmatprep.mubr.f32.mxu0 0.0
        %2218 = vmatmul.mubr.f32.gmra.mrb[0].mxu0 %v2026
        %v2219 = vpop.f32.mrb[0].mxu0
        %v2220 = vadd.f32 %v2061, %v2219
        %v2221 = vpop.f32.mrb[0].mxu0
        %2222 = vmatprep.mubr.f32.mxu0 0.0
        %2223 = vmatmul.mubr.f32.gmra.mrb[0].mxu0 %v2027
        %v2224 = vpop.f32.mrb[0].mxu0
        %v2225 = vadd.f32 %v2061, %v2224
        %v2226 = vpop.f32.mrb[0].mxu0
        %2227 = vmatprep.mubr.f32.mxu0 0.0
        %2228 = vmatmul.mubr.f32.gmra.mrb[0].mxu0 %v2028
        %v2229 = vpop.f32.mrb[0].mxu0
        %v2230 = vadd.f32 %v2061, %v2229
        %v2231 = vpop.f32.mrb[0].mxu0
        %2232 = vmatprep.mubr.f32.mxu0 0.0
        %2233 = vmatmul.mubr.f32.gmra.mrb[0].mxu0 %v2029
        %v2234 = vpop.f32.mrb[0].mxu0
        %v2235 = vadd.f32 %v2061, %v2234
        %v2236 = vpop.f32.mrb[0].mxu0
        %2237 = vmatprep.mubr.f32.mxu0 0.0
        %2238 = vmatmul.mubr.f32.gmra.mrb[0].mxu0 %v2030
        %v2239 = vpop.f32.mrb[0].mxu0
        %v2240 = vadd.f32 %v2061, %v2239
        %v2241 = vpop.f32.mrb[0].mxu0
        %2242 = vmatprep.mubr.f32.mxu0 0.0
        %2243 = vmatmul.mubr.f32.gmra.mrb[0].mxu0 %v2031
        %v2244 = vpop.f32.mrb[0].mxu0
        %v2245 = vadd.f32 %v2061, %v2244
        %v2246 = vpop.f32.mrb[0].mxu0
        %2247 = vmatprep.mubr.f32.mxu0 0.0
        %2248 = vmatmul.mubr.f32.gmra.mrb[0].mxu0 %v2032
        %v2249 = vpop.f32.mrb[0].mxu0
        %v2250 = vadd.f32 %v2061, %v2249
        %v2251 = vpop.f32.mrb[0].mxu0
        %2252 = vmatprep.mubr.f32.mxu0 0.0
        %2253 = vmatmul.mubr.f32.gmra.mrb[0].mxu0 %v2033
        %v2254 = vpop.f32.mrb[0].mxu0
        %v2255 = vadd.f32 %v2061, %v2254
        %v2256 = vpop.f32.mrb[0].mxu0
        %2257 = vmatprep.mubr.f32.mxu0 0.0
        %2258 = vmatmul.mubr.f32.gmra.mrb[0].mxu0 %v2034
        %v2259 = vpop.f32.mrb[0].mxu0
        %v2260 = vadd.f32 %v2061, %v2259
        %v2261 = vpop.f32.mrb[0].mxu0
        %2262 = vmatprep.mubr.f32.mxu0 0.0
        %2263 = vmatmul.mubr.f32.gmra.mrb[0].mxu0 %v2035
        %v2264 = vpop.f32.mrb[0].mxu0
        %v2265 = vadd.f32 %v2061, %v2264
        %v2266 = vpop.f32.mrb[0].mxu0
        %2267 = vmatprep.mubr.f32.mxu0 0.0
        %2268 = vmatmul.mubr.f32.gmra.mrb[0].mxu0 %v2036
        %v2269 = vpop.f32.mrb[0].mxu0
        %v2270 = vadd.f32 %v2061, %v2269
        %v2271 = vpop.f32.mrb[0].mxu0
        %2272 = vmatprep.mubr.f32.mxu0 0.0
        %2273 = vmatmul.mubr.f32.gmra.mrb[0].mxu0 %v2037
        %v2274 = vpop.f32.mrb[0].mxu0
        %v2275 = vadd.f32 %v2061, %v2274
        %v2276 = vpop.f32.mrb[0].mxu0
        %2277 = vmatprep.mubr.f32.mxu0 0.0
        %2278 = vmatmul.mubr.f32.gmra.mrb[0].mxu0 %v2038
        %v2279 = vpop.f32.mrb[0].mxu0
        %v2280 = vadd.f32 %v2061, %v2279
        %v2281 = vpop.f32.mrb[0].mxu0
        %2282 = vmatprep.mubr.f32.mxu0 0.0
        %2283 = vmatmul.mubr.f32.gmra.mrb[0].mxu0 %v2039
        %v2284 = vpop.f32.mrb[0].mxu0
        %v2285 = vadd.f32 %v2061, %v2284
        %v2286 = vpop.f32.mrb[0].mxu0
        %2287 = vdwg.mxu0
        %2288 = vst [vmem:[%s319] sm:$0xff] %v2130
        %2289 = vst [vmem:[%s319 + $0x8] sm:$0xff] %v2135
        %2290 = vst [vmem:[%s319 + $0x10] sm:$0xff] %v2140
        %2291 = vst [vmem:[%s319 + $0x18] sm:$0xff] %v2145
        %2292 = vst [vmem:[%s319 + $0x20] sm:$0xff] %v2150
        %2293 = vst [vmem:[%s319 + $0x28] sm:$0xff] %v2155
        %2294 = vst [vmem:[%s319 + $0x30] sm:$0xff] %v2160
        %2295 = vst [vmem:[%s319 + $0x38] sm:$0xff] %v2165
        %2296 = vst [vmem:[%s319 + $0x40] sm:$0xff] %v2170
        %2297 = vst [vmem:[%s319 + $0x48] sm:$0xff] %v2175
        %2298 = vst [vmem:[%s319 + $0x50] sm:$0xff] %v2180
        %2299 = vst [vmem:[%s319 + $0x58] sm:$0xff] %v2185
        %2300 = vst [vmem:[%s319 + $0x60] sm:$0xff] %v2190
        %2301 = vst [vmem:[%s319 + $0x68] sm:$0xff] %v2195
        %2302 = vst [vmem:[%s319 + $0x70] sm:$0xff] %v2200
        %2303 = vst [vmem:[%s319 + $0x78] sm:$0xff] %v2205
        %2304 = vst [vmem:[%s319 + $0x80] sm:$0xff] %v2210
        %2305 = vst [vmem:[%s319 + $0x88] sm:$0xff] %v2215
        %2306 = vst [vmem:[%s319 + $0x90] sm:$0xff] %v2220
        %2307 = vst [vmem:[%s319 + $0x98] sm:$0xff] %v2225
        %2308 = vst [vmem:[%s319 + $0xa0] sm:$0xff] %v2230
        %2309 = vst [vmem:[%s319 + $0xa8] sm:$0xff] %v2235
        %2310 = vst [vmem:[%s319 + $0xb0] sm:$0xff] %v2240
        %2311 = vst [vmem:[%s319 + $0xb8] sm:$0xff] %v2245
        %2312 = vst [vmem:[%s319 + $0xc0] sm:$0xff] %v2250
        %2313 = vst [vmem:[%s319 + $0xc8] sm:$0xff] %v2255
        %2314 = vst [vmem:[%s319 + $0xd0] sm:$0xff] %v2260
        %2315 = vst [vmem:[%s319 + $0xd8] sm:$0xff] %v2265
        %2316 = vst [vmem:[%s319 + $0xe0] sm:$0xff] %v2270
        %2317 = vst [vmem:[%s319 + $0xe8] sm:$0xff] %v2275
        %2318 = vst [vmem:[%s319 + $0xf0] sm:$0xff] %v2280
        %2319 = vst [vmem:[%s319 + $0xf8] sm:$0xff] %v2285
        %s2320 = smul.u32 %s24, 256
        %s2321 = sld [smem:[#allocation3]]
        %v2322 = vlaneseq
        %v2323 = vshrl.u32 %v2322, 7
        %v2324 = vadd.s32 %v2323, 8
        %v2325 = vadd.s32 %v2323, 16
        %v2326 = vadd.s32 %v2323, 24
        %v2327 = vadd.s32 %v2323, 32
        %v2328 = vadd.s32 %v2323, 40
        %v2329 = vadd.s32 %v2323, 48
        %v2330 = vadd.s32 %v2323, 56
        %v2331 = vadd.s32 %v2323, 64
        %v2332 = vadd.s32 %v2323, 72
        %v2333 = vadd.s32 %v2323, 80
        %v2334 = vadd.s32 %v2323, 88
        %v2335 = vadd.s32 %v2323, 96
        %v2336 = vadd.s32 %v2323, 104
        %v2337 = vadd.s32 %v2323, 112
        %v2338 = vadd.s32 %v2323, 120
        %v2339 = vadd.s32 %v2323, 128
        %v2340 = vadd.s32 %v2323, 136
        %v2341 = vadd.s32 %v2323, 144
        %v2342 = vadd.s32 %v2323, 152
        %v2343 = vadd.s32 %v2323, 160
        %v2344 = vadd.s32 %v2323, 168
        %v2345 = vadd.s32 %v2323, 176
        %v2346 = vadd.s32 %v2323, 184
        %v2347 = vadd.s32 %v2323, 192
        %v2348 = vadd.s32 %v2323, 200
        %v2349 = vadd.s32 %v2323, 208
        %v2350 = vadd.s32 %v2323, 216
        %v2351 = vadd.s32 %v2323, 224
        %v2352 = vadd.s32 %v2323, 232
        %v2353 = vadd.s32 %v2323, 240
        %v2354 = vadd.s32 %v2323, 248
        %v2355 = vstv %s2320
        %v2356 = vadd.s32 %v2355, %v2323
        %v2357 = vadd.s32 %v2355, %v2324
        %v2358 = vadd.s32 %v2355, %v2325
        %v2359 = vadd.s32 %v2355, %v2326
        %v2360 = vadd.s32 %v2355, %v2327
        %v2361 = vadd.s32 %v2355, %v2328
        %v2362 = vadd.s32 %v2355, %v2329
        %v2363 = vadd.s32 %v2355, %v2330
        %v2364 = vadd.s32 %v2355, %v2331
        %v2365 = vadd.s32 %v2355, %v2332
        %v2366 = vadd.s32 %v2355, %v2333
        %v2367 = vadd.s32 %v2355, %v2334
        %v2368 = vadd.s32 %v2355, %v2335
        %v2369 = vadd.s32 %v2355, %v2336
        %v2370 = vadd.s32 %v2355, %v2337
        %v2371 = vadd.s32 %v2355, %v2338
        %v2372 = vadd.s32 %v2355, %v2339
        %v2373 = vadd.s32 %v2355, %v2340
        %v2374 = vadd.s32 %v2355, %v2341
        %v2375 = vadd.s32 %v2355, %v2342
        %v2376 = vadd.s32 %v2355, %v2343
        %v2377 = vadd.s32 %v2355, %v2344
        %v2378 = vadd.s32 %v2355, %v2345
        %v2379 = vadd.s32 %v2355, %v2346
        %v2380 = vadd.s32 %v2355, %v2347
        %v2381 = vadd.s32 %v2355, %v2348
        %v2382 = vadd.s32 %v2355, %v2349
        %v2383 = vadd.s32 %v2355, %v2350
        %v2384 = vadd.s32 %v2355, %v2351
        %v2385 = vadd.s32 %v2355, %v2352
        %v2386 = vadd.s32 %v2355, %v2353
        %v2387 = vadd.s32 %v2355, %v2354
        %v2388 = vstv %s2321
        %vm2389 = vcmp.lt.s32.totalorder %v2356, %v2388
        %vm2390 = vcmp.lt.s32.totalorder %v2357, %v2388
        %vm2391 = vcmp.lt.s32.totalorder %v2358, %v2388
        %vm2392 = vcmp.lt.s32.totalorder %v2359, %v2388
        %vm2393 = vcmp.lt.s32.totalorder %v2360, %v2388
        %vm2394 = vcmp.lt.s32.totalorder %v2361, %v2388
        %vm2395 = vcmp.lt.s32.totalorder %v2362, %v2388
        %vm2396 = vcmp.lt.s32.totalorder %v2363, %v2388
        %vm2397 = vcmp.lt.s32.totalorder %v2364, %v2388
        %vm2398 = vcmp.lt.s32.totalorder %v2365, %v2388
        %vm2399 = vcmp.lt.s32.totalorder %v2366, %v2388
        %vm2400 = vcmp.lt.s32.totalorder %v2367, %v2388
        %vm2401 = vcmp.lt.s32.totalorder %v2368, %v2388
        %vm2402 = vcmp.lt.s32.totalorder %v2369, %v2388
        %vm2403 = vcmp.lt.s32.totalorder %v2370, %v2388
        %vm2404 = vcmp.lt.s32.totalorder %v2371, %v2388
        %vm2405 = vcmp.lt.s32.totalorder %v2372, %v2388
        %vm2406 = vcmp.lt.s32.totalorder %v2373, %v2388
        %vm2407 = vcmp.lt.s32.totalorder %v2374, %v2388
        %vm2408 = vcmp.lt.s32.totalorder %v2375, %v2388
        %vm2409 = vcmp.lt.s32.totalorder %v2376, %v2388
        %vm2410 = vcmp.lt.s32.totalorder %v2377, %v2388
        %vm2411 = vcmp.lt.s32.totalorder %v2378, %v2388
        %vm2412 = vcmp.lt.s32.totalorder %v2379, %v2388
        %vm2413 = vcmp.lt.s32.totalorder %v2380, %v2388
        %vm2414 = vcmp.lt.s32.totalorder %v2381, %v2388
        %vm2415 = vcmp.lt.s32.totalorder %v2382, %v2388
        %vm2416 = vcmp.lt.s32.totalorder %v2383, %v2388
        %vm2417 = vcmp.lt.s32.totalorder %v2384, %v2388
        %vm2418 = vcmp.lt.s32.totalorder %v2385, %v2388
        %vm2419 = vcmp.lt.s32.totalorder %v2386, %v2388
        %vm2420 = vcmp.lt.s32.totalorder %v2387, %v2388
        %v2421 = vsel %vm2389, 1, 0
        %v2422 = vsel %vm2390, 1, 0
        %v2423 = vsel %vm2391, 1, 0
        %v2424 = vsel %vm2392, 1, 0
        %v2425 = vsel %vm2393, 1, 0
        %v2426 = vsel %vm2394, 1, 0
        %v2427 = vsel %vm2395, 1, 0
        %v2428 = vsel %vm2396, 1, 0
        %v2429 = vsel %vm2397, 1, 0
        %v2430 = vsel %vm2398, 1, 0
        %v2431 = vsel %vm2399, 1, 0
        %v2432 = vsel %vm2400, 1, 0
        %v2433 = vsel %vm2401, 1, 0
        %v2434 = vsel %vm2402, 1, 0
        %v2435 = vsel %vm2403, 1, 0
        %v2436 = vsel %vm2404, 1, 0
        %v2437 = vsel %vm2405, 1, 0
        %v2438 = vsel %vm2406, 1, 0
        %v2439 = vsel %vm2407, 1, 0
        %v2440 = vsel %vm2408, 1, 0
        %v2441 = vsel %vm2409, 1, 0
        %v2442 = vsel %vm2410, 1, 0
        %v2443 = vsel %vm2411, 1, 0
        %v2444 = vsel %vm2412, 1, 0
        %v2445 = vsel %vm2413, 1, 0
        %v2446 = vsel %vm2414, 1, 0
        %v2447 = vsel %vm2415, 1, 0
        %v2448 = vsel %vm2416, 1, 0
        %v2449 = vsel %vm2417, 1, 0
        %v2450 = vsel %vm2418, 1, 0
        %v2451 = vsel %vm2419, 1, 0
        %v2452 = vsel %vm2420, 1, 0
        %v2453 = vcvt.s32.f32 %v2421
        %v2454 = vcvt.s32.f32 %v2422
        %v2455 = vcvt.s32.f32 %v2423
        %v2456 = vcvt.s32.f32 %v2424
        %v2457 = vcvt.s32.f32 %v2425
        %v2458 = vcvt.s32.f32 %v2426
        %v2459 = vcvt.s32.f32 %v2427
        %v2460 = vcvt.s32.f32 %v2428
        %v2461 = vcvt.s32.f32 %v2429
        %v2462 = vcvt.s32.f32 %v2430
        %v2463 = vcvt.s32.f32 %v2431
        %v2464 = vcvt.s32.f32 %v2432
        %v2465 = vcvt.s32.f32 %v2433
        %v2466 = vcvt.s32.f32 %v2434
        %v2467 = vcvt.s32.f32 %v2435
        %v2468 = vcvt.s32.f32 %v2436
        %v2469 = vcvt.s32.f32 %v2437
        %v2470 = vcvt.s32.f32 %v2438
        %v2471 = vcvt.s32.f32 %v2439
        %v2472 = vcvt.s32.f32 %v2440
        %v2473 = vcvt.s32.f32 %v2441
        %v2474 = vcvt.s32.f32 %v2442
        %v2475 = vcvt.s32.f32 %v2443
        %v2476 = vcvt.s32.f32 %v2444
        %v2477 = vcvt.s32.f32 %v2445
        %v2478 = vcvt.s32.f32 %v2446
        %v2479 = vcvt.s32.f32 %v2447
        %v2480 = vcvt.s32.f32 %v2448
        %v2481 = vcvt.s32.f32 %v2449
        %v2482 = vcvt.s32.f32 %v2450
        %v2483 = vcvt.s32.f32 %v2451
        %v2484 = vcvt.s32.f32 %v2452
        %v2485 = vmul.f32 %v2130, %v2453
        %v2486 = vmul.f32 %v2135, %v2454
        %v2487 = vmul.f32 %v2140, %v2455
        %v2488 = vmul.f32 %v2145, %v2456
        %v2489 = vmul.f32 %v2150, %v2457
        %v2490 = vmul.f32 %v2155, %v2458
        %v2491 = vmul.f32 %v2160, %v2459
        %v2492 = vmul.f32 %v2165, %v2460
        %v2493 = vmul.f32 %v2170, %v2461
        %v2494 = vmul.f32 %v2175, %v2462
        %v2495 = vmul.f32 %v2180, %v2463
        %v2496 = vmul.f32 %v2185, %v2464
        %v2497 = vmul.f32 %v2190, %v2465
        %v2498 = vmul.f32 %v2195, %v2466
        %v2499 = vmul.f32 %v2200, %v2467
        %v2500 = vmul.f32 %v2205, %v2468
        %v2501 = vmul.f32 %v2210, %v2469
        %v2502 = vmul.f32 %v2215, %v2470
        %v2503 = vmul.f32 %v2220, %v2471
        %v2504 = vmul.f32 %v2225, %v2472
        %v2505 = vmul.f32 %v2230, %v2473
        %v2506 = vmul.f32 %v2235, %v2474
        %v2507 = vmul.f32 %v2240, %v2475
        %v2508 = vmul.f32 %v2245, %v2476
        %v2509 = vmul.f32 %v2250, %v2477
        %v2510 = vmul.f32 %v2255, %v2478
        %v2511 = vmul.f32 %v2260, %v2479
        %v2512 = vmul.f32 %v2265, %v2480
        %v2513 = vmul.f32 %v2270, %v2481
        %v2514 = vmul.f32 %v2275, %v2482
        %v2515 = vmul.f32 %v2280, %v2483
        %v2516 = vmul.f32 %v2285, %v2484
        %v2517 = vadd.f32 %v2485, %v2486
        %v2518 = vadd.f32 %v2517, %v2487
        %v2519 = vadd.f32 %v2518, %v2488
        %v2520 = vadd.f32 %v2519, %v2489
        %v2521 = vadd.f32 %v2520, %v2490
        %v2522 = vadd.f32 %v2521, %v2491
        %v2523 = vadd.f32 %v2522, %v2492
        %v2524 = vadd.f32 %v2523, %v2493
        %v2525 = vadd.f32 %v2524, %v2494
        %v2526 = vadd.f32 %v2525, %v2495
        %v2527 = vadd.f32 %v2526, %v2496
        %v2528 = vadd.f32 %v2527, %v2497
        %v2529 = vadd.f32 %v2528, %v2498
        %v2530 = vadd.f32 %v2529, %v2499
        %v2531 = vadd.f32 %v2530, %v2500
        %v2532 = vadd.f32 %v2531, %v2501
        %v2533 = vadd.f32 %v2532, %v2502
        %v2534 = vadd.f32 %v2533, %v2503
        %v2535 = vadd.f32 %v2534, %v2504
        %v2536 = vadd.f32 %v2535, %v2505
        %v2537 = vadd.f32 %v2536, %v2506
        %v2538 = vadd.f32 %v2537, %v2507
        %v2539 = vadd.f32 %v2538, %v2508
        %v2540 = vadd.f32 %v2539, %v2509
        %v2541 = vadd.f32 %v2540, %v2510
        %v2542 = vadd.f32 %v2541, %v2511
        %v2543 = vadd.f32 %v2542, %v2512
        %v2544 = vadd.f32 %v2543, %v2513
        %v2545 = vadd.f32 %v2544, %v2514
        %v2546 = vadd.f32 %v2545, %v2515
        %v2547 = vadd.f32 %v2546, %v2516
        %v2548 = vrot.slane %v2547, 4
        %v2549 = vadd.f32 %v2547, %v2548
        %v2550 = vrot.slane %v2549, 2
        %v2551 = vadd.f32 %v2549, %v2550
        %v2552 = vrot.slane %v2551, 1
        %v2553 = vadd.f32 %v2551, %v2552
        %v2554 = vmul.f32 %v2485, %v2130
        %v2555 = vmul.f32 %v2486, %v2135
        %v2556 = vmul.f32 %v2487, %v2140
        %v2557 = vmul.f32 %v2488, %v2145
        %v2558 = vmul.f32 %v2489, %v2150
        %v2559 = vmul.f32 %v2490, %v2155
        %v2560 = vmul.f32 %v2491, %v2160
        %v2561 = vmul.f32 %v2492, %v2165
        %v2562 = vmul.f32 %v2493, %v2170
        %v2563 = vmul.f32 %v2494, %v2175
        %v2564 = vmul.f32 %v2495, %v2180
        %v2565 = vmul.f32 %v2496, %v2185
        %v2566 = vmul.f32 %v2497, %v2190
        %v2567 = vmul.f32 %v2498, %v2195
        %v2568 = vmul.f32 %v2499, %v2200
        %v2569 = vmul.f32 %v2500, %v2205
        %v2570 = vmul.f32 %v2501, %v2210
        %v2571 = vmul.f32 %v2502, %v2215
        %v2572 = vmul.f32 %v2503, %v2220
        %v2573 = vmul.f32 %v2504, %v2225
        %v2574 = vmul.f32 %v2505, %v2230
        %v2575 = vmul.f32 %v2506, %v2235
        %v2576 = vmul.f32 %v2507, %v2240
        %v2577 = vmul.f32 %v2508, %v2245
        %v2578 = vmul.f32 %v2509, %v2250
        %v2579 = vmul.f32 %v2510, %v2255
        %v2580 = vmul.f32 %v2511, %v2260
        %v2581 = vmul.f32 %v2512, %v2265
        %v2582 = vmul.f32 %v2513, %v2270
        %v2583 = vmul.f32 %v2514, %v2275
        %v2584 = vmul.f32 %v2515, %v2280
        %v2585 = vmul.f32 %v2516, %v2285
        %v2586 = vadd.f32 %v2554, %v2555
        %v2587 = vadd.f32 %v2586, %v2556
        %v2588 = vadd.f32 %v2587, %v2557
        %v2589 = vadd.f32 %v2588, %v2558
        %v2590 = vadd.f32 %v2589, %v2559
        %v2591 = vadd.f32 %v2590, %v2560
        %v2592 = vadd.f32 %v2591, %v2561
        %v2593 = vadd.f32 %v2592, %v2562
        %v2594 = vadd.f32 %v2593, %v2563
        %v2595 = vadd.f32 %v2594, %v2564
        %v2596 = vadd.f32 %v2595, %v2565
        %v2597 = vadd.f32 %v2596, %v2566
        %v2598 = vadd.f32 %v2597, %v2567
        %v2599 = vadd.f32 %v2598, %v2568
        %v2600 = vadd.f32 %v2599, %v2569
        %v2601 = vadd.f32 %v2600, %v2570
        %v2602 = vadd.f32 %v2601, %v2571
        %v2603 = vadd.f32 %v2602, %v2572
        %v2604 = vadd.f32 %v2603, %v2573
        %v2605 = vadd.f32 %v2604, %v2574
        %v2606 = vadd.f32 %v2605, %v2575
        %v2607 = vadd.f32 %v2606, %v2576
        %v2608 = vadd.f32 %v2607, %v2577
        %v2609 = vadd.f32 %v2608, %v2578
        %v2610 = vadd.f32 %v2609, %v2579
        %v2611 = vadd.f32 %v2610, %v2580
        %v2612 = vadd.f32 %v2611, %v2581
        %v2613 = vadd.f32 %v2612, %v2582
        %v2614 = vadd.f32 %v2613, %v2583
        %v2615 = vadd.f32 %v2614, %v2584
        %v2616 = vadd.f32 %v2615, %v2585
        %v2617 = vrot.slane %v2616, 4
        %v2618 = vadd.f32 %v2616, %v2617
        %v2619 = vrot.slane %v2618, 2
        %v2620 = vadd.f32 %v2618, %v2619
        %v2621 = vrot.slane %v2620, 1
        %v2622 = vadd.f32 %v2620, %v2621
        %vm2623 = vcmp.eq.s32.totalorder %v2323, 0
        %v2624 = vsel %vm2623, %v2553, 0.0
        %vm2625 = vcmp.eq.s32.totalorder %v2323, 1
        %v2626 = vsel %vm2625, %v2622, 0.0
        %v2627 = vadd.f32 %v2624, %v2626
        %2628 = vst [vmem:[%s324] sm:$0xff] %v2627
      $region52: #{maegin_forward.3} parent=43 // pred_fallthru
        _
      %s2629 = smul.u32 32, %s24
      %p2630 = scmp.lt.s32.totalorder %s2629, 63
      %s2631 = scalar_select %p2630, %s2629, 63
      %s2632 = smul.addr %s2631, 8
      %s2633 = scalar_lea.vmem %s6, %s2632
      %p2634 = scmp.lt.s32.totalorder %s24, 1
      %s2635 = scalar_select %p2634, %s24, 1
      %s2636 = smul.addr %s2635, 8
      %s2637 = scalar_lea.vmem %s7, %s2636
      // Predicated region
      $region53: #{maegin_forward.3} parent=43 // pred_check
        %p2638 = pneg %p183
      $region54: #{maegin_forward.3} parent=43 // pred_check_branch
        %2640 = sbr.rel (%p2638) target = $region56
      $region55: #{maegin_forward.3} parent=43 // pred_region
        %s2641 = smul.u32 32, %s24
      $region56: #{maegin_forward.3} parent=43 // pred_fallthru
        _
      // Predicated region
      $region57: #{maegin_forward.3} parent=43 // pred_check
        %p2642 = pneg %p209
      $region58: #{maegin_forward.3} parent=43 // pred_check_branch
        %2644 = sbr.rel (%p2642) target = $region60
      $region59: #{maegin_forward.3} parent=43 // pred_region
        _
      $region60: #{maegin_forward.3} parent=43 // pred_fallthru
        _
    $region44: #{maegin_forward.3} parent=5 // pred_fallthru
      _
    %p2645 = scmp.le.s32.totalorder 2, %s15
    // Predicated region
    $region61: #{maegin_forward.3} parent=5 // pred_check
      %p2646 = pneg %p2645
    $region62: #{maegin_forward.3} parent=5 // pred_check_branch
      %2648 = sbr.rel (%p2646) target = $region64
    $region63: #{maegin_forward.3} parent=5 // pred_region
      %s2649 = ssub.s32 %s15, 2
      // Predicated region
      $region65: #{maegin_forward.3} parent=63 // pred_check
        %p2650 = pneg %p189
      $region66: #{maegin_forward.3} parent=63 // pred_check_branch
        %2652 = sbr.rel (%p2650) target = $region68
      $region67: #{maegin_forward.3} parent=63 // pred_region
        %s2653 = smul.u32 32, %s26
        %p2654 = scmp.lt.s32.totalorder %s2653, 63
        %s2655 = scalar_select %p2654, %s2653, 63
        %s2656 = smul.addr %s2655, 8
        %s2657 = scalar_lea.vmem %s6, %s2656
      $region68: #{maegin_forward.3} parent=63 // pred_fallthru
        _
      // Predicated region
      $region69: #{maegin_forward.3} parent=63 // pred_check
        %p2658 = pneg %p215
      $region70: #{maegin_forward.3} parent=63 // pred_check_branch
        %2660 = sbr.rel (%p2658) target = $region72
      $region71: #{maegin_forward.3} parent=63 // pred_region
        %p2661 = scmp.lt.s32.totalorder %s26, 1
        %s2662 = scalar_select %p2661, %s26, 1
        %s2663 = smul.addr %s2662, 8
        %s2664 = scalar_lea.vmem %s7, %s2663
      $region72: #{maegin_forward.3} parent=63 // pred_fallthru
        _
    $region64: #{maegin_forward.3} parent=5 // pred_fallthru
      _
  $region6: #{maegin_forward.3} parent=0 // loop_footer
    %s19 = sadd.s32 1, %s15
  $region7: #{maegin_forward.3} parent=0 // loop_footer_branch
    %14 = sbr.rel target = $region3
  $region8: #{maegin_forward.3} parent=0 // loop_exit
    _

// kernel: maegin_forward.5
$region0: #{maegin_forward.5}
  #allocation0 [shape = 'u32[]', space=smem, size = 0x4, offset = 0x4, fixed_abs, tag = 'smem constant byte address 0x4 - core index']
  #allocation1 [shape = 'u32[144,128]{1,0:T(1,128)}', space=vmem, size = 0x12000, scoped, tag = 'internal scratch']
  #allocation2 [shape = 'f32[1]{0:T(128)S(6)}', space=smem, size = 0x200, scoped, tag = 'scoped memory for maegin_forward.5']
  %s0 = inlined_call_operand.<no memory space> [shape: f32[1], index: 0, kind: input, shape index: {}]
  %s1 = inlined_call_operand.vmem [shape: f32[512,128], index: 1, kind: input, shape index: {}]
  %s2 = inlined_call_operand.vmem [shape: f32[1,128], index: 2, kind: input, shape index: {}]
  %s3 = inlined_call_operand.vmem [shape: f32[1,128], index: 3, kind: input, shape index: {}]
  %s4 = inlined_call_operand.vmem [shape: bf16[512,128], index: 4, kind: input, shape index: {}]
  %s5 = inlined_call_operand.vmem [shape: bf16[512,128], index: 5, kind: input, shape index: {}]
  %s6 = inlined_call_operand.vmem [shape: f32[128,128], index: 6, kind: input, shape index: {}]
  %s7 = inlined_call_operand.vmem [shape: f32[512,128], index: 7, kind: output, shape index: {}]
  %s8 = sld [smem:[#allocation0]]
  $region38: #{maegin_forward.5} parent=0
    _
  %s10 = ssub.s32 1, %s8
  %s11 = scalar_select 0, %s10, %s8
  %12 = sst [smem:[#allocation2]] %s0
  // Predicated region
  $region2: #{maegin_forward.5} parent=0 // pred_check
    _
  $region3: #{maegin_forward.5} parent=0 // pred_check_branch
    %14 = sbr.rel (0) target = $region5
  $region4: #{maegin_forward.5} parent=0 // pred_region
    _
  $region5: #{maegin_forward.5} parent=0 // pred_fallthru
    _
  // Predicated region
  $region6: #{maegin_forward.5} parent=0 // pred_check
    _
  $region7: #{maegin_forward.5} parent=0 // pred_check_branch
    %16 = sbr.rel (0) target = $region9
  $region8: #{maegin_forward.5} parent=0 // pred_region
    _
  $region9: #{maegin_forward.5} parent=0 // pred_fallthru
    _
  // Predicated region
  $region10: #{maegin_forward.5} parent=0 // pred_check
    _
  $region11: #{maegin_forward.5} parent=0 // pred_check_branch
    %18 = sbr.rel (0) target = $region13
  $region12: #{maegin_forward.5} parent=0 // pred_region
    _
  $region13: #{maegin_forward.5} parent=0 // pred_fallthru
    _
  // Predicated region
  $region14: #{maegin_forward.5} parent=0 // pred_check
    _
  $region15: #{maegin_forward.5} parent=0 // pred_check_branch
    %20 = sbr.rel (0) target = $region17
  $region16: #{maegin_forward.5} parent=0 // pred_region
    _
  $region17: #{maegin_forward.5} parent=0 // pred_fallthru
    _
  // Predicated region
  $region18: #{maegin_forward.5} parent=0 // pred_check
    _
  $region19: #{maegin_forward.5} parent=0 // pred_check_branch
    %22 = sbr.rel (0) target = $region21
  $region20: #{maegin_forward.5} parent=0 // pred_region
    _
  $region21: #{maegin_forward.5} parent=0 // pred_fallthru
    _
  // Predicated region
  $region22: #{maegin_forward.5} parent=0 // pred_check
    _
  $region23: #{maegin_forward.5} parent=0 // pred_check_branch
    %24 = sbr.rel (0) target = $region25
  $region24: #{maegin_forward.5} parent=0 // pred_region
    _
  $region25: #{maegin_forward.5} parent=0 // pred_fallthru
    _
  // Predicated region
  $region26: #{maegin_forward.5} parent=0 // pred_check
    _
  $region27: #{maegin_forward.5} parent=0 // pred_check_branch
    %26 = sbr.rel (0) target = $region29
  $region28: #{maegin_forward.5} parent=0 // pred_region
    _
  $region29: #{maegin_forward.5} parent=0 // pred_fallthru
    _
  %v27 = vld [vmem:[%s1] sm:$0xff]
  %v28 = vld [vmem:[%s1 + $0x8] sm:$0xff]
  %v29 = vld [vmem:[%s1 + $0x10] sm:$0xff]
  %v30 = vld [vmem:[%s1 + $0x18] sm:$0xff]
  %v31 = vld [vmem:[%s1 + $0x20] sm:$0xff]
  %v32 = vld [vmem:[%s1 + $0x28] sm:$0xff]
  %v33 = vld [vmem:[%s1 + $0x30] sm:$0xff]
  %v34 = vld [vmem:[%s1 + $0x38] sm:$0xff]
  %v35 = vld [vmem:[%s1 + $0x40] sm:$0xff]
  %v36 = vld [vmem:[%s1 + $0x48] sm:$0xff]
  %v37 = vld [vmem:[%s1 + $0x50] sm:$0xff]
  %v38 = vld [vmem:[%s1 + $0x58] sm:$0xff]
  %v39 = vld [vmem:[%s1 + $0x60] sm:$0xff]
  %v40 = vld [vmem:[%s1 + $0x68] sm:$0xff]
  %v41 = vld [vmem:[%s1 + $0x70] sm:$0xff]
  %v42 = vld [vmem:[%s1 + $0x78] sm:$0xff]
  %v43 = vld [vmem:[%s1 + $0x80] sm:$0xff]
  %v44 = vld [vmem:[%s1 + $0x88] sm:$0xff]
  %v45 = vld [vmem:[%s1 + $0x90] sm:$0xff]
  %v46 = vld [vmem:[%s1 + $0x98] sm:$0xff]
  %v47 = vld [vmem:[%s1 + $0xa0] sm:$0xff]
  %v48 = vld [vmem:[%s1 + $0xa8] sm:$0xff]
  %v49 = vld [vmem:[%s1 + $0xb0] sm:$0xff]
  %v50 = vld [vmem:[%s1 + $0xb8] sm:$0xff]
  %v51 = vld [vmem:[%s1 + $0xc0] sm:$0xff]
  %v52 = vld [vmem:[%s1 + $0xc8] sm:$0xff]
  %v53 = vld [vmem:[%s1 + $0xd0] sm:$0xff]
  %v54 = vld [vmem:[%s1 + $0xd8] sm:$0xff]
  %v55 = vld [vmem:[%s1 + $0xe0] sm:$0xff]
  %v56 = vld [vmem:[%s1 + $0xe8] sm:$0xff]
  %v57 = vld [vmem:[%s1 + $0xf0] sm:$0xff]
  %v58 = vld [vmem:[%s1 + $0xf8] sm:$0xff]
  %v59 = vld [vmem:[%s1 + $0x100] sm:$0xff]
  %v60 = vld [vmem:[%s1 + $0x108] sm:$0xff]
  %v61 = vld [vmem:[%s1 + $0x110] sm:$0xff]
  %v62 = vld [vmem:[%s1 + $0x118] sm:$0xff]
  %v63 = vld [vmem:[%s1 + $0x120] sm:$0xff]
  %v64 = vld [vmem:[%s1 + $0x128] sm:$0xff]
  %v65 = vld [vmem:[%s1 + $0x130] sm:$0xff]
  %v66 = vld [vmem:[%s1 + $0x138] sm:$0xff]
  %v67 = vld [vmem:[%s1 + $0x140] sm:$0xff]
  %v68 = vld [vmem:[%s1 + $0x148] sm:$0xff]
  %v69 = vld [vmem:[%s1 + $0x150] sm:$0xff]
  %v70 = vld [vmem:[%s1 + $0x158] sm:$0xff]
  %v71 = vld [vmem:[%s1 + $0x160] sm:$0xff]
  %v72 = vld [vmem:[%s1 + $0x168] sm:$0xff]
  %v73 = vld [vmem:[%s1 + $0x170] sm:$0xff]
  %v74 = vld [vmem:[%s1 + $0x178] sm:$0xff]
  %v75 = vld [vmem:[%s1 + $0x180] sm:$0xff]
  %v76 = vld [vmem:[%s1 + $0x188] sm:$0xff]
  %v77 = vld [vmem:[%s1 + $0x190] sm:$0xff]
  %v78 = vld [vmem:[%s1 + $0x198] sm:$0xff]
  %v79 = vld [vmem:[%s1 + $0x1a0] sm:$0xff]
  %v80 = vld [vmem:[%s1 + $0x1a8] sm:$0xff]
  %v81 = vld [vmem:[%s1 + $0x1b0] sm:$0xff]
  %v82 = vld [vmem:[%s1 + $0x1b8] sm:$0xff]
  %v83 = vld [vmem:[%s1 + $0x1c0] sm:$0xff]
  %v84 = vld [vmem:[%s1 + $0x1c8] sm:$0xff]
  %v85 = vld [vmem:[%s1 + $0x1d0] sm:$0xff]
  %v86 = vld [vmem:[%s1 + $0x1d8] sm:$0xff]
  %v87 = vld [vmem:[%s1 + $0x1e0] sm:$0xff]
  %v88 = vld [vmem:[%s1 + $0x1e8] sm:$0xff]
  %v89 = vld [vmem:[%s1 + $0x1f0] sm:$0xff]
  %v90 = vld [vmem:[%s1 + $0x1f8] sm:$0xff]
  %v91 = vld [vmem:[%s2] sm:$0x1]
  %v93 = vlaneseq
  %v94 = vshrl.u32 %v93, 7
  %v95 = vsub.s32 0, %v94
  %v96 = vrot.slane %v91, %v95
  %v98 = vmul.f32 %v27, %v96
  %v99 = vmul.f32 %v28, %v96
  %v100 = vmul.f32 %v29, %v96
  %v101 = vmul.f32 %v30, %v96
  %v102 = vmul.f32 %v31, %v96
  %v103 = vmul.f32 %v32, %v96
  %v104 = vmul.f32 %v33, %v96
  %v105 = vmul.f32 %v34, %v96
  %v106 = vmul.f32 %v35, %v96
  %v107 = vmul.f32 %v36, %v96
  %v108 = vmul.f32 %v37, %v96
  %v109 = vmul.f32 %v38, %v96
  %v110 = vmul.f32 %v39, %v96
  %v111 = vmul.f32 %v40, %v96
  %v112 = vmul.f32 %v41, %v96
  %v113 = vmul.f32 %v42, %v96
  %v114 = vmul.f32 %v43, %v96
  %v115 = vmul.f32 %v44, %v96
  %v116 = vmul.f32 %v45, %v96
  %v117 = vmul.f32 %v46, %v96
  %v118 = vmul.f32 %v47, %v96
  %v119 = vmul.f32 %v48, %v96
  %v120 = vmul.f32 %v49, %v96
  %v121 = vmul.f32 %v50, %v96
  %v122 = vmul.f32 %v51, %v96
  %v123 = vmul.f32 %v52, %v96
  %v124 = vmul.f32 %v53, %v96
  %v125 = vmul.f32 %v54, %v96
  %v126 = vmul.f32 %v55, %v96
  %v127 = vmul.f32 %v56, %v96
  %v128 = vmul.f32 %v57, %v96
  %v129 = vmul.f32 %v58, %v96
  %v130 = vmul.f32 %v59, %v96
  %v131 = vmul.f32 %v60, %v96
  %v132 = vmul.f32 %v61, %v96
  %v133 = vmul.f32 %v62, %v96
  %v134 = vmul.f32 %v63, %v96
  %v135 = vmul.f32 %v64, %v96
  %v136 = vmul.f32 %v65, %v96
  %v137 = vmul.f32 %v66, %v96
  %v138 = vmul.f32 %v67, %v96
  %v139 = vmul.f32 %v68, %v96
  %v140 = vmul.f32 %v69, %v96
  %v141 = vmul.f32 %v70, %v96
  %v142 = vmul.f32 %v71, %v96
  %v143 = vmul.f32 %v72, %v96
  %v144 = vmul.f32 %v73, %v96
  %v145 = vmul.f32 %v74, %v96
  %v146 = vmul.f32 %v75, %v96
  %v147 = vmul.f32 %v76, %v96
  %v148 = vmul.f32 %v77, %v96
  %v149 = vmul.f32 %v78, %v96
  %v150 = vmul.f32 %v79, %v96
  %v151 = vmul.f32 %v80, %v96
  %v152 = vmul.f32 %v81, %v96
  %v153 = vmul.f32 %v82, %v96
  %v154 = vmul.f32 %v83, %v96
  %v155 = vmul.f32 %v84, %v96
  %v156 = vmul.f32 %v85, %v96
  %v157 = vmul.f32 %v86, %v96
  %v158 = vmul.f32 %v87, %v96
  %v159 = vmul.f32 %v88, %v96
  %v160 = vmul.f32 %v89, %v96
  %v161 = vmul.f32 %v90, %v96
  %v162 = vld [vmem:[%s3] sm:$0x1]
  %v164 = vlaneseq
  %v165 = vshrl.u32 %v164, 7
  %v166 = vsub.s32 0, %v165
  %v167 = vrot.slane %v162, %v166
  %v169 = vadd.f32 %v98, %v167
  %v170 = vadd.f32 %v99, %v167
  %v171 = vadd.f32 %v100, %v167
  %v172 = vadd.f32 %v101, %v167
  %v173 = vadd.f32 %v102, %v167
  %v174 = vadd.f32 %v103, %v167
  %v175 = vadd.f32 %v104, %v167
  %v176 = vadd.f32 %v105, %v167
  %v177 = vadd.f32 %v106, %v167
  %v178 = vadd.f32 %v107, %v167
  %v179 = vadd.f32 %v108, %v167
  %v180 = vadd.f32 %v109, %v167
  %v181 = vadd.f32 %v110, %v167
  %v182 = vadd.f32 %v111, %v167
  %v183 = vadd.f32 %v112, %v167
  %v184 = vadd.f32 %v113, %v167
  %v185 = vadd.f32 %v114, %v167
  %v186 = vadd.f32 %v115, %v167
  %v187 = vadd.f32 %v116, %v167
  %v188 = vadd.f32 %v117, %v167
  %v189 = vadd.f32 %v118, %v167
  %v190 = vadd.f32 %v119, %v167
  %v191 = vadd.f32 %v120, %v167
  %v192 = vadd.f32 %v121, %v167
  %v193 = vadd.f32 %v122, %v167
  %v194 = vadd.f32 %v123, %v167
  %v195 = vadd.f32 %v124, %v167
  %v196 = vadd.f32 %v125, %v167
  %v197 = vadd.f32 %v126, %v167
  %v198 = vadd.f32 %v127, %v167
  %v199 = vadd.f32 %v128, %v167
  %v200 = vadd.f32 %v129, %v167
  %v201 = vadd.f32 %v130, %v167
  %v202 = vadd.f32 %v131, %v167
  %v203 = vadd.f32 %v132, %v167
  %v204 = vadd.f32 %v133, %v167
  %v205 = vadd.f32 %v134, %v167
  %v206 = vadd.f32 %v135, %v167
  %v207 = vadd.f32 %v136, %v167
  %v208 = vadd.f32 %v137, %v167
  %v209 = vadd.f32 %v138, %v167
  %v210 = vadd.f32 %v139, %v167
  %v211 = vadd.f32 %v140, %v167
  %v212 = vadd.f32 %v141, %v167
  %v213 = vadd.f32 %v142, %v167
  %v214 = vadd.f32 %v143, %v167
  %v215 = vadd.f32 %v144, %v167
  %v216 = vadd.f32 %v145, %v167
  %v217 = vadd.f32 %v146, %v167
  %v218 = vadd.f32 %v147, %v167
  %v219 = vadd.f32 %v148, %v167
  %v220 = vadd.f32 %v149, %v167
  %v221 = vadd.f32 %v150, %v167
  %v222 = vadd.f32 %v151, %v167
  %v223 = vadd.f32 %v152, %v167
  %v224 = vadd.f32 %v153, %v167
  %v225 = vadd.f32 %v154, %v167
  %v226 = vadd.f32 %v155, %v167
  %v227 = vadd.f32 %v156, %v167
  %v228 = vadd.f32 %v157, %v167
  %v229 = vadd.f32 %v158, %v167
  %v230 = vadd.f32 %v159, %v167
  %v231 = vadd.f32 %v160, %v167
  %v232 = vadd.f32 %v161, %v167
  %s233 = sld [smem:[#allocation2]]
  %vm234 = vcmp.ge.f32.partialorder %v169, 0.0
  %vm235 = vcmp.ge.f32.partialorder %v170, 0.0
  %vm236 = vcmp.ge.f32.partialorder %v171, 0.0
  %vm237 = vcmp.ge.f32.partialorder %v172, 0.0
  %vm238 = vcmp.ge.f32.partialorder %v173, 0.0
  %vm239 = vcmp.ge.f32.partialorder %v174, 0.0
  %vm240 = vcmp.ge.f32.partialorder %v175, 0.0
  %vm241 = vcmp.ge.f32.partialorder %v176, 0.0
  %vm242 = vcmp.ge.f32.partialorder %v177, 0.0
  %vm243 = vcmp.ge.f32.partialorder %v178, 0.0
  %vm244 = vcmp.ge.f32.partialorder %v179, 0.0
  %vm245 = vcmp.ge.f32.partialorder %v180, 0.0
  %vm246 = vcmp.ge.f32.partialorder %v181, 0.0
  %vm247 = vcmp.ge.f32.partialorder %v182, 0.0
  %vm248 = vcmp.ge.f32.partialorder %v183, 0.0
  %vm249 = vcmp.ge.f32.partialorder %v184, 0.0
  %vm250 = vcmp.ge.f32.partialorder %v185, 0.0
  %vm251 = vcmp.ge.f32.partialorder %v186, 0.0
  %vm252 = vcmp.ge.f32.partialorder %v187, 0.0
  %vm253 = vcmp.ge.f32.partialorder %v188, 0.0
  %vm254 = vcmp.ge.f32.partialorder %v189, 0.0
  %vm255 = vcmp.ge.f32.partialorder %v190, 0.0
  %vm256 = vcmp.ge.f32.partialorder %v191, 0.0
  %vm257 = vcmp.ge.f32.partialorder %v192, 0.0
  %vm258 = vcmp.ge.f32.partialorder %v193, 0.0
  %vm259 = vcmp.ge.f32.partialorder %v194, 0.0
  %vm260 = vcmp.ge.f32.partialorder %v195, 0.0
  %vm261 = vcmp.ge.f32.partialorder %v196, 0.0
  %vm262 = vcmp.ge.f32.partialorder %v197, 0.0
  %vm263 = vcmp.ge.f32.partialorder %v198, 0.0
  %vm264 = vcmp.ge.f32.partialorder %v199, 0.0
  %vm265 = vcmp.ge.f32.partialorder %v200, 0.0
  %vm266 = vcmp.ge.f32.partialorder %v201, 0.0
  %vm267 = vcmp.ge.f32.partialorder %v202, 0.0
  %vm268 = vcmp.ge.f32.partialorder %v203, 0.0
  %vm269 = vcmp.ge.f32.partialorder %v204, 0.0
  %vm270 = vcmp.ge.f32.partialorder %v205, 0.0
  %vm271 = vcmp.ge.f32.partialorder %v206, 0.0
  %vm272 = vcmp.ge.f32.partialorder %v207, 0.0
  %vm273 = vcmp.ge.f32.partialorder %v208, 0.0
  %vm274 = vcmp.ge.f32.partialorder %v209, 0.0
  %vm275 = vcmp.ge.f32.partialorder %v210, 0.0
  %vm276 = vcmp.ge.f32.partialorder %v211, 0.0
  %vm277 = vcmp.ge.f32.partialorder %v212, 0.0
  %vm278 = vcmp.ge.f32.partialorder %v213, 0.0
  %vm279 = vcmp.ge.f32.partialorder %v214, 0.0
  %vm280 = vcmp.ge.f32.partialorder %v215, 0.0
  %vm281 = vcmp.ge.f32.partialorder %v216, 0.0
  %vm282 = vcmp.ge.f32.partialorder %v217, 0.0
  %vm283 = vcmp.ge.f32.partialorder %v218, 0.0
  %vm284 = vcmp.ge.f32.partialorder %v219, 0.0
  %vm285 = vcmp.ge.f32.partialorder %v220, 0.0
  %vm286 = vcmp.ge.f32.partialorder %v221, 0.0
  %vm287 = vcmp.ge.f32.partialorder %v222, 0.0
  %vm288 = vcmp.ge.f32.partialorder %v223, 0.0
  %vm289 = vcmp.ge.f32.partialorder %v224, 0.0
  %vm290 = vcmp.ge.f32.partialorder %v225, 0.0
  %vm291 = vcmp.ge.f32.partialorder %v226, 0.0
  %vm292 = vcmp.ge.f32.partialorder %v227, 0.0
  %vm293 = vcmp.ge.f32.partialorder %v228, 0.0
  %vm294 = vcmp.ge.f32.partialorder %v229, 0.0
  %vm295 = vcmp.ge.f32.partialorder %v230, 0.0
  %vm296 = vcmp.ge.f32.partialorder %v231, 0.0
  %vm297 = vcmp.ge.f32.partialorder %v232, 0.0
  %v298 = vstv %s233
  %v299 = vmul.f32 %v298, %v169
  %v300 = vmul.f32 %v298, %v170
  %v301 = vmul.f32 %v298, %v171
  %v302 = vmul.f32 %v298, %v172
  %v303 = vmul.f32 %v298, %v173
  %v304 = vmul.f32 %v298, %v174
  %v305 = vmul.f32 %v298, %v175
  %v306 = vmul.f32 %v298, %v176
  %v307 = vmul.f32 %v298, %v177
  %v308 = vmul.f32 %v298, %v178
  %v309 = vmul.f32 %v298, %v179
  %v310 = vmul.f32 %v298, %v180
  %v311 = vmul.f32 %v298, %v181
  %v312 = vmul.f32 %v298, %v182
  %v313 = vmul.f32 %v298, %v183
  %v314 = vmul.f32 %v298, %v184
  %v315 = vmul.f32 %v298, %v185
  %v316 = vmul.f32 %v298, %v186
  %v317 = vmul.f32 %v298, %v187
  %v318 = vmul.f32 %v298, %v188
  %v319 = vmul.f32 %v298, %v189
  %v320 = vmul.f32 %v298, %v190
  %v321 = vmul.f32 %v298, %v191
  %v322 = vmul.f32 %v298, %v192
  %v323 = vmul.f32 %v298, %v193
  %v324 = vmul.f32 %v298, %v194
  %v325 = vmul.f32 %v298, %v195
  %v326 = vmul.f32 %v298, %v196
  %v327 = vmul.f32 %v298, %v197
  %v328 = vmul.f32 %v298, %v198
  %v329 = vmul.f32 %v298, %v199
  %v330 = vmul.f32 %v298, %v200
  %v331 = vmul.f32 %v298, %v201
  %v332 = vmul.f32 %v298, %v202
  %v333 = vmul.f32 %v298, %v203
  %v334 = vmul.f32 %v298, %v204
  %v335 = vmul.f32 %v298, %v205
  %v336 = vmul.f32 %v298, %v206
  %v337 = vmul.f32 %v298, %v207
  %v338 = vmul.f32 %v298, %v208
  %v339 = vmul.f32 %v298, %v209
  %v340 = vmul.f32 %v298, %v210
  %v341 = vmul.f32 %v298, %v211
  %v342 = vmul.f32 %v298, %v212
  %v343 = vmul.f32 %v298, %v213
  %v344 = vmul.f32 %v298, %v214
  %v345 = vmul.f32 %v298, %v215
  %v346 = vmul.f32 %v298, %v216
  %v347 = vmul.f32 %v298, %v217
  %v348 = vmul.f32 %v298, %v218
  %v349 = vmul.f32 %v298, %v219
  %v350 = vmul.f32 %v298, %v220
  %v351 = vmul.f32 %v298, %v221
  %v352 = vmul.f32 %v298, %v222
  %v353 = vmul.f32 %v298, %v223
  %v354 = vmul.f32 %v298, %v224
  %v355 = vmul.f32 %v298, %v225
  %v356 = vmul.f32 %v298, %v226
  %v357 = vmul.f32 %v298, %v227
  %v358 = vmul.f32 %v298, %v228
  %v359 = vmul.f32 %v298, %v229
  %v360 = vmul.f32 %v298, %v230
  %v361 = vmul.f32 %v298, %v231
  %v362 = vmul.f32 %v298, %v232
  %v363 = vsel %vm234, %v169, %v299
  %v364 = vsel %vm235, %v170, %v300
  %v365 = vsel %vm236, %v171, %v301
  %v366 = vsel %vm237, %v172, %v302
  %v367 = vsel %vm238, %v173, %v303
  %v368 = vsel %vm239, %v174, %v304
  %v369 = vsel %vm240, %v175, %v305
  %v370 = vsel %vm241, %v176, %v306
  %v371 = vsel %vm242, %v177, %v307
  %v372 = vsel %vm243, %v178, %v308
  %v373 = vsel %vm244, %v179, %v309
  %v374 = vsel %vm245, %v180, %v310
  %v375 = vsel %vm246, %v181, %v311
  %v376 = vsel %vm247, %v182, %v312
  %v377 = vsel %vm248, %v183, %v313
  %v378 = vsel %vm249, %v184, %v314
  %v379 = vsel %vm250, %v185, %v315
  %v380 = vsel %vm251, %v186, %v316
  %v381 = vsel %vm252, %v187, %v317
  %v382 = vsel %vm253, %v188, %v318
  %v383 = vsel %vm254, %v189, %v319
  %v384 = vsel %vm255, %v190, %v320
  %v385 = vsel %vm256, %v191, %v321
  %v386 = vsel %vm257, %v192, %v322
  %v387 = vsel %vm258, %v193, %v323
  %v388 = vsel %vm259, %v194, %v324
  %v389 = vsel %vm260, %v195, %v325
  %v390 = vsel %vm261, %v196, %v326
  %v391 = vsel %vm262, %v197, %v327
  %v392 = vsel %vm263, %v198, %v328
  %v393 = vsel %vm264, %v199, %v329
  %v394 = vsel %vm265, %v200, %v330
  %v395 = vsel %vm266, %v201, %v331
  %v396 = vsel %vm267, %v202, %v332
  %v397 = vsel %vm268, %v203, %v333
  %v398 = vsel %vm269, %v204, %v334
  %v399 = vsel %vm270, %v205, %v335
  %v400 = vsel %vm271, %v206, %v336
  %v401 = vsel %vm272, %v207, %v337
  %v402 = vsel %vm273, %v208, %v338
  %v403 = vsel %vm274, %v209, %v339
  %v404 = vsel %vm275, %v210, %v340
  %v405 = vsel %vm276, %v211, %v341
  %v406 = vsel %vm277, %v212, %v342
  %v407 = vsel %vm278, %v213, %v343
  %v408 = vsel %vm279, %v214, %v344
  %v409 = vsel %vm280, %v215, %v345
  %v410 = vsel %vm281, %v216, %v346
  %v411 = vsel %vm282, %v217, %v347
  %v412 = vsel %vm283, %v218, %v348
  %v413 = vsel %vm284, %v219, %v349
  %v414 = vsel %vm285, %v220, %v350
  %v415 = vsel %vm286, %v221, %v351
  %v416 = vsel %vm287, %v222, %v352
  %v417 = vsel %vm288, %v223, %v353
  %v418 = vsel %vm289, %v224, %v354
  %v419 = vsel %vm290, %v225, %v355
  %v420 = vsel %vm291, %v226, %v356
  %v421 = vsel %vm292, %v227, %v357
  %v422 = vsel %vm293, %v228, %v358
  %v423 = vsel %vm294, %v229, %v359
  %v424 = vsel %vm295, %v230, %v360
  %v425 = vsel %vm296, %v231, %v361
  %v426 = vsel %vm297, %v232, %v362
  %v427 = vld [vmem:[%s4] sm:$0xf]
  %v428 = vld [vmem:[%s4 + $0x4] sm:$0xf]
  %v429 = vld [vmem:[%s4 + $0x8] sm:$0xf]
  %v430 = vld [vmem:[%s4 + $0xc] sm:$0xf]
  %v431 = vld [vmem:[%s4 + $0x10] sm:$0xf]
  %v432 = vld [vmem:[%s4 + $0x14] sm:$0xf]
  %v433 = vld [vmem:[%s4 + $0x18] sm:$0xf]
  %v434 = vld [vmem:[%s4 + $0x1c] sm:$0xf]
  %v435 = vld [vmem:[%s4 + $0x20] sm:$0xf]
  %v436 = vld [vmem:[%s4 + $0x24] sm:$0xf]
  %v437 = vld [vmem:[%s4 + $0x28] sm:$0xf]
  %v438 = vld [vmem:[%s4 + $0x2c] sm:$0xf]
  %v439 = vld [vmem:[%s4 + $0x30] sm:$0xf]
  %v440 = vld [vmem:[%s4 + $0x34] sm:$0xf]
  %v441 = vld [vmem:[%s4 + $0x38] sm:$0xf]
  %v442 = vld [vmem:[%s4 + $0x3c] sm:$0xf]
  %v443 = vld [vmem:[%s4 + $0x40] sm:$0xf]
  %v444 = vld [vmem:[%s4 + $0x44] sm:$0xf]
  %v445 = vld [vmem:[%s4 + $0x48] sm:$0xf]
  %v446 = vld [vmem:[%s4 + $0x4c] sm:$0xf]
  %v447 = vld [vmem:[%s4 + $0x50] sm:$0xf]
  %v448 = vld [vmem:[%s4 + $0x54] sm:$0xf]
  %v449 = vld [vmem:[%s4 + $0x58] sm:$0xf]
  %v450 = vld [vmem:[%s4 + $0x5c] sm:$0xf]
  %v451 = vld [vmem:[%s4 + $0x60] sm:$0xf]
  %v452 = vld [vmem:[%s4 + $0x64] sm:$0xf]
  %v453 = vld [vmem:[%s4 + $0x68] sm:$0xf]
  %v454 = vld [vmem:[%s4 + $0x6c] sm:$0xf]
  %v455 = vld [vmem:[%s4 + $0x70] sm:$0xf]
  %v456 = vld [vmem:[%s4 + $0x74] sm:$0xf]
  %v457 = vld [vmem:[%s4 + $0x78] sm:$0xf]
  %v458 = vld [vmem:[%s4 + $0x7c] sm:$0xf]
  %v459 = vld [vmem:[%s4 + $0x80] sm:$0xf]
  %v460 = vld [vmem:[%s4 + $0x84] sm:$0xf]
  %v461 = vld [vmem:[%s4 + $0x88] sm:$0xf]
  %v462 = vld [vmem:[%s4 + $0x8c] sm:$0xf]
  %v463 = vld [vmem:[%s4 + $0x90] sm:$0xf]
  %v464 = vld [vmem:[%s4 + $0x94] sm:$0xf]
  %v465 = vld [vmem:[%s4 + $0x98] sm:$0xf]
  %v466 = vld [vmem:[%s4 + $0x9c] sm:$0xf]
  %v467 = vld [vmem:[%s4 + $0xa0] sm:$0xf]
  %v468 = vld [vmem:[%s4 + $0xa4] sm:$0xf]
  %v469 = vld [vmem:[%s4 + $0xa8] sm:$0xf]
  %v470 = vld [vmem:[%s4 + $0xac] sm:$0xf]
  %v471 = vld [vmem:[%s4 + $0xb0] sm:$0xf]
  %v472 = vld [vmem:[%s4 + $0xb4] sm:$0xf]
  %v473 = vld [vmem:[%s4 + $0xb8] sm:$0xf]
  %v474 = vld [vmem:[%s4 + $0xbc] sm:$0xf]
  %v475 = vld [vmem:[%s4 + $0xc0] sm:$0xf]
  %v476 = vld [vmem:[%s4 + $0xc4] sm:$0xf]
  %v477 = vld [vmem:[%s4 + $0xc8] sm:$0xf]
  %v478 = vld [vmem:[%s4 + $0xcc] sm:$0xf]
  %v479 = vld [vmem:[%s4 + $0xd0] sm:$0xf]
  %v480 = vld [vmem:[%s4 + $0xd4] sm:$0xf]
  %v481 = vld [vmem:[%s4 + $0xd8] sm:$0xf]
  %v482 = vld [vmem:[%s4 + $0xdc] sm:$0xf]
  %v483 = vld [vmem:[%s4 + $0xe0] sm:$0xf]
  %v484 = vld [vmem:[%s4 + $0xe4] sm:$0xf]
  %v485 = vld [vmem:[%s4 + $0xe8] sm:$0xf]
  %v486 = vld [vmem:[%s4 + $0xec] sm:$0xf]
  %v487 = vld [vmem:[%s4 + $0xf0] sm:$0xf]
  %v488 = vld [vmem:[%s4 + $0xf4] sm:$0xf]
  %v489 = vld [vmem:[%s4 + $0xf8] sm:$0xf]
  %v490 = vld [vmem:[%s4 + $0xfc] sm:$0xf]
  %v491 = vunpack.c.l.bf16 %v427
  %v492 = vunpack.c.l.bf16 %v428
  %v493 = vunpack.c.l.bf16 %v429
  %v494 = vunpack.c.l.bf16 %v430
  %v495 = vunpack.c.l.bf16 %v431
  %v496 = vunpack.c.l.bf16 %v432
  %v497 = vunpack.c.l.bf16 %v433
  %v498 = vunpack.c.l.bf16 %v434
  %v499 = vunpack.c.l.bf16 %v435
  %v500 = vunpack.c.l.bf16 %v436
  %v501 = vunpack.c.l.bf16 %v437
  %v502 = vunpack.c.l.bf16 %v438
  %v503 = vunpack.c.l.bf16 %v439
  %v504 = vunpack.c.l.bf16 %v440
  %v505 = vunpack.c.l.bf16 %v441
  %v506 = vunpack.c.l.bf16 %v442
  %v507 = vunpack.c.l.bf16 %v443
  %v508 = vunpack.c.l.bf16 %v444
  %v509 = vunpack.c.l.bf16 %v445
  %v510 = vunpack.c.l.bf16 %v446
  %v511 = vunpack.c.l.bf16 %v447
  %v512 = vunpack.c.l.bf16 %v448
  %v513 = vunpack.c.l.bf16 %v449
  %v514 = vunpack.c.l.bf16 %v450
  %v515 = vunpack.c.l.bf16 %v451
  %v516 = vunpack.c.l.bf16 %v452
  %v517 = vunpack.c.l.bf16 %v453
  %v518 = vunpack.c.l.bf16 %v454
  %v519 = vunpack.c.l.bf16 %v455
  %v520 = vunpack.c.l.bf16 %v456
  %v521 = vunpack.c.l.bf16 %v457
  %v522 = vunpack.c.l.bf16 %v458
  %v523 = vunpack.c.l.bf16 %v459
  %v524 = vunpack.c.l.bf16 %v460
  %v525 = vunpack.c.l.bf16 %v461
  %v526 = vunpack.c.l.bf16 %v462
  %v527 = vunpack.c.l.bf16 %v463
  %v528 = vunpack.c.l.bf16 %v464
  %v529 = vunpack.c.l.bf16 %v465
  %v530 = vunpack.c.l.bf16 %v466
  %v531 = vunpack.c.l.bf16 %v467
  %v532 = vunpack.c.l.bf16 %v468
  %v533 = vunpack.c.l.bf16 %v469
  %v534 = vunpack.c.l.bf16 %v470
  %v535 = vunpack.c.l.bf16 %v471
  %v536 = vunpack.c.l.bf16 %v472
  %v537 = vunpack.c.l.bf16 %v473
  %v538 = vunpack.c.l.bf16 %v474
  %v539 = vunpack.c.l.bf16 %v475
  %v540 = vunpack.c.l.bf16 %v476
  %v541 = vunpack.c.l.bf16 %v477
  %v542 = vunpack.c.l.bf16 %v478
  %v543 = vunpack.c.l.bf16 %v479
  %v544 = vunpack.c.l.bf16 %v480
  %v545 = vunpack.c.l.bf16 %v481
  %v546 = vunpack.c.l.bf16 %v482
  %v547 = vunpack.c.l.bf16 %v483
  %v548 = vunpack.c.l.bf16 %v484
  %v549 = vunpack.c.l.bf16 %v485
  %v550 = vunpack.c.l.bf16 %v486
  %v551 = vunpack.c.l.bf16 %v487
  %v552 = vunpack.c.l.bf16 %v488
  %v553 = vunpack.c.l.bf16 %v489
  %v554 = vunpack.c.l.bf16 %v490
  %v555 = vld [vmem:[%s5] sm:$0xf]
  %v556 = vld [vmem:[%s5 + $0x4] sm:$0xf]
  %v557 = vld [vmem:[%s5 + $0x8] sm:$0xf]
  %v558 = vld [vmem:[%s5 + $0xc] sm:$0xf]
  %v559 = vld [vmem:[%s5 + $0x10] sm:$0xf]
  %v560 = vld [vmem:[%s5 + $0x14] sm:$0xf]
  %v561 = vld [vmem:[%s5 + $0x18] sm:$0xf]
  %v562 = vld [vmem:[%s5 + $0x1c] sm:$0xf]
  %v563 = vld [vmem:[%s5 + $0x20] sm:$0xf]
  %v564 = vld [vmem:[%s5 + $0x24] sm:$0xf]
  %v565 = vld [vmem:[%s5 + $0x28] sm:$0xf]
  %v566 = vld [vmem:[%s5 + $0x2c] sm:$0xf]
  %v567 = vld [vmem:[%s5 + $0x30] sm:$0xf]
  %v568 = vld [vmem:[%s5 + $0x34] sm:$0xf]
  %v569 = vld [vmem:[%s5 + $0x38] sm:$0xf]
  %v570 = vld [vmem:[%s5 + $0x3c] sm:$0xf]
  %v571 = vld [vmem:[%s5 + $0x40] sm:$0xf]
  %v572 = vld [vmem:[%s5 + $0x44] sm:$0xf]
  %v573 = vld [vmem:[%s5 + $0x48] sm:$0xf]
  %v574 = vld [vmem:[%s5 + $0x4c] sm:$0xf]
  %v575 = vld [vmem:[%s5 + $0x50] sm:$0xf]
  %v576 = vld [vmem:[%s5 + $0x54] sm:$0xf]
  %v577 = vld [vmem:[%s5 + $0x58] sm:$0xf]
  %v578 = vld [vmem:[%s5 + $0x5c] sm:$0xf]
  %v579 = vld [vmem:[%s5 + $0x60] sm:$0xf]
  %v580 = vld [vmem:[%s5 + $0x64] sm:$0xf]
  %v581 = vld [vmem:[%s5 + $0x68] sm:$0xf]
  %v582 = vld [vmem:[%s5 + $0x6c] sm:$0xf]
  %v583 = vld [vmem:[%s5 + $0x70] sm:$0xf]
  %v584 = vld [vmem:[%s5 + $0x74] sm:$0xf]
  %v585 = vld [vmem:[%s5 + $0x78] sm:$0xf]
  %v586 = vld [vmem:[%s5 + $0x7c] sm:$0xf]
  %v587 = vld [vmem:[%s5 + $0x80] sm:$0xf]
  %v588 = vld [vmem:[%s5 + $0x84] sm:$0xf]
  %v589 = vld [vmem:[%s5 + $0x88] sm:$0xf]
  %v590 = vld [vmem:[%s5 + $0x8c] sm:$0xf]
  %v591 = vld [vmem:[%s5 + $0x90] sm:$0xf]
  %v592 = vld [vmem:[%s5 + $0x94] sm:$0xf]
  %v593 = vld [vmem:[%s5 + $0x98] sm:$0xf]
  %v594 = vld [vmem:[%s5 + $0x9c] sm:$0xf]
  %v595 = vld [vmem:[%s5 + $0xa0] sm:$0xf]
  %v596 = vld [vmem:[%s5 + $0xa4] sm:$0xf]
  %v597 = vld [vmem:[%s5 + $0xa8] sm:$0xf]
  %v598 = vld [vmem:[%s5 + $0xac] sm:$0xf]
  %v599 = vld [vmem:[%s5 + $0xb0] sm:$0xf]
  %v600 = vld [vmem:[%s5 + $0xb4] sm:$0xf]
  %v601 = vld [vmem:[%s5 + $0xb8] sm:$0xf]
  %v602 = vld [vmem:[%s5 + $0xbc] sm:$0xf]
  %v603 = vld [vmem:[%s5 + $0xc0] sm:$0xf]
  %v604 = vld [vmem:[%s5 + $0xc4] sm:$0xf]
  %v605 = vld [vmem:[%s5 + $0xc8] sm:$0xf]
  %v606 = vld [vmem:[%s5 + $0xcc] sm:$0xf]
  %v607 = vld [vmem:[%s5 + $0xd0] sm:$0xf]
  %v608 = vld [vmem:[%s5 + $0xd4] sm:$0xf]
  %v609 = vld [vmem:[%s5 + $0xd8] sm:$0xf]
  %v610 = vld [vmem:[%s5 + $0xdc] sm:$0xf]
  %v611 = vld [vmem:[%s5 + $0xe0] sm:$0xf]
  %v612 = vld [vmem:[%s5 + $0xe4] sm:$0xf]
  %v613 = vld [vmem:[%s5 + $0xe8] sm:$0xf]
  %v614 = vld [vmem:[%s5 + $0xec] sm:$0xf]
  %v615 = vld [vmem:[%s5 + $0xf0] sm:$0xf]
  %v616 = vld [vmem:[%s5 + $0xf4] sm:$0xf]
  %v617 = vld [vmem:[%s5 + $0xf8] sm:$0xf]
  %v618 = vld [vmem:[%s5 + $0xfc] sm:$0xf]
  %v619 = vunpack.c.l.bf16 %v555
  %v620 = vunpack.c.l.bf16 %v556
  %v621 = vunpack.c.l.bf16 %v557
  %v622 = vunpack.c.l.bf16 %v558
  %v623 = vunpack.c.l.bf16 %v559
  %v624 = vunpack.c.l.bf16 %v560
  %v625 = vunpack.c.l.bf16 %v561
  %v626 = vunpack.c.l.bf16 %v562
  %v627 = vunpack.c.l.bf16 %v563
  %v628 = vunpack.c.l.bf16 %v564
  %v629 = vunpack.c.l.bf16 %v565
  %v630 = vunpack.c.l.bf16 %v566
  %v631 = vunpack.c.l.bf16 %v567
  %v632 = vunpack.c.l.bf16 %v568
  %v633 = vunpack.c.l.bf16 %v569
  %v634 = vunpack.c.l.bf16 %v570
  %v635 = vunpack.c.l.bf16 %v571
  %v636 = vunpack.c.l.bf16 %v572
  %v637 = vunpack.c.l.bf16 %v573
  %v638 = vunpack.c.l.bf16 %v574
  %v639 = vunpack.c.l.bf16 %v575
  %v640 = vunpack.c.l.bf16 %v576
  %v641 = vunpack.c.l.bf16 %v577
  %v642 = vunpack.c.l.bf16 %v578
  %v643 = vunpack.c.l.bf16 %v579
  %v644 = vunpack.c.l.bf16 %v580
  %v645 = vunpack.c.l.bf16 %v581
  %v646 = vunpack.c.l.bf16 %v582
  %v647 = vunpack.c.l.bf16 %v583
  %v648 = vunpack.c.l.bf16 %v584
  %v649 = vunpack.c.l.bf16 %v585
  %v650 = vunpack.c.l.bf16 %v586
  %v651 = vunpack.c.l.bf16 %v587
  %v652 = vunpack.c.l.bf16 %v588
  %v653 = vunpack.c.l.bf16 %v589
  %v654 = vunpack.c.l.bf16 %v590
  %v655 = vunpack.c.l.bf16 %v591
  %v656 = vunpack.c.l.bf16 %v592
  %v657 = vunpack.c.l.bf16 %v593
  %v658 = vunpack.c.l.bf16 %v594
  %v659 = vunpack.c.l.bf16 %v595
  %v660 = vunpack.c.l.bf16 %v596
  %v661 = vunpack.c.l.bf16 %v597
  %v662 = vunpack.c.l.bf16 %v598
  %v663 = vunpack.c.l.bf16 %v599
  %v664 = vunpack.c.l.bf16 %v600
  %v665 = vunpack.c.l.bf16 %v601
  %v666 = vunpack.c.l.bf16 %v602
  %v667 = vunpack.c.l.bf16 %v603
  %v668 = vunpack.c.l.bf16 %v604
  %v669 = vunpack.c.l.bf16 %v605
  %v670 = vunpack.c.l.bf16 %v606
  %v671 = vunpack.c.l.bf16 %v607
  %v672 = vunpack.c.l.bf16 %v608
  %v673 = vunpack.c.l.bf16 %v609
  %v674 = vunpack.c.l.bf16 %v610
  %v675 = vunpack.c.l.bf16 %v611
  %v676 = vunpack.c.l.bf16 %v612
  %v677 = vunpack.c.l.bf16 %v613
  %v678 = vunpack.c.l.bf16 %v614
  %v679 = vunpack.c.l.bf16 %v615
  %v680 = vunpack.c.l.bf16 %v616
  %v681 = vunpack.c.l.bf16 %v617
  %v682 = vunpack.c.l.bf16 %v618
  %v683 = vadd.f32 %v491, %v619
  %v684 = vadd.f32 %v492, %v620
  %v685 = vadd.f32 %v493, %v621
  %v686 = vadd.f32 %v494, %v622
  %v687 = vadd.f32 %v495, %v623
  %v688 = vadd.f32 %v496, %v624
  %v689 = vadd.f32 %v497, %v625
  %v690 = vadd.f32 %v498, %v626
  %v691 = vadd.f32 %v499, %v627
  %v692 = vadd.f32 %v500, %v628
  %v693 = vadd.f32 %v501, %v629
  %v694 = vadd.f32 %v502, %v630
  %v695 = vadd.f32 %v503, %v631
  %v696 = vadd.f32 %v504, %v632
  %v697 = vadd.f32 %v505, %v633
  %v698 = vadd.f32 %v506, %v634
  %v699 = vadd.f32 %v507, %v635
  %v700 = vadd.f32 %v508, %v636
  %v701 = vadd.f32 %v509, %v637
  %v702 = vadd.f32 %v510, %v638
  %v703 = vadd.f32 %v511, %v639
  %v704 = vadd.f32 %v512, %v640
  %v705 = vadd.f32 %v513, %v641
  %v706 = vadd.f32 %v514, %v642
  %v707 = vadd.f32 %v515, %v643
  %v708 = vadd.f32 %v516, %v644
  %v709 = vadd.f32 %v517, %v645
  %v710 = vadd.f32 %v518, %v646
  %v711 = vadd.f32 %v519, %v647
  %v712 = vadd.f32 %v520, %v648
  %v713 = vadd.f32 %v521, %v649
  %v714 = vadd.f32 %v522, %v650
  %v715 = vadd.f32 %v523, %v651
  %v716 = vadd.f32 %v524, %v652
  %v717 = vadd.f32 %v525, %v653
  %v718 = vadd.f32 %v526, %v654
  %v719 = vadd.f32 %v527, %v655
  %v720 = vadd.f32 %v528, %v656
  %v721 = vadd.f32 %v529, %v657
  %v722 = vadd.f32 %v530, %v658
  %v723 = vadd.f32 %v531, %v659
  %v724 = vadd.f32 %v532, %v660
  %v725 = vadd.f32 %v533, %v661
  %v726 = vadd.f32 %v534, %v662
  %v727 = vadd.f32 %v535, %v663
  %v728 = vadd.f32 %v536, %v664
  %v729 = vadd.f32 %v537, %v665
  %v730 = vadd.f32 %v538, %v666
  %v731 = vadd.f32 %v539, %v667
  %v732 = vadd.f32 %v540, %v668
  %v733 = vadd.f32 %v541, %v669
  %v734 = vadd.f32 %v542, %v670
  %v735 = vadd.f32 %v543, %v671
  %v736 = vadd.f32 %v544, %v672
  %v737 = vadd.f32 %v545, %v673
  %v738 = vadd.f32 %v546, %v674
  %v739 = vadd.f32 %v547, %v675
  %v740 = vadd.f32 %v548, %v676
  %v741 = vadd.f32 %v549, %v677
  %v742 = vadd.f32 %v550, %v678
  %v743 = vadd.f32 %v551, %v679
  %v744 = vadd.f32 %v552, %v680
  %v745 = vadd.f32 %v553, %v681
  %v746 = vadd.f32 %v554, %v682
  %v747 = vld [vmem:[%s6] sm:$0xff]
  %v748 = vld [vmem:[%s6 + $0x8] sm:$0xff]
  %v749 = vld [vmem:[%s6 + $0x10] sm:$0xff]
  %v750 = vld [vmem:[%s6 + $0x18] sm:$0xff]
  %v751 = vld [vmem:[%s6 + $0x20] sm:$0xff]
  %v752 = vld [vmem:[%s6 + $0x28] sm:$0xff]
  %v753 = vld [vmem:[%s6 + $0x30] sm:$0xff]
  %v754 = vld [vmem:[%s6 + $0x38] sm:$0xff]
  %v755 = vld [vmem:[%s6 + $0x40] sm:$0xff]
  %v756 = vld [vmem:[%s6 + $0x48] sm:$0xff]
  %v757 = vld [vmem:[%s6 + $0x50] sm:$0xff]
  %v758 = vld [vmem:[%s6 + $0x58] sm:$0xff]
  %v759 = vld [vmem:[%s6 + $0x60] sm:$0xff]
  %v760 = vld [vmem:[%s6 + $0x68] sm:$0xff]
  %v761 = vld [vmem:[%s6 + $0x70] sm:$0xff]
  %v762 = vld [vmem:[%s6 + $0x78] sm:$0xff]
  %763 = vmatprep.subr.mxu0 0.0
  %764 = vmatpush1.msra.mxu0 %v747
  %765 = vmatprep.subr.mxu0 0.0
  %766 = vmatpush1.msra.mxu0 %v748
  %767 = vmatprep.subr.mxu0 0.0
  %768 = vmatpush1.msra.mxu0 %v749
  %769 = vmatprep.subr.mxu0 0.0
  %770 = vmatpush1.msra.mxu0 %v750
  %771 = vmatprep.subr.mxu0 0.0
  %772 = vmatpush1.msra.mxu0 %v751
  %773 = vmatprep.subr.mxu0 0.0
  %774 = vmatpush1.msra.mxu0 %v752
  %775 = vmatprep.subr.mxu0 0.0
  %776 = vmatpush1.msra.mxu0 %v753
  %777 = vmatprep.subr.mxu0 0.0
  %778 = vmatpush1.msra.mxu0 %v754
  %779 = vmatprep.subr.mxu0 0.0
  %780 = vmatpush1.msra.mxu0 %v755
  %781 = vmatprep.subr.mxu0 0.0
  %782 = vmatpush1.msra.mxu0 %v756
  %783 = vmatprep.subr.mxu0 0.0
  %784 = vmatpush1.msra.mxu0 %v757
  %785 = vmatprep.subr.mxu0 0.0
  %786 = vmatpush1.msra.mxu0 %v758
  %787 = vmatprep.subr.mxu0 0.0
  %788 = vmatpush1.msra.mxu0 %v759
  %789 = vmatprep.subr.mxu0 0.0
  %790 = vmatpush1.msra.mxu0 %v760
  %791 = vmatprep.subr.mxu0 0.0
  %792 = vmatpush1.msra.mxu0 %v761
  %793 = vmatprep.subr.mxu0 0.0
  %794 = vmatpush1.msra.mxu0 %v762
  %795 = vmatprep.subr.mxu0 0.0
  %796 = vmatpush1.msra.mxu0 0.0
  %797 = vmatprep.subr.mxu0 0.0
  %798 = vmatpush1.msra.mxu0 0.0
  %799 = vmatprep.subr.mxu0 0.0
  %800 = vmatpush1.msra.mxu0 0.0
  %801 = vmatprep.subr.mxu0 0.0
  %802 = vmatpush1.msra.mxu0 0.0
  %803 = vmatprep.subr.mxu0 0.0
  %804 = vmatpush1.msra.mxu0 0.0
  %805 = vmatprep.subr.mxu0 0.0
  %806 = vmatpush1.msra.mxu0 0.0
  %807 = vmatprep.subr.mxu0 0.0
  %808 = vmatpush1.msra.mxu0 0.0
  %809 = vmatprep.subr.mxu0 0.0
  %810 = vmatpush1.msra.mxu0 0.0
  %811 = vmatprep.subr.mxu0 0.0
  %812 = vmatpush1.msra.mxu0 0.0
  %813 = vmatprep.subr.mxu0 0.0
  %814 = vmatpush1.msra.mxu0 0.0
  %815 = vmatprep.subr.mxu0 0.0
  %816 = vmatpush1.msra.mxu0 0.0
  %817 = vmatprep.subr.mxu0 0.0
  %818 = vmatpush1.msra.mxu0 0.0
  %819 = vmatprep.subr.mxu0 0.0
  %820 = vmatpush1.msra.mxu0 0.0
  %821 = vmatprep.subr.mxu0 0.0
  %822 = vmatpush1.msra.mxu0 0.0
  %823 = vmatprep.subr.mxu0 0.0
  %824 = vmatpush1.msra.mxu0 0.0
  %825 = vmatprep.subr.mxu0 0.0
  %826 = vmatpush1.msra.mxu0 0.0
  %827 = vmatprep.mubr.f32.mxu0 0.0
  %828 = vmatmul.mubr.f32.gmra.mrb[0].mxu0 %v683
  %v829 = vpop.f32.mrb[0].mxu0
  %v830 = vadd.f32 0.0, %v829
  %v831 = vpop.f32.mrb[0].mxu0
  %832 = vmatprep.mubr.f32.mxu0 0.0
  %833 = vmatmul.mubr.f32.gmra.mrb[0].mxu0 %v684
  %v834 = vpop.f32.mrb[0].mxu0
  %v835 = vadd.f32 0.0, %v834
  %v836 = vpop.f32.mrb[0].mxu0
  %837 = vmatprep.mubr.f32.mxu0 0.0
  %838 = vmatmul.mubr.f32.gmra.mrb[0].mxu0 %v685
  %v839 = vpop.f32.mrb[0].mxu0
  %v840 = vadd.f32 0.0, %v839
  %v841 = vpop.f32.mrb[0].mxu0
  %842 = vmatprep.mubr.f32.mxu0 0.0
  %843 = vmatmul.mubr.f32.gmra.mrb[0].mxu0 %v686
  %v844 = vpop.f32.mrb[0].mxu0
  %v845 = vadd.f32 0.0, %v844
  %v846 = vpop.f32.mrb[0].mxu0
  %847 = vmatprep.mubr.f32.mxu0 0.0
  %848 = vmatmul.mubr.f32.gmra.mrb[0].mxu0 %v687
  %v849 = vpop.f32.mrb[0].mxu0
  %v850 = vadd.f32 0.0, %v849
  %v851 = vpop.f32.mrb[0].mxu0
  %852 = vmatprep.mubr.f32.mxu0 0.0
  %853 = vmatmul.mubr.f32.gmra.mrb[0].mxu0 %v688
  %v854 = vpop.f32.mrb[0].mxu0
  %v855 = vadd.f32 0.0, %v854
  %v856 = vpop.f32.mrb[0].mxu0
  %857 = vmatprep.mubr.f32.mxu0 0.0
  %858 = vmatmul.mubr.f32.gmra.mrb[0].mxu0 %v689
  %v859 = vpop.f32.mrb[0].mxu0
  %v860 = vadd.f32 0.0, %v859
  %v861 = vpop.f32.mrb[0].mxu0
  %862 = vmatprep.mubr.f32.mxu0 0.0
  %863 = vmatmul.mubr.f32.gmra.mrb[0].mxu0 %v690
  %v864 = vpop.f32.mrb[0].mxu0
  %v865 = vadd.f32 0.0, %v864
  %v866 = vpop.f32.mrb[0].mxu0
  %867 = vmatprep.mubr.f32.mxu0 0.0
  %868 = vmatmul.mubr.f32.gmra.mrb[0].mxu0 %v691
  %v869 = vpop.f32.mrb[0].mxu0
  %v870 = vadd.f32 0.0, %v869
  %v871 = vpop.f32.mrb[0].mxu0
  %872 = vmatprep.mubr.f32.mxu0 0.0
  %873 = vmatmul.mubr.f32.gmra.mrb[0].mxu0 %v692
  %v874 = vpop.f32.mrb[0].mxu0
  %v875 = vadd.f32 0.0, %v874
  %v876 = vpop.f32.mrb[0].mxu0
  %877 = vmatprep.mubr.f32.mxu0 0.0
  %878 = vmatmul.mubr.f32.gmra.mrb[0].mxu0 %v693
  %v879 = vpop.f32.mrb[0].mxu0
  %v880 = vadd.f32 0.0, %v879
  %v881 = vpop.f32.mrb[0].mxu0
  %882 = vmatprep.mubr.f32.mxu0 0.0
  %883 = vmatmul.mubr.f32.gmra.mrb[0].mxu0 %v694
  %v884 = vpop.f32.mrb[0].mxu0
  %v885 = vadd.f32 0.0, %v884
  %v886 = vpop.f32.mrb[0].mxu0
  %887 = vmatprep.mubr.f32.mxu0 0.0
  %888 = vmatmul.mubr.f32.gmra.mrb[0].mxu0 %v695
  %v889 = vpop.f32.mrb[0].mxu0
  %v890 = vadd.f32 0.0, %v889
  %v891 = vpop.f32.mrb[0].mxu0
  %892 = vmatprep.mubr.f32.mxu0 0.0
  %893 = vmatmul.mubr.f32.gmra.mrb[0].mxu0 %v696
  %v894 = vpop.f32.mrb[0].mxu0
  %v895 = vadd.f32 0.0, %v894
  %v896 = vpop.f32.mrb[0].mxu0
  %897 = vmatprep.mubr.f32.mxu0 0.0
  %898 = vmatmul.mubr.f32.gmra.mrb[0].mxu0 %v697
  %v899 = vpop.f32.mrb[0].mxu0
  %v900 = vadd.f32 0.0, %v899
  %v901 = vpop.f32.mrb[0].mxu0
  %902 = vmatprep.mubr.f32.mxu0 0.0
  %903 = vmatmul.mubr.f32.gmra.mrb[0].mxu0 %v698
  %v904 = vpop.f32.mrb[0].mxu0
  %v905 = vadd.f32 0.0, %v904
  %v906 = vpop.f32.mrb[0].mxu0
  %907 = vmatprep.mubr.f32.mxu0 0.0
  %908 = vmatmul.mubr.f32.gmra.mrb[0].mxu0 %v699
  %v909 = vpop.f32.mrb[0].mxu0
  %v910 = vadd.f32 0.0, %v909
  %v911 = vpop.f32.mrb[0].mxu0
  %912 = vmatprep.mubr.f32.mxu0 0.0
  %913 = vmatmul.mubr.f32.gmra.mrb[0].mxu0 %v700
  %v914 = vpop.f32.mrb[0].mxu0
  %v915 = vadd.f32 0.0, %v914
  %v916 = vpop.f32.mrb[0].mxu0
  %917 = vmatprep.mubr.f32.mxu0 0.0
  %918 = vmatmul.mubr.f32.gmra.mrb[0].mxu0 %v701
  %v919 = vpop.f32.mrb[0].mxu0
  %v920 = vadd.f32 0.0, %v919
  %v921 = vpop.f32.mrb[0].mxu0
  %922 = vmatprep.mubr.f32.mxu0 0.0
  %923 = vmatmul.mubr.f32.gmra.mrb[0].mxu0 %v702
  %v924 = vpop.f32.mrb[0].mxu0
  %v925 = vadd.f32 0.0, %v924
  %v926 = vpop.f32.mrb[0].mxu0
  %927 = vmatprep.mubr.f32.mxu0 0.0
  %928 = vmatmul.mubr.f32.gmra.mrb[0].mxu0 %v703
  %v929 = vpop.f32.mrb[0].mxu0
  %v930 = vadd.f32 0.0, %v929
  %v931 = vpop.f32.mrb[0].mxu0
  %932 = vmatprep.mubr.f32.mxu0 0.0
  %933 = vmatmul.mubr.f32.gmra.mrb[0].mxu0 %v704
  %v934 = vpop.f32.mrb[0].mxu0
  %v935 = vadd.f32 0.0, %v934
  %v936 = vpop.f32.mrb[0].mxu0
  %937 = vmatprep.mubr.f32.mxu0 0.0
  %938 = vmatmul.mubr.f32.gmra.mrb[0].mxu0 %v705
  %v939 = vpop.f32.mrb[0].mxu0
  %v940 = vadd.f32 0.0, %v939
  %v941 = vpop.f32.mrb[0].mxu0
  %942 = vmatprep.mubr.f32.mxu0 0.0
  %943 = vmatmul.mubr.f32.gmra.mrb[0].mxu0 %v706
  %v944 = vpop.f32.mrb[0].mxu0
  %v945 = vadd.f32 0.0, %v944
  %v946 = vpop.f32.mrb[0].mxu0
  %947 = vmatprep.mubr.f32.mxu0 0.0
  %948 = vmatmul.mubr.f32.gmra.mrb[0].mxu0 %v707
  %v949 = vpop.f32.mrb[0].mxu0
  %v950 = vadd.f32 0.0, %v949
  %v951 = vpop.f32.mrb[0].mxu0
  %952 = vmatprep.mubr.f32.mxu0 0.0
  %953 = vmatmul.mubr.f32.gmra.mrb[0].mxu0 %v708
  %v954 = vpop.f32.mrb[0].mxu0
  %v955 = vadd.f32 0.0, %v954
  %v956 = vpop.f32.mrb[0].mxu0
  %957 = vmatprep.mubr.f32.mxu0 0.0
  %958 = vmatmul.mubr.f32.gmra.mrb[0].mxu0 %v709
  %v959 = vpop.f32.mrb[0].mxu0
  %v960 = vadd.f32 0.0, %v959
  %v961 = vpop.f32.mrb[0].mxu0
  %962 = vmatprep.mubr.f32.mxu0 0.0
  %963 = vmatmul.mubr.f32.gmra.mrb[0].mxu0 %v710
  %v964 = vpop.f32.mrb[0].mxu0
  %v965 = vadd.f32 0.0, %v964
  %v966 = vpop.f32.mrb[0].mxu0
  %967 = vmatprep.mubr.f32.mxu0 0.0
  %968 = vmatmul.mubr.f32.gmra.mrb[0].mxu0 %v711
  %v969 = vpop.f32.mrb[0].mxu0
  %v970 = vadd.f32 0.0, %v969
  %v971 = vpop.f32.mrb[0].mxu0
  %972 = vmatprep.mubr.f32.mxu0 0.0
  %973 = vmatmul.mubr.f32.gmra.mrb[0].mxu0 %v712
  %v974 = vpop.f32.mrb[0].mxu0
  %v975 = vadd.f32 0.0, %v974
  %v976 = vpop.f32.mrb[0].mxu0
  %977 = vmatprep.mubr.f32.mxu0 0.0
  %978 = vmatmul.mubr.f32.gmra.mrb[0].mxu0 %v713
  %v979 = vpop.f32.mrb[0].mxu0
  %v980 = vadd.f32 0.0, %v979
  %v981 = vpop.f32.mrb[0].mxu0
  %982 = vmatprep.mubr.f32.mxu0 0.0
  %983 = vmatmul.mubr.f32.gmra.mrb[0].mxu0 %v714
  %v984 = vpop.f32.mrb[0].mxu0
  %v985 = vadd.f32 0.0, %v984
  %v986 = vpop.f32.mrb[0].mxu0
  %987 = vmatprep.mubr.f32.mxu0 0.0
  %988 = vmatmul.mubr.f32.gmra.mrb[0].mxu0 %v715
  %v989 = vpop.f32.mrb[0].mxu0
  %v990 = vadd.f32 0.0, %v989
  %v991 = vpop.f32.mrb[0].mxu0
  %992 = vmatprep.mubr.f32.mxu0 0.0
  %993 = vmatmul.mubr.f32.gmra.mrb[0].mxu0 %v716
  %v994 = vpop.f32.mrb[0].mxu0
  %v995 = vadd.f32 0.0, %v994
  %v996 = vpop.f32.mrb[0].mxu0
  %997 = vmatprep.mubr.f32.mxu0 0.0
  %998 = vmatmul.mubr.f32.gmra.mrb[0].mxu0 %v717
  %v999 = vpop.f32.mrb[0].mxu0
  %v1000 = vadd.f32 0.0, %v999
  %v1001 = vpop.f32.mrb[0].mxu0
  %1002 = vmatprep.mubr.f32.mxu0 0.0
  %1003 = vmatmul.mubr.f32.gmra.mrb[0].mxu0 %v718
  %v1004 = vpop.f32.mrb[0].mxu0
  %v1005 = vadd.f32 0.0, %v1004
  %v1006 = vpop.f32.mrb[0].mxu0
  %1007 = vmatprep.mubr.f32.mxu0 0.0
  %1008 = vmatmul.mubr.f32.gmra.mrb[0].mxu0 %v719
  %v1009 = vpop.f32.mrb[0].mxu0
  %v1010 = vadd.f32 0.0, %v1009
  %v1011 = vpop.f32.mrb[0].mxu0
  %1012 = vmatprep.mubr.f32.mxu0 0.0
  %1013 = vmatmul.mubr.f32.gmra.mrb[0].mxu0 %v720
  %v1014 = vpop.f32.mrb[0].mxu0
  %v1015 = vadd.f32 0.0, %v1014
  %v1016 = vpop.f32.mrb[0].mxu0
  %1017 = vmatprep.mubr.f32.mxu0 0.0
  %1018 = vmatmul.mubr.f32.gmra.mrb[0].mxu0 %v721
  %v1019 = vpop.f32.mrb[0].mxu0
  %v1020 = vadd.f32 0.0, %v1019
  %v1021 = vpop.f32.mrb[0].mxu0
  %1022 = vmatprep.mubr.f32.mxu0 0.0
  %1023 = vmatmul.mubr.f32.gmra.mrb[0].mxu0 %v722
  %v1024 = vpop.f32.mrb[0].mxu0
  %v1025 = vadd.f32 0.0, %v1024
  %v1026 = vpop.f32.mrb[0].mxu0
  %1027 = vmatprep.mubr.f32.mxu0 0.0
  %1028 = vmatmul.mubr.f32.gmra.mrb[0].mxu0 %v723
  %v1029 = vpop.f32.mrb[0].mxu0
  %v1030 = vadd.f32 0.0, %v1029
  %v1031 = vpop.f32.mrb[0].mxu0
  %1032 = vmatprep.mubr.f32.mxu0 0.0
  %1033 = vmatmul.mubr.f32.gmra.mrb[0].mxu0 %v724
  %v1034 = vpop.f32.mrb[0].mxu0
  %v1035 = vadd.f32 0.0, %v1034
  %v1036 = vpop.f32.mrb[0].mxu0
  %1037 = vmatprep.mubr.f32.mxu0 0.0
  %1038 = vmatmul.mubr.f32.gmra.mrb[0].mxu0 %v725
  %v1039 = vpop.f32.mrb[0].mxu0
  %v1040 = vadd.f32 0.0, %v1039
  %v1041 = vpop.f32.mrb[0].mxu0
  %1042 = vmatprep.mubr.f32.mxu0 0.0
  %1043 = vmatmul.mubr.f32.gmra.mrb[0].mxu0 %v726
  %v1044 = vpop.f32.mrb[0].mxu0
  %v1045 = vadd.f32 0.0, %v1044
  %v1046 = vpop.f32.mrb[0].mxu0
  %1047 = vmatprep.mubr.f32.mxu0 0.0
  %1048 = vmatmul.mubr.f32.gmra.mrb[0].mxu0 %v727
  %v1049 = vpop.f32.mrb[0].mxu0
  %v1050 = vadd.f32 0.0, %v1049
  %v1051 = vpop.f32.mrb[0].mxu0
  %1052 = vmatprep.mubr.f32.mxu0 0.0
  %1053 = vmatmul.mubr.f32.gmra.mrb[0].mxu0 %v728
  %v1054 = vpop.f32.mrb[0].mxu0
  %v1055 = vadd.f32 0.0, %v1054
  %v1056 = vpop.f32.mrb[0].mxu0
  %1057 = vmatprep.mubr.f32.mxu0 0.0
  %1058 = vmatmul.mubr.f32.gmra.mrb[0].mxu0 %v729
  %v1059 = vpop.f32.mrb[0].mxu0
  %v1060 = vadd.f32 0.0, %v1059
  %v1061 = vpop.f32.mrb[0].mxu0
  %1062 = vmatprep.mubr.f32.mxu0 0.0
  %1063 = vmatmul.mubr.f32.gmra.mrb[0].mxu0 %v730
  %v1064 = vpop.f32.mrb[0].mxu0
  %v1065 = vadd.f32 0.0, %v1064
  %v1066 = vpop.f32.mrb[0].mxu0
  %1067 = vmatprep.mubr.f32.mxu0 0.0
  %1068 = vmatmul.mubr.f32.gmra.mrb[0].mxu0 %v731
  %v1069 = vpop.f32.mrb[0].mxu0
  %v1070 = vadd.f32 0.0, %v1069
  %v1071 = vpop.f32.mrb[0].mxu0
  %1072 = vmatprep.mubr.f32.mxu0 0.0
  %1073 = vmatmul.mubr.f32.gmra.mrb[0].mxu0 %v732
  %v1074 = vpop.f32.mrb[0].mxu0
  %v1075 = vadd.f32 0.0, %v1074
  %v1076 = vpop.f32.mrb[0].mxu0
  %1077 = vmatprep.mubr.f32.mxu0 0.0
  %1078 = vmatmul.mubr.f32.gmra.mrb[0].mxu0 %v733
  %v1079 = vpop.f32.mrb[0].mxu0
  %v1080 = vadd.f32 0.0, %v1079
  %v1081 = vpop.f32.mrb[0].mxu0
  %1082 = vmatprep.mubr.f32.mxu0 0.0
  %1083 = vmatmul.mubr.f32.gmra.mrb[0].mxu0 %v734
  %v1084 = vpop.f32.mrb[0].mxu0
  %v1085 = vadd.f32 0.0, %v1084
  %v1086 = vpop.f32.mrb[0].mxu0
  %1087 = vmatprep.mubr.f32.mxu0 0.0
  %1088 = vmatmul.mubr.f32.gmra.mrb[0].mxu0 %v735
  %v1089 = vpop.f32.mrb[0].mxu0
  %v1090 = vadd.f32 0.0, %v1089
  %v1091 = vpop.f32.mrb[0].mxu0
  %1092 = vmatprep.mubr.f32.mxu0 0.0
  %1093 = vmatmul.mubr.f32.gmra.mrb[0].mxu0 %v736
  %v1094 = vpop.f32.mrb[0].mxu0
  %v1095 = vadd.f32 0.0, %v1094
  %v1096 = vpop.f32.mrb[0].mxu0
  %1097 = vmatprep.mubr.f32.mxu0 0.0
  %1098 = vmatmul.mubr.f32.gmra.mrb[0].mxu0 %v737
  %v1099 = vpop.f32.mrb[0].mxu0
  %v1100 = vadd.f32 0.0, %v1099
  %v1101 = vpop.f32.mrb[0].mxu0
  %1102 = vmatprep.mubr.f32.mxu0 0.0
  %1103 = vmatmul.mubr.f32.gmra.mrb[0].mxu0 %v738
  %v1104 = vpop.f32.mrb[0].mxu0
  %v1105 = vadd.f32 0.0, %v1104
  %v1106 = vpop.f32.mrb[0].mxu0
  %1107 = vmatprep.mubr.f32.mxu0 0.0
  %1108 = vmatmul.mubr.f32.gmra.mrb[0].mxu0 %v739
  %v1109 = vpop.f32.mrb[0].mxu0
  %v1110 = vadd.f32 0.0, %v1109
  %v1111 = vpop.f32.mrb[0].mxu0
  %1112 = vmatprep.mubr.f32.mxu0 0.0
  %1113 = vmatmul.mubr.f32.gmra.mrb[0].mxu0 %v740
  %v1114 = vpop.f32.mrb[0].mxu0
  %v1115 = vadd.f32 0.0, %v1114
  %v1116 = vpop.f32.mrb[0].mxu0
  %1117 = vmatprep.mubr.f32.mxu0 0.0
  %1118 = vmatmul.mubr.f32.gmra.mrb[0].mxu0 %v741
  %v1119 = vpop.f32.mrb[0].mxu0
  %v1120 = vadd.f32 0.0, %v1119
  %v1121 = vpop.f32.mrb[0].mxu0
  %1122 = vmatprep.mubr.f32.mxu0 0.0
  %1123 = vmatmul.mubr.f32.gmra.mrb[0].mxu0 %v742
  %v1124 = vpop.f32.mrb[0].mxu0
  %v1125 = vadd.f32 0.0, %v1124
  %v1126 = vpop.f32.mrb[0].mxu0
  %1127 = vmatprep.mubr.f32.mxu0 0.0
  %1128 = vmatmul.mubr.f32.gmra.mrb[0].mxu0 %v743
  %v1129 = vpop.f32.mrb[0].mxu0
  %v1130 = vadd.f32 0.0, %v1129
  %v1131 = vpop.f32.mrb[0].mxu0
  %1132 = vmatprep.mubr.f32.mxu0 0.0
  %1133 = vmatmul.mubr.f32.gmra.mrb[0].mxu0 %v744
  %v1134 = vpop.f32.mrb[0].mxu0
  %v1135 = vadd.f32 0.0, %v1134
  %v1136 = vpop.f32.mrb[0].mxu0
  %1137 = vmatprep.mubr.f32.mxu0 0.0
  %1138 = vmatmul.mubr.f32.gmra.mrb[0].mxu0 %v745
  %v1139 = vpop.f32.mrb[0].mxu0
  %v1140 = vadd.f32 0.0, %v1139
  %v1141 = vpop.f32.mrb[0].mxu0
  %1142 = vmatprep.mubr.f32.mxu0 0.0
  %1143 = vmatmul.mubr.f32.gmra.mrb[0].mxu0 %v746
  %v1144 = vpop.f32.mrb[0].mxu0
  %v1145 = vadd.f32 0.0, %v1144
  %v1146 = vpop.f32.mrb[0].mxu0
  %1147 = vdwg.mxu0
  %v1148 = vadd.f32 %v363, %v830
  %v1149 = vadd.f32 %v364, %v835
  %v1150 = vadd.f32 %v365, %v840
  %v1151 = vadd.f32 %v366, %v845
  %v1152 = vadd.f32 %v367, %v850
  %v1153 = vadd.f32 %v368, %v855
  %v1154 = vadd.f32 %v369, %v860
  %v1155 = vadd.f32 %v370, %v865
  %v1156 = vadd.f32 %v371, %v870
  %v1157 = vadd.f32 %v372, %v875
  %v1158 = vadd.f32 %v373, %v880
  %v1159 = vadd.f32 %v374, %v885
  %v1160 = vadd.f32 %v375, %v890
  %v1161 = vadd.f32 %v376, %v895
  %v1162 = vadd.f32 %v377, %v900
  %v1163 = vadd.f32 %v378, %v905
  %v1164 = vadd.f32 %v379, %v910
  %v1165 = vadd.f32 %v380, %v915
  %v1166 = vadd.f32 %v381, %v920
  %v1167 = vadd.f32 %v382, %v925
  %v1168 = vadd.f32 %v383, %v930
  %v1169 = vadd.f32 %v384, %v935
  %v1170 = vadd.f32 %v385, %v940
  %v1171 = vadd.f32 %v386, %v945
  %v1172 = vadd.f32 %v387, %v950
  %v1173 = vadd.f32 %v388, %v955
  %v1174 = vadd.f32 %v389, %v960
  %v1175 = vadd.f32 %v390, %v965
  %v1176 = vadd.f32 %v391, %v970
  %v1177 = vadd.f32 %v392, %v975
  %v1178 = vadd.f32 %v393, %v980
  %v1179 = vadd.f32 %v394, %v985
  %v1180 = vadd.f32 %v395, %v990
  %v1181 = vadd.f32 %v396, %v995
  %v1182 = vadd.f32 %v397, %v1000
  %v1183 = vadd.f32 %v398, %v1005
  %v1184 = vadd.f32 %v399, %v1010
  %v1185 = vadd.f32 %v400, %v1015
  %v1186 = vadd.f32 %v401, %v1020
  %v1187 = vadd.f32 %v402, %v1025
  %v1188 = vadd.f32 %v403, %v1030
  %v1189 = vadd.f32 %v404, %v1035
  %v1190 = vadd.f32 %v405, %v1040
  %v1191 = vadd.f32 %v406, %v1045
  %v1192 = vadd.f32 %v407, %v1050
  %v1193 = vadd.f32 %v408, %v1055
  %v1194 = vadd.f32 %v409, %v1060
  %v1195 = vadd.f32 %v410, %v1065
  %v1196 = vadd.f32 %v411, %v1070
  %v1197 = vadd.f32 %v412, %v1075
  %v1198 = vadd.f32 %v413, %v1080
  %v1199 = vadd.f32 %v414, %v1085
  %v1200 = vadd.f32 %v415, %v1090
  %v1201 = vadd.f32 %v416, %v1095
  %v1202 = vadd.f32 %v417, %v1100
  %v1203 = vadd.f32 %v418, %v1105
  %v1204 = vadd.f32 %v419, %v1110
  %v1205 = vadd.f32 %v420, %v1115
  %v1206 = vadd.f32 %v421, %v1120
  %v1207 = vadd.f32 %v422, %v1125
  %v1208 = vadd.f32 %v423, %v1130
  %v1209 = vadd.f32 %v424, %v1135
  %v1210 = vadd.f32 %v425, %v1140
  %v1211 = vadd.f32 %v426, %v1145
  %1212 = vst [vmem:[%s7] sm:$0xff] %v1148
  %1213 = vst [vmem:[%s7 + $0x8] sm:$0xff] %v1149
  %1214 = vst [vmem:[%s7 + $0x10] sm:$0xff] %v1150
  %1215 = vst [vmem:[%s7 + $0x18] sm:$0xff] %v1151
  %1216 = vst [vmem:[%s7 + $0x20] sm:$0xff] %v1152
  %1217 = vst [vmem:[%s7 + $0x28] sm:$0xff] %v1153
  %1218 = vst [vmem:[%s7 + $0x30] sm:$0xff] %v1154
  %1219 = vst [vmem:[%s7 + $0x38] sm:$0xff] %v1155
  %1220 = vst [vmem:[%s7 + $0x40] sm:$0xff] %v1156
  %1221 = vst [vmem:[%s7 + $0x48] sm:$0xff] %v1157
  %1222 = vst [vmem:[%s7 + $0x50] sm:$0xff] %v1158
  %1223 = vst [vmem:[%s7 + $0x58] sm:$0xff] %v1159
  %1224 = vst [vmem:[%s7 + $0x60] sm:$0xff] %v1160
  %1225 = vst [vmem:[%s7 + $0x68] sm:$0xff] %v1161
  %1226 = vst [vmem:[%s7 + $0x70] sm:$0xff] %v1162
  %1227 = vst [vmem:[%s7 + $0x78] sm:$0xff] %v1163
  %1228 = vst [vmem:[%s7 + $0x80] sm:$0xff] %v1164
  %1229 = vst [vmem:[%s7 + $0x88] sm:$0xff] %v1165
  %1230 = vst [vmem:[%s7 + $0x90] sm:$0xff] %v1166
  %1231 = vst [vmem:[%s7 + $0x98] sm:$0xff] %v1167
  %1232 = vst [vmem:[%s7 + $0xa0] sm:$0xff] %v1168
  %1233 = vst [vmem:[%s7 + $0xa8] sm:$0xff] %v1169
  %1234 = vst [vmem:[%s7 + $0xb0] sm:$0xff] %v1170
  %1235 = vst [vmem:[%s7 + $0xb8] sm:$0xff] %v1171
  %1236 = vst [vmem:[%s7 + $0xc0] sm:$0xff] %v1172
  %1237 = vst [vmem:[%s7 + $0xc8] sm:$0xff] %v1173
  %1238 = vst [vmem:[%s7 + $0xd0] sm:$0xff] %v1174
  %1239 = vst [vmem:[%s7 + $0xd8] sm:$0xff] %v1175
  %1240 = vst [vmem:[%s7 + $0xe0] sm:$0xff] %v1176
  %1241 = vst [vmem:[%s7 + $0xe8] sm:$0xff] %v1177
  %1242 = vst [vmem:[%s7 + $0xf0] sm:$0xff] %v1178
  %1243 = vst [vmem:[%s7 + $0xf8] sm:$0xff] %v1179
  %1244 = vst [vmem:[%s7 + $0x100] sm:$0xff] %v1180
  %1245 = vst [vmem:[%s7 + $0x108] sm:$0xff] %v1181
  %1246 = vst [vmem:[%s7 + $0x110] sm:$0xff] %v1182
  %1247 = vst [vmem:[%s7 + $0x118] sm:$0xff] %v1183
  %1248 = vst [vmem:[%s7 + $0x120] sm:$0xff] %v1184
  %1249 = vst [vmem:[%s7 + $0x128] sm:$0xff] %v1185
  %1250 = vst [vmem:[%s7 + $0x130] sm:$0xff] %v1186
  %1251 = vst [vmem:[%s7 + $0x138] sm:$0xff] %v1187
  %1252 = vst [vmem:[%s7 + $0x140] sm:$0xff] %v1188
  %1253 = vst [vmem:[%s7 + $0x148] sm:$0xff] %v1189
  %1254 = vst [vmem:[%s7 + $0x150] sm:$0xff] %v1190
  %1255 = vst [vmem:[%s7 + $0x158] sm:$0xff] %v1191
  %1256 = vst [vmem:[%s7 + $0x160] sm:$0xff] %v1192
  %1257 = vst [vmem:[%s7 + $0x168] sm:$0xff] %v1193
  %1258 = vst [vmem:[%s7 + $0x170] sm:$0xff] %v1194
  %1259 = vst [vmem:[%s7 + $0x178] sm:$0xff] %v1195
  %1260 = vst [vmem:[%s7 + $0x180] sm:$0xff] %v1196
  %1261 = vst [vmem:[%s7 + $0x188] sm:$0xff] %v1197
  %1262 = vst [vmem:[%s7 + $0x190] sm:$0xff] %v1198
  %1263 = vst [vmem:[%s7 + $0x198] sm:$0xff] %v1199
  %1264 = vst [vmem:[%s7 + $0x1a0] sm:$0xff] %v1200
  %1265 = vst [vmem:[%s7 + $0x1a8] sm:$0xff] %v1201
  %1266 = vst [vmem:[%s7 + $0x1b0] sm:$0xff] %v1202
  %1267 = vst [vmem:[%s7 + $0x1b8] sm:$0xff] %v1203
  %1268 = vst [vmem:[%s7 + $0x1c0] sm:$0xff] %v1204
  %1269 = vst [vmem:[%s7 + $0x1c8] sm:$0xff] %v1205
  %1270 = vst [vmem:[%s7 + $0x1d0] sm:$0xff] %v1206
  %1271 = vst [vmem:[%s7 + $0x1d8] sm:$0xff] %v1207
  %1272 = vst [vmem:[%s7 + $0x1e0] sm:$0xff] %v1208
  %1273 = vst [vmem:[%s7 + $0x1e8] sm:$0xff] %v1209
  %1274 = vst [vmem:[%s7 + $0x1f0] sm:$0xff] %v1210
  %1275 = vst [vmem:[%s7 + $0x1f8] sm:$0xff] %v1211
  // Predicated region
  $region30: #{maegin_forward.5} parent=0 // pred_check
    _
  $region31: #{maegin_forward.5} parent=0 // pred_check_branch
    %1277 = sbr.rel (0) target = $region33
  $region32: #{maegin_forward.5} parent=0 // pred_region
    _
  $region33: #{maegin_forward.5} parent=0 // pred_fallthru
    _
  // Predicated region
  $region34: #{maegin_forward.5} parent=0 // pred_check
    _
  $region35: #{maegin_forward.5} parent=0 // pred_check_branch
    %1279 = sbr.rel (0) target = $region37
  $region36: #{maegin_forward.5} parent=0 // pred_region
    _
  $region37: #{maegin_forward.5} parent=0 // pred_fallthru
    _

</llo_original>
